<compile_context>
chip_gen: v7x
topology: tpu7x:2x2x1
jax: 0.10.0
libtpu: 0.0.40
codegen_flags: <defaults>
</compile_context>

<pallas_src>
import functools
import numpy as np
import jax
import jax.numpy as jnp
from jax.experimental import pallas as pl
from jax.experimental.pallas import tpu as pltpu


# ----------------------------- configuration -------------------------------
DIM = 32               # C
NUM_HEADS = 4
RES = (8, 8)           # (H, W)
WINDOW_SIZE = 4
SHIFT_SIZE = 2
MLP_RATIO = 4
BATCH = 2


# ----------------------------- host-side helpers ----------------------------
def window_partition(x, ws):
    B, H, W, C = x.shape
    x = x.reshape(B, H // ws, ws, W // ws, ws, C)
    return x.transpose(0, 1, 3, 2, 4, 5).reshape(-1, ws, ws, C)


def window_reverse(windows, ws, H, W):
    C = windows.shape[-1]
    B = windows.shape[0] // (H * W // ws // ws)
    x = windows.reshape(B, H // ws, W // ws, ws, ws, C)
    return x.transpose(0, 1, 3, 2, 4, 5).reshape(B, H, W, C)


def make_relative_position_index(ws):
    coords = np.stack(np.meshgrid(np.arange(ws), np.arange(ws), indexing="ij"))  # (2,ws,ws)
    flat = coords.reshape(2, -1)
    rel = flat[:, :, None] - flat[:, None, :]           # (2, N, N)
    rel = rel.transpose(1, 2, 0).astype(np.int64)       # (N, N, 2)
    rel[:, :, 0] += ws - 1
    rel[:, :, 1] += ws - 1
    rel[:, :, 1] *= 2 * ws - 1                          # matches the reference module
    return rel.sum(-1)                                  # (N, N)


def make_attn_mask(H, W, ws, shift):
    if shift <= 0:
        return None
    img_mask = np.zeros((1, H, W, 1), np.float32)
    slices = (slice(0, -ws), slice(-ws, -shift), slice(-shift, None))
    cnt = 0
    for h in slices:
        for w in slices:
            img_mask[:, h, w, :] = cnt
            cnt += 1
    mw = window_partition(img_mask, ws).reshape(-1, ws * ws)       # (nW, N)
    mask = mw[:, None, :] - mw[:, :, None]                         # (nW, N, N)
    return np.where(mask != 0, -100.0, 0.0).astype(np.float32)


def make_shift_window_permutation(H, W, ws, shift):
    """P[t, m] = 1 iff window-ordered token t reads image-row-major token m
    after the cyclic (-shift,-shift) roll."""
    M = H * W
    nWw = W // ws
    P = np.zeros((M, M), np.float32)
    for wi in range(H // ws):
        for wj in range(nWw):
            for a in range(ws):
                for b in range(ws):
                    t = (wi * nWw + wj) * ws * ws + a * ws + b
                    src_h = (wi * ws + a + shift) % H
                    src_w = (wj * ws + b + shift) % W
                    P[t, src_h * W + src_w] = 1.0
    return P


def make_fused_bias(rel_bias, attn_mask, num_windows, P, images_per_step, neg=-1e9):
    """Fold rel-pos bias + shift mask + off-window/-image masking into ONE
    additive (num_heads, R, R) bias over *image-token order* (R = bpg*M):
      per-window bias -> block-diag over windows -> pre-permute with P^T . P
      (so the shift/window permutation never touches the kernel) -> block-diag
      over the images of a grid step.  Stored bf16 (mask values exact)."""
    nh, N, _ = rel_bias.shape
    M = num_windows * N
    if attn_mask is not None:
        per_win = rel_bias[None] + attn_mask[:, None]              # (nW, nh, N, N)
    else:
        per_win = jnp.broadcast_to(rel_bias[None], (num_windows, nh, N, N))
    big = jnp.full((nh, M, M), neg, jnp.float32)
    for w in range(num_windows):                                    # nW is tiny & static
        big = big.at[:, w * N:(w + 1) * N, w * N:(w + 1) * N].set(per_win[w])
    Pj = jnp.asarray(P, jnp.float32)
    # bias' = P^T @ big @ P  (per head): attention in image order + bias' ==
    # attention in shifted/window order + big  (softmax commutes with the
    # simultaneous row+column permutation).
    bias_img = jnp.einsum("tm,hts,sn->hmn", Pj, big, Pj)            # (nh, M, M)
    R = images_per_step * M
    full = jnp.full((nh, R, R), neg, jnp.float32)
    for b in range(images_per_step):
        full = full.at[:, b * M:(b + 1) * M, b * M:(b + 1) * M].set(bias_img)
    return full.astype(jnp.bfloat16)


def _gelu_tanh(x):
    # tanh-form GELU: transcendental goes to the EUP slot (few VALU ops).
    c = float(np.sqrt(2.0 / np.pi))
    return 0.5 * x * (1.0 + jnp.tanh(c * (x + 0.044715 * x * x * x)))


def _gelu_erf_ref(x):
    # exact nn.GELU() (erf) for the pure-JAX reference.
    return 0.5 * x * (1.0 + jax.lax.erf(x * (1.0 / np.sqrt(2.0))))


def _tensorcores_per_chip():
    """2 on v7x (keep a parallel grid so both TCs run), 1 otherwise."""
    try:
        kind = jax.devices()[0].device_kind.lower()
        if "v7" in kind or "tpu7" in kind:
            return 2
    except Exception:
        pass
    return 1


# ------------------------------ fused Pallas kernel -------------------------
def _swin_block_kernel(x_ref, wqkv_ref, bqkv_ref, wproj_ref, bproj_ref,
                       bias_ref, w1_ref, b1m_ref, w2_ref, b2m_ref, o_ref,
                       *, num_heads):
    x = x_ref[...].astype(jnp.float32)                                 # (R, C)
    R, C = x.shape
    hd = C // num_heads
    bf16 = jnp.bfloat16

    # --- LayerNorm 1 (affine + attn scale folded into wqkv/bqkv) ---
    mu = jnp.mean(x, axis=-1, keepdims=True)
    var = jnp.mean(jnp.square(x - mu), axis=-1, keepdims=True)
    xhat = (x - mu) * jax.lax.rsqrt(var + 1e-5)

    # --- QKV projection for all tokens at once (bf16 MXU, f32 acc) ---
    qkv = jnp.dot(xhat.astype(bf16), wqkv_ref[...],
                  preferred_element_type=jnp.float32) + bqkv_ref[...]   # (R, 3C)

    wproj = wproj_ref[...]                                              # bf16 (C, C)
    acc = jnp.zeros((R, C), jnp.float32)
    for h in range(num_heads):
        q = qkv[:, h * hd:(h + 1) * hd].astype(bf16)                    # scale pre-folded
        k = qkv[:, C + h * hd:C + (h + 1) * hd].astype(bf16)
        v = qkv[:, 2 * C + h * hd:2 * C + (h + 1) * hd].astype(bf16)
        # block-diagonal scores over all windows (and stacked images) at once
        s = jax.lax.dot_general(q, k, (((1,), (1,)), ((), ())),
                                preferred_element_type=jnp.float32)     # (R, R)
        s = s + bias_ref[h].astype(jnp.float32)    # rel-pos + shift mask + -1e9 off-window
        s = s - jnp.max(s, axis=-1, keepdims=True)
        p = jnp.exp(s)
        p = p * pl.reciprocal(jnp.sum(p, axis=-1, keepdims=True), approx=True)
        pv = jnp.dot(p.astype(bf16), v, preferred_element_type=jnp.float32)  # (R, hd)
        # fold the head-concat into the output projection (no lane concat)
        acc = acc + jnp.dot(pv.astype(bf16), wproj[h * hd:(h + 1) * hd, :],
                            preferred_element_type=jnp.float32)
    x1 = x + acc + bproj_ref[...]                                       # residual (drop_path=Id)

    # --- LayerNorm 2 (affine folded into w1/b1m) ---
    mu2 = jnp.mean(x1, axis=-1, keepdims=True)
    var2 = jnp.mean(jnp.square(x1 - mu2), axis=-1, keepdims=True)
    xhat2 = (x1 - mu2) * jax.lax.rsqrt(var2 + 1e-5)

    # --- MLP ---
    hdn = jnp.dot(xhat2.astype(bf16), w1_ref[...],
                  preferred_element_type=jnp.float32) + b1m_ref[...]
    hdn = _gelu_tanh(hdn)
    y = jnp.dot(hdn.astype(bf16), w2_ref[...],
                preferred_element_type=jnp.float32) + b2m_ref[...]

    o_ref[...] = (x1 + y).astype(o_ref.dtype)


def swin_block_forward(x, params, *, H, W, window_size, shift_size, num_heads):
    B, M, C = x.shape
    N = window_size * window_size
    nW = (H // window_size) * (W // window_size)
    hidden = params["w1_t"].shape[1]
    scale = (C // num_heads) ** -0.5
    f32, bf16 = jnp.float32, jnp.bfloat16

    # --- core partitioning: 1 step w/ batch stacked on sublanes (v5e/v6e),
    #     num_cores parallel steps on v7x ---
    tc = _tensorcores_per_chip()
    n_steps = tc if (tc > 1 and B % tc == 0) else 1
    bpg = B // n_steps
    R = bpg * M

    # --- fused, pre-permuted additive attention bias (tiny XLA param prep) ---
    P = make_shift_window_permutation(H, W, window_size, shift_size)
    rel_bias = params["rpb_table"][params["rpi"].reshape(-1)]
    rel_bias = rel_bias.reshape(N, N, num_heads).transpose(2, 0, 1)     # (nh, N, N)
    bias = make_fused_bias(rel_bias, params["attn_mask"], nW, P, bpg)   # (nh, R, R) bf16

    # --- exact weight folding: LN1 affine + attn scale -> qkv; LN2 affine -> mlp fc1 ---
    scale_vec = jnp.concatenate([jnp.full((C,), scale, f32), jnp.ones((2 * C,), f32)])
    wqkv_f = (params["wqkv_t"] * params["g1"][:, None]) * scale_vec[None, :]
    bqkv_f = (params["b1"] @ params["wqkv_t"]) * scale_vec
    w1_f = params["w1_t"] * params["g2"][:, None]
    b1_f = params["b1m"] + params["b2"] @ params["w1_t"]

    kern = functools.partial(_swin_block_kernel, num_heads=num_heads)

    def bc(shape):               # broadcast (grid-constant) full-block spec
        nd = len(shape)
        return pl.BlockSpec(shape, lambda b, _nd=nd: (0,) * _nd)

    out2d = pl.pallas_call(
        kern,
        out_shape=jax.ShapeDtypeStruct((B * M, C), x.dtype),
        grid=(n_steps,),
        in_specs=[
            pl.BlockSpec((R, C), lambda b: (b, 0)),         # x (stacked tokens)
            bc((C, 3 * C)),                                 # wqkv (folded, bf16)
            bc((1, 3 * C)),                                 # bqkv (folded, f32)
            bc((C, C)),                                     # wproj (bf16)
            bc((1, C)),                                     # bproj
            bc((num_heads, R, R)),                          # fused bias (bf16)
            bc((C, hidden)), bc((1, hidden)),               # w1 (folded, bf16), b1 (folded)
            bc((hidden, C)), bc((1, C)),                    # w2 (bf16), b2m
        ],
        out_specs=pl.BlockSpec((R, C), lambda b: (b, 0)),
        compiler_params=pltpu.CompilerParams(dimension_semantics=("parallel",)),
    )(x.reshape(B * M, C),
      wqkv_f.astype(bf16), bqkv_f.reshape(1, 3 * C),
      params["wproj_t"].astype(bf16), params["bproj"].reshape(1, C),
      bias,
      w1_f.astype(bf16), b1_f.reshape(1, hidden),
      params["w2_t"].astype(bf16), params["b2m"].reshape(1, C))
    return out2d.reshape(B, M, C)


# ------------------------------ pure-JAX reference --------------------------
def reference_forward(x, params, *, H, W, window_size, shift_size, num_heads):
    B, M, C = x.shape
    N = window_size * window_size
    hd = C // num_heads
    scale = hd ** -0.5

    def ln(t, g, b):
        mu = jnp.mean(t, -1, keepdims=True)
        var = jnp.mean(jnp.square(t - mu), -1, keepdims=True)
        return (t - mu) * jax.lax.rsqrt(var + 1e-5) * g + b

    shortcut = x
    xn = ln(x, params["g1"], params["b1"]).reshape(B, H, W, C)
    shifted = jnp.roll(xn, (-shift_size, -shift_size), (1, 2)) if shift_size > 0 else xn
    xw = window_partition(shifted, window_size).reshape(-1, N, C)

    qkv = xw @ params["wqkv_t"]
    q, k, v = jnp.split(qkv, 3, axis=-1)
    heads = lambda t: t.reshape(t.shape[0], N, num_heads, hd).transpose(0, 2, 1, 3)
    q, k, v = heads(q) * scale, heads(k), heads(v)
    attn = q @ k.transpose(0, 1, 3, 2)
    rel_bias = params["rpb_table"][params["rpi"].reshape(-1)]
    rel_bias = rel_bias.reshape(N, N, num_heads).transpose(2, 0, 1)
    attn = attn + rel_bias[None]
    if params["attn_mask"] is not None:
        nW = params["attn_mask"].shape[0]
        attn = attn.reshape(B, nW, num_heads, N, N) + params["attn_mask"][None, :, None]
        attn = attn.reshape(-1, num_heads, N, N)
    attn = jax.nn.softmax(attn, axis=-1)
    out = (attn @ v).transpose(0, 2, 1, 3).reshape(-1, N, C)
    out = out @ params["wproj_t"] + params["bproj"]
    out = window_reverse(out.reshape(-1, window_size, window_size, C), window_size, H, W)
    out = jnp.roll(out, (shift_size, shift_size), (1, 2)) if shift_size > 0 else out
    x = shortcut + out.reshape(B, M, C)
    xn2 = ln(x, params["g2"], params["b2"])
    h = _gelu_erf_ref(xn2 @ params["w1_t"] + params["b1m"])
    return x + h @ params["w2_t"] + params["b2m"]


# ---------------------------------- main -------------------------------------
if __name__ == "__main__":
    H, W = RES
    C = DIM
    WS = WINDOW_SIZE
    N = WS * WS
    HIDDEN = int(MLP_RATIO * C)

    key = jax.random.PRNGKey(0)
    ks = jax.random.split(key, 16)
    f32 = jnp.float32

    rpi = jnp.asarray(make_relative_position_index(WS), jnp.int32)
    attn_mask_np = make_attn_mask(H, W, WS, SHIFT_SIZE)

    params = {
        "g1": 1.0 + 0.1 * jax.random.normal(ks[0], (C,), f32),
        "b1": 0.1 * jax.random.normal(ks[1], (C,), f32),
        "wqkv_t": (0.05 * jax.random.normal(ks[2], (3 * C, C), f32)).T,   # qkv_bias=False
        "wproj_t": (0.05 * jax.random.normal(ks[3], (C, C), f32)).T,
        "bproj": 0.05 * jax.random.normal(ks[4], (C,), f32),
        "rpb_table": 0.05 * jax.random.normal(ks[5], ((2 * WS - 1) ** 2, NUM_HEADS), f32),
        "rpi": rpi,
        "attn_mask": jnp.asarray(attn_mask_np) if attn_mask_np is not None else None,
        "g2": 1.0 + 0.1 * jax.random.normal(ks[6], (C,), f32),
        "b2": 0.1 * jax.random.normal(ks[7], (C,), f32),
        "w1_t": (0.05 * jax.random.normal(ks[8], (HIDDEN, C), f32)).T,
        "b1m": 0.05 * jax.random.normal(ks[9], (HIDDEN,), f32),
        "w2_t": (0.05 * jax.random.normal(ks[10], (C, HIDDEN), f32)).T,
        "b2m": 0.05 * jax.random.normal(ks[11], (C,), f32),
    }

    x = jax.random.normal(jax.random.PRNGKey(0), (BATCH, H * W, C), f32)

    fwd = jax.jit(functools.partial(swin_block_forward, H=H, W=W, window_size=WS,
                                    shift_size=SHIFT_SIZE, num_heads=NUM_HEADS))
    out = fwd(x, params)
    out = jax.block_until_ready(out)

    ref = reference_forward(x, params, H=H, W=W, window_size=WS,
                            shift_size=SHIFT_SIZE, num_heads=NUM_HEADS)
    ref = jax.block_until_ready(ref)

    if not bool(jnp.allclose(out, ref, atol=5e-2, rtol=5e-2)):
        raise AssertionError("Pallas Swin block does not match JAX reference")

    print("KERNEL_OK")
</pallas_src>

<mosaic_0001>
module attributes {stable_mosaic.version = 11 : i64} {
  func.func @_swin_block_kernel(%arg0: i32, %arg1: memref<128x32xf32, #tpu.memory_space<vmem>>, %arg2: memref<32x96xbf16, #tpu.memory_space<vmem>>, %arg3: memref<1x96xf32, #tpu.memory_space<vmem>>, %arg4: memref<32x32xbf16, #tpu.memory_space<vmem>>, %arg5: memref<1x32xf32, #tpu.memory_space<vmem>>, %arg6: memref<4x128x128xbf16, #tpu.memory_space<vmem>>, %arg7: memref<32x128xbf16, #tpu.memory_space<vmem>>, %arg8: memref<1x128xf32, #tpu.memory_space<vmem>>, %arg9: memref<128x32xbf16, #tpu.memory_space<vmem>>, %arg10: memref<1x32xf32, #tpu.memory_space<vmem>>, %arg11: memref<128x32xf32, #tpu.memory_space<vmem>>) attributes {dimension_semantics = [#tpu.dimension_semantics<parallel>], iteration_bounds = array<i64: 1>, scalar_prefetch = 0 : i64, scratch_operands = 0 : i64, tpu.core_type = #tpu.core_type<tc>, window_params = [{transform_indices = @transform_0, window_bounds = array<i64: 128, 32>}, {pipeline_mode = #tpu.pipeline_mode<synchronous>, transform_indices = @transform_1, window_bounds = array<i64: 32, 96>}, {pipeline_mode = #tpu.pipeline_mode<synchronous>, transform_indices = @transform_2, window_bounds = array<i64: 1, 96>}, {pipeline_mode = #tpu.pipeline_mode<synchronous>, transform_indices = @transform_3, window_bounds = array<i64: 32, 32>}, {pipeline_mode = #tpu.pipeline_mode<synchronous>, transform_indices = @transform_4, window_bounds = array<i64: 1, 32>}, {pipeline_mode = #tpu.pipeline_mode<synchronous>, transform_indices = @transform_5, window_bounds = array<i64: 4, 128, 128>}, {pipeline_mode = #tpu.pipeline_mode<synchronous>, transform_indices = @transform_6, window_bounds = array<i64: 32, 128>}, {pipeline_mode = #tpu.pipeline_mode<synchronous>, transform_indices = @transform_7, window_bounds = array<i64: 1, 128>}, {pipeline_mode = #tpu.pipeline_mode<synchronous>, transform_indices = @transform_8, window_bounds = array<i64: 128, 32>}, {pipeline_mode = #tpu.pipeline_mode<synchronous>, transform_indices = @transform_9, window_bounds = array<i64: 1, 32>}, {transform_indices = @transform_10, window_bounds = array<i64: 128, 32>}]} {
    %c0 = arith.constant 0 : index
    %c0_0 = arith.constant 0 : index
    %0 = vector.load %arg1[%c0, %c0_0] : memref<128x32xf32, #tpu.memory_space<vmem>>, vector<128x32xf32>
    %cst = arith.constant dense<0.000000e+00> : vector<128xf32>
    %1 = vector.multi_reduction <add>, %0, %cst [1] : vector<128x32xf32> to vector<128xf32>
    %2 = vector.shape_cast %1 : vector<128xf32> to vector<128x1xf32>
    %cst_1 = arith.constant 3.200000e+01 : f32
    %3 = vector.broadcast %cst_1 : f32 to vector<128x1xf32>
    %4 = arith.divf %2, %3 : vector<128x1xf32>
    %5 = vector.broadcast %4 : vector<128x1xf32> to vector<128x32xf32>
    %6 = arith.subf %0, %5 : vector<128x32xf32>
    %7 = arith.mulf %6, %6 : vector<128x32xf32>
    %cst_2 = arith.constant dense<0.000000e+00> : vector<128xf32>
    %8 = vector.multi_reduction <add>, %7, %cst_2 [1] : vector<128x32xf32> to vector<128xf32>
    %9 = vector.shape_cast %8 : vector<128xf32> to vector<128x1xf32>
    %cst_3 = arith.constant 3.200000e+01 : f32
    %10 = vector.broadcast %cst_3 : f32 to vector<128x1xf32>
    %11 = arith.divf %9, %10 : vector<128x1xf32>
    %12 = vector.broadcast %4 : vector<128x1xf32> to vector<128x32xf32>
    %13 = arith.subf %0, %12 : vector<128x32xf32>
    %cst_4 = arith.constant 9.99999974E-6 : f32
    %14 = vector.broadcast %cst_4 : f32 to vector<128x1xf32>
    %15 = arith.addf %11, %14 : vector<128x1xf32>
    %16 = math.rsqrt %15 : vector<128x1xf32>
    %17 = vector.broadcast %16 : vector<128x1xf32> to vector<128x32xf32>
    %18 = arith.mulf %13, %17 : vector<128x32xf32>
    %19 = arith.truncf %18 : vector<128x32xf32> to vector<128x32xbf16>
    %c0_5 = arith.constant 0 : index
    %c0_6 = arith.constant 0 : index
    %20 = vector.load %arg2[%c0_5, %c0_6] : memref<32x96xbf16, #tpu.memory_space<vmem>>, vector<32x96xbf16>
    %cst_7 = arith.constant dense<0.000000e+00> : vector<128x96xf32>
    %21 = tpu.matmul %19, %20, %cst_7 {dimension_numbers = #tpu.dot_dimension_numbers<[1], [0], [0], [1], [0, 0, 1, 1], [], []>} : vector<128x32xbf16>, vector<32x96xbf16>, vector<128x96xf32> -> vector<128x96xf32>
    %c0_8 = arith.constant 0 : index
    %c0_9 = arith.constant 0 : index
    %22 = vector.load %arg3[%c0_8, %c0_9] : memref<1x96xf32, #tpu.memory_space<vmem>>, vector<1x96xf32>
    %23 = vector.broadcast %22 : vector<1x96xf32> to vector<128x96xf32>
    %24 = arith.addf %21, %23 : vector<128x96xf32>
    %c0_10 = arith.constant 0 : index
    %c0_11 = arith.constant 0 : index
    %25 = vector.load %arg4[%c0_10, %c0_11] : memref<32x32xbf16, #tpu.memory_space<vmem>>, vector<32x32xbf16>
    %cst_12 = arith.constant 0.000000e+00 : f32
    %26 = vector.broadcast %cst_12 : f32 to vector<128x32xf32>
    %27 = vector.extract_strided_slice %24 {offsets = [0, 0], sizes = [128, 8], strides = [1, 1]} : vector<128x96xf32> to vector<128x8xf32>
    %28 = arith.truncf %27 : vector<128x8xf32> to vector<128x8xbf16>
    %29 = vector.extract_strided_slice %24 {offsets = [0, 32], sizes = [128, 8], strides = [1, 1]} : vector<128x96xf32> to vector<128x8xf32>
    %30 = arith.truncf %29 : vector<128x8xf32> to vector<128x8xbf16>
    %31 = vector.extract_strided_slice %24 {offsets = [0, 64], sizes = [128, 8], strides = [1, 1]} : vector<128x96xf32> to vector<128x8xf32>
    %32 = arith.truncf %31 : vector<128x8xf32> to vector<128x8xbf16>
    %cst_13 = arith.constant dense<0.000000e+00> : vector<128x128xf32>
    %33 = tpu.matmul %28, %30, %cst_13 {dimension_numbers = #tpu.dot_dimension_numbers<[1], [1], [0], [0], [0, 0, 1, 0], [], []>} : vector<128x8xbf16>, vector<128x8xbf16>, vector<128x128xf32> -> vector<128x128xf32>
    %c0_14 = arith.constant 0 : index
    %c0_15 = arith.constant 0 : index
    %c0_16 = arith.constant 0 : index
    %34 = vector.load %arg6[%c0_14, %c0_15, %c0_16] : memref<4x128x128xbf16, #tpu.memory_space<vmem>>, vector<1x128x128xbf16>
    %35 = vector.shape_cast %34 : vector<1x128x128xbf16> to vector<128x128xbf16>
    %36 = arith.extf %35 : vector<128x128xbf16> to vector<128x128xf32>
    %37 = arith.addf %33, %36 : vector<128x128xf32>
    %cst_17 = arith.constant dense<0xFF800000> : vector<128xf32>
    %38 = vector.multi_reduction <maximumf>, %37, %cst_17 [1] : vector<128x128xf32> to vector<128xf32>
    %39 = vector.shape_cast %38 : vector<128xf32> to vector<128x1xf32>
    %40 = vector.broadcast %39 : vector<128x1xf32> to vector<128x128xf32>
    %41 = arith.subf %37, %40 : vector<128x128xf32>
    %42 = math.exp %41 : vector<128x128xf32>
    %cst_18 = arith.constant dense<0.000000e+00> : vector<128xf32>
    %43 = vector.multi_reduction <add>, %42, %cst_18 [1] : vector<128x128xf32> to vector<128xf32>
    %44 = vector.shape_cast %43 : vector<128xf32> to vector<128x1xf32>
    %45 = tpu.reciprocal %44 {approx = true} : vector<128x1xf32> -> vector<128x1xf32>
    %46 = vector.broadcast %45 : vector<128x1xf32> to vector<128x128xf32>
    %47 = arith.mulf %42, %46 : vector<128x128xf32>
    %48 = arith.truncf %47 : vector<128x128xf32> to vector<128x128xbf16>
    %cst_19 = arith.constant dense<0.000000e+00> : vector<128x8xf32>
    %49 = tpu.matmul %48, %32, %cst_19 {dimension_numbers = #tpu.dot_dimension_numbers<[1], [0], [0], [1], [0, 0, 1, 1], [], []>} : vector<128x128xbf16>, vector<128x8xbf16>, vector<128x8xf32> -> vector<128x8xf32>
    %50 = arith.truncf %49 : vector<128x8xf32> to vector<128x8xbf16>
    %51 = vector.extract_strided_slice %25 {offsets = [0, 0], sizes = [8, 32], strides = [1, 1]} : vector<32x32xbf16> to vector<8x32xbf16>
    %cst_20 = arith.constant dense<0.000000e+00> : vector<128x32xf32>
    %52 = tpu.matmul %50, %51, %cst_20 {dimension_numbers = #tpu.dot_dimension_numbers<[1], [0], [0], [1], [0, 0, 1, 1], [], []>} : vector<128x8xbf16>, vector<8x32xbf16>, vector<128x32xf32> -> vector<128x32xf32>
    %53 = arith.addf %26, %52 : vector<128x32xf32>
    %54 = vector.extract_strided_slice %24 {offsets = [0, 8], sizes = [128, 8], strides = [1, 1]} : vector<128x96xf32> to vector<128x8xf32>
    %55 = arith.truncf %54 : vector<128x8xf32> to vector<128x8xbf16>
    %56 = vector.extract_strided_slice %24 {offsets = [0, 40], sizes = [128, 8], strides = [1, 1]} : vector<128x96xf32> to vector<128x8xf32>
    %57 = arith.truncf %56 : vector<128x8xf32> to vector<128x8xbf16>
    %58 = vector.extract_strided_slice %24 {offsets = [0, 72], sizes = [128, 8], strides = [1, 1]} : vector<128x96xf32> to vector<128x8xf32>
    %59 = arith.truncf %58 : vector<128x8xf32> to vector<128x8xbf16>
    %cst_21 = arith.constant dense<0.000000e+00> : vector<128x128xf32>
    %60 = tpu.matmul %55, %57, %cst_21 {dimension_numbers = #tpu.dot_dimension_numbers<[1], [1], [0], [0], [0, 0, 1, 0], [], []>} : vector<128x8xbf16>, vector<128x8xbf16>, vector<128x128xf32> -> vector<128x128xf32>
    %c1 = arith.constant 1 : index
    %c0_22 = arith.constant 0 : index
    %c0_23 = arith.constant 0 : index
    %61 = vector.load %arg6[%c1, %c0_22, %c0_23] : memref<4x128x128xbf16, #tpu.memory_space<vmem>>, vector<1x128x128xbf16>
    %62 = vector.shape_cast %61 : vector<1x128x128xbf16> to vector<128x128xbf16>
    %63 = arith.extf %62 : vector<128x128xbf16> to vector<128x128xf32>
    %64 = arith.addf %60, %63 : vector<128x128xf32>
    %cst_24 = arith.constant dense<0xFF800000> : vector<128xf32>
    %65 = vector.multi_reduction <maximumf>, %64, %cst_24 [1] : vector<128x128xf32> to vector<128xf32>
    %66 = vector.shape_cast %65 : vector<128xf32> to vector<128x1xf32>
    %67 = vector.broadcast %66 : vector<128x1xf32> to vector<128x128xf32>
    %68 = arith.subf %64, %67 : vector<128x128xf32>
    %69 = math.exp %68 : vector<128x128xf32>
    %cst_25 = arith.constant dense<0.000000e+00> : vector<128xf32>
    %70 = vector.multi_reduction <add>, %69, %cst_25 [1] : vector<128x128xf32> to vector<128xf32>
    %71 = vector.shape_cast %70 : vector<128xf32> to vector<128x1xf32>
    %72 = tpu.reciprocal %71 {approx = true} : vector<128x1xf32> -> vector<128x1xf32>
    %73 = vector.broadcast %72 : vector<128x1xf32> to vector<128x128xf32>
    %74 = arith.mulf %69, %73 : vector<128x128xf32>
    %75 = arith.truncf %74 : vector<128x128xf32> to vector<128x128xbf16>
    %cst_26 = arith.constant dense<0.000000e+00> : vector<128x8xf32>
    %76 = tpu.matmul %75, %59, %cst_26 {dimension_numbers = #tpu.dot_dimension_numbers<[1], [0], [0], [1], [0, 0, 1, 1], [], []>} : vector<128x128xbf16>, vector<128x8xbf16>, vector<128x8xf32> -> vector<128x8xf32>
    %77 = arith.truncf %76 : vector<128x8xf32> to vector<128x8xbf16>
    %78 = vector.extract_strided_slice %25 {offsets = [8, 0], sizes = [8, 32], strides = [1, 1]} : vector<32x32xbf16> to vector<8x32xbf16>
    %cst_27 = arith.constant dense<0.000000e+00> : vector<128x32xf32>
    %79 = tpu.matmul %77, %78, %cst_27 {dimension_numbers = #tpu.dot_dimension_numbers<[1], [0], [0], [1], [0, 0, 1, 1], [], []>} : vector<128x8xbf16>, vector<8x32xbf16>, vector<128x32xf32> -> vector<128x32xf32>
    %80 = arith.addf %53, %79 : vector<128x32xf32>
    %81 = vector.extract_strided_slice %24 {offsets = [0, 16], sizes = [128, 8], strides = [1, 1]} : vector<128x96xf32> to vector<128x8xf32>
    %82 = arith.truncf %81 : vector<128x8xf32> to vector<128x8xbf16>
    %83 = vector.extract_strided_slice %24 {offsets = [0, 48], sizes = [128, 8], strides = [1, 1]} : vector<128x96xf32> to vector<128x8xf32>
    %84 = arith.truncf %83 : vector<128x8xf32> to vector<128x8xbf16>
    %85 = vector.extract_strided_slice %24 {offsets = [0, 80], sizes = [128, 8], strides = [1, 1]} : vector<128x96xf32> to vector<128x8xf32>
    %86 = arith.truncf %85 : vector<128x8xf32> to vector<128x8xbf16>
    %cst_28 = arith.constant dense<0.000000e+00> : vector<128x128xf32>
    %87 = tpu.matmul %82, %84, %cst_28 {dimension_numbers = #tpu.dot_dimension_numbers<[1], [1], [0], [0], [0, 0, 1, 0], [], []>} : vector<128x8xbf16>, vector<128x8xbf16>, vector<128x128xf32> -> vector<128x128xf32>
    %c2 = arith.constant 2 : index
    %c0_29 = arith.constant 0 : index
    %c0_30 = arith.constant 0 : index
    %88 = vector.load %arg6[%c2, %c0_29, %c0_30] : memref<4x128x128xbf16, #tpu.memory_space<vmem>>, vector<1x128x128xbf16>
    %89 = vector.shape_cast %88 : vector<1x128x128xbf16> to vector<128x128xbf16>
    %90 = arith.extf %89 : vector<128x128xbf16> to vector<128x128xf32>
    %91 = arith.addf %87, %90 : vector<128x128xf32>
    %cst_31 = arith.constant dense<0xFF800000> : vector<128xf32>
    %92 = vector.multi_reduction <maximumf>, %91, %cst_31 [1] : vector<128x128xf32> to vector<128xf32>
    %93 = vector.shape_cast %92 : vector<128xf32> to vector<128x1xf32>
    %94 = vector.broadcast %93 : vector<128x1xf32> to vector<128x128xf32>
    %95 = arith.subf %91, %94 : vector<128x128xf32>
    %96 = math.exp %95 : vector<128x128xf32>
    %cst_32 = arith.constant dense<0.000000e+00> : vector<128xf32>
    %97 = vector.multi_reduction <add>, %96, %cst_32 [1] : vector<128x128xf32> to vector<128xf32>
    %98 = vector.shape_cast %97 : vector<128xf32> to vector<128x1xf32>
    %99 = tpu.reciprocal %98 {approx = true} : vector<128x1xf32> -> vector<128x1xf32>
    %100 = vector.broadcast %99 : vector<128x1xf32> to vector<128x128xf32>
    %101 = arith.mulf %96, %100 : vector<128x128xf32>
    %102 = arith.truncf %101 : vector<128x128xf32> to vector<128x128xbf16>
    %cst_33 = arith.constant dense<0.000000e+00> : vector<128x8xf32>
    %103 = tpu.matmul %102, %86, %cst_33 {dimension_numbers = #tpu.dot_dimension_numbers<[1], [0], [0], [1], [0, 0, 1, 1], [], []>} : vector<128x128xbf16>, vector<128x8xbf16>, vector<128x8xf32> -> vector<128x8xf32>
    %104 = arith.truncf %103 : vector<128x8xf32> to vector<128x8xbf16>
    %105 = vector.extract_strided_slice %25 {offsets = [16, 0], sizes = [8, 32], strides = [1, 1]} : vector<32x32xbf16> to vector<8x32xbf16>
    %cst_34 = arith.constant dense<0.000000e+00> : vector<128x32xf32>
    %106 = tpu.matmul %104, %105, %cst_34 {dimension_numbers = #tpu.dot_dimension_numbers<[1], [0], [0], [1], [0, 0, 1, 1], [], []>} : vector<128x8xbf16>, vector<8x32xbf16>, vector<128x32xf32> -> vector<128x32xf32>
    %107 = arith.addf %80, %106 : vector<128x32xf32>
    %108 = vector.extract_strided_slice %24 {offsets = [0, 24], sizes = [128, 8], strides = [1, 1]} : vector<128x96xf32> to vector<128x8xf32>
    %109 = arith.truncf %108 : vector<128x8xf32> to vector<128x8xbf16>
    %110 = vector.extract_strided_slice %24 {offsets = [0, 56], sizes = [128, 8], strides = [1, 1]} : vector<128x96xf32> to vector<128x8xf32>
    %111 = arith.truncf %110 : vector<128x8xf32> to vector<128x8xbf16>
    %112 = vector.extract_strided_slice %24 {offsets = [0, 88], sizes = [128, 8], strides = [1, 1]} : vector<128x96xf32> to vector<128x8xf32>
    %113 = arith.truncf %112 : vector<128x8xf32> to vector<128x8xbf16>
    %cst_35 = arith.constant dense<0.000000e+00> : vector<128x128xf32>
    %114 = tpu.matmul %109, %111, %cst_35 {dimension_numbers = #tpu.dot_dimension_numbers<[1], [1], [0], [0], [0, 0, 1, 0], [], []>} : vector<128x8xbf16>, vector<128x8xbf16>, vector<128x128xf32> -> vector<128x128xf32>
    %c3 = arith.constant 3 : index
    %c0_36 = arith.constant 0 : index
    %c0_37 = arith.constant 0 : index
    %115 = vector.load %arg6[%c3, %c0_36, %c0_37] : memref<4x128x128xbf16, #tpu.memory_space<vmem>>, vector<1x128x128xbf16>
    %116 = vector.shape_cast %115 : vector<1x128x128xbf16> to vector<128x128xbf16>
    %117 = arith.extf %116 : vector<128x128xbf16> to vector<128x128xf32>
    %118 = arith.addf %114, %117 : vector<128x128xf32>
    %cst_38 = arith.constant dense<0xFF800000> : vector<128xf32>
    %119 = vector.multi_reduction <maximumf>, %118, %cst_38 [1] : vector<128x128xf32> to vector<128xf32>
    %120 = vector.shape_cast %119 : vector<128xf32> to vector<128x1xf32>
    %121 = vector.broadcast %120 : vector<128x1xf32> to vector<128x128xf32>
    %122 = arith.subf %118, %121 : vector<128x128xf32>
    %123 = math.exp %122 : vector<128x128xf32>
    %cst_39 = arith.constant dense<0.000000e+00> : vector<128xf32>
    %124 = vector.multi_reduction <add>, %123, %cst_39 [1] : vector<128x128xf32> to vector<128xf32>
    %125 = vector.shape_cast %124 : vector<128xf32> to vector<128x1xf32>
    %126 = tpu.reciprocal %125 {approx = true} : vector<128x1xf32> -> vector<128x1xf32>
    %127 = vector.broadcast %126 : vector<128x1xf32> to vector<128x128xf32>
    %128 = arith.mulf %123, %127 : vector<128x128xf32>
    %129 = arith.truncf %128 : vector<128x128xf32> to vector<128x128xbf16>
    %cst_40 = arith.constant dense<0.000000e+00> : vector<128x8xf32>
    %130 = tpu.matmul %129, %113, %cst_40 {dimension_numbers = #tpu.dot_dimension_numbers<[1], [0], [0], [1], [0, 0, 1, 1], [], []>} : vector<128x128xbf16>, vector<128x8xbf16>, vector<128x8xf32> -> vector<128x8xf32>
    %131 = arith.truncf %130 : vector<128x8xf32> to vector<128x8xbf16>
    %132 = vector.extract_strided_slice %25 {offsets = [24, 0], sizes = [8, 32], strides = [1, 1]} : vector<32x32xbf16> to vector<8x32xbf16>
    %cst_41 = arith.constant dense<0.000000e+00> : vector<128x32xf32>
    %133 = tpu.matmul %131, %132, %cst_41 {dimension_numbers = #tpu.dot_dimension_numbers<[1], [0], [0], [1], [0, 0, 1, 1], [], []>} : vector<128x8xbf16>, vector<8x32xbf16>, vector<128x32xf32> -> vector<128x32xf32>
    %134 = arith.addf %107, %133 : vector<128x32xf32>
    %135 = arith.addf %0, %134 : vector<128x32xf32>
    %c0_42 = arith.constant 0 : index
    %c0_43 = arith.constant 0 : index
    %136 = vector.load %arg5[%c0_42, %c0_43] : memref<1x32xf32, #tpu.memory_space<vmem>>, vector<1x32xf32>
    %137 = vector.broadcast %136 : vector<1x32xf32> to vector<128x32xf32>
    %138 = arith.addf %135, %137 : vector<128x32xf32>
    %cst_44 = arith.constant dense<0.000000e+00> : vector<128xf32>
    %139 = vector.multi_reduction <add>, %138, %cst_44 [1] : vector<128x32xf32> to vector<128xf32>
    %140 = vector.shape_cast %139 : vector<128xf32> to vector<128x1xf32>
    %cst_45 = arith.constant 3.200000e+01 : f32
    %141 = vector.broadcast %cst_45 : f32 to vector<128x1xf32>
    %142 = arith.divf %140, %141 : vector<128x1xf32>
    %143 = vector.broadcast %142 : vector<128x1xf32> to vector<128x32xf32>
    %144 = arith.subf %138, %143 : vector<128x32xf32>
    %145 = arith.mulf %144, %144 : vector<128x32xf32>
    %cst_46 = arith.constant dense<0.000000e+00> : vector<128xf32>
    %146 = vector.multi_reduction <add>, %145, %cst_46 [1] : vector<128x32xf32> to vector<128xf32>
    %147 = vector.shape_cast %146 : vector<128xf32> to vector<128x1xf32>
    %cst_47 = arith.constant 3.200000e+01 : f32
    %148 = vector.broadcast %cst_47 : f32 to vector<128x1xf32>
    %149 = arith.divf %147, %148 : vector<128x1xf32>
    %150 = vector.broadcast %142 : vector<128x1xf32> to vector<128x32xf32>
    %151 = arith.subf %138, %150 : vector<128x32xf32>
    %cst_48 = arith.constant 9.99999974E-6 : f32
    %152 = vector.broadcast %cst_48 : f32 to vector<128x1xf32>
    %153 = arith.addf %149, %152 : vector<128x1xf32>
    %154 = math.rsqrt %153 : vector<128x1xf32>
    %155 = vector.broadcast %154 : vector<128x1xf32> to vector<128x32xf32>
    %156 = arith.mulf %151, %155 : vector<128x32xf32>
    %157 = arith.truncf %156 : vector<128x32xf32> to vector<128x32xbf16>
    %c0_49 = arith.constant 0 : index
    %c0_50 = arith.constant 0 : index
    %158 = vector.load %arg7[%c0_49, %c0_50] : memref<32x128xbf16, #tpu.memory_space<vmem>>, vector<32x128xbf16>
    %cst_51 = arith.constant dense<0.000000e+00> : vector<128x128xf32>
    %159 = tpu.matmul %157, %158, %cst_51 {dimension_numbers = #tpu.dot_dimension_numbers<[1], [0], [0], [1], [0, 0, 1, 1], [], []>} : vector<128x32xbf16>, vector<32x128xbf16>, vector<128x128xf32> -> vector<128x128xf32>
    %c0_52 = arith.constant 0 : index
    %c0_53 = arith.constant 0 : index
    %160 = vector.load %arg8[%c0_52, %c0_53] : memref<1x128xf32, #tpu.memory_space<vmem>>, vector<1x128xf32>
    %161 = vector.broadcast %160 : vector<1x128xf32> to vector<128x128xf32>
    %162 = arith.addf %159, %161 : vector<128x128xf32>
    %cst_54 = arith.constant 5.000000e-01 : f32
    %163 = vector.broadcast %cst_54 : f32 to vector<128x128xf32>
    %164 = arith.mulf %163, %162 : vector<128x128xf32>
    %cst_55 = arith.constant 4.471500e-02 : f32
    %165 = vector.broadcast %cst_55 : f32 to vector<128x128xf32>
    %166 = arith.mulf %165, %162 : vector<128x128xf32>
    %167 = arith.mulf %166, %162 : vector<128x128xf32>
    %168 = arith.mulf %167, %162 : vector<128x128xf32>
    %169 = arith.addf %162, %168 : vector<128x128xf32>
    %cst_56 = arith.constant 0.797884583 : f32
    %170 = vector.broadcast %cst_56 : f32 to vector<128x128xf32>
    %171 = arith.mulf %170, %169 : vector<128x128xf32>
    %172 = math.tanh %171 : vector<128x128xf32>
    %cst_57 = arith.constant 1.000000e+00 : f32
    %173 = vector.broadcast %cst_57 : f32 to vector<128x128xf32>
    %174 = arith.addf %173, %172 : vector<128x128xf32>
    %175 = arith.mulf %164, %174 : vector<128x128xf32>
    %176 = arith.truncf %175 : vector<128x128xf32> to vector<128x128xbf16>
    %c0_58 = arith.constant 0 : index
    %c0_59 = arith.constant 0 : index
    %177 = vector.load %arg9[%c0_58, %c0_59] : memref<128x32xbf16, #tpu.memory_space<vmem>>, vector<128x32xbf16>
    %cst_60 = arith.constant dense<0.000000e+00> : vector<128x32xf32>
    %178 = tpu.matmul %176, %177, %cst_60 {dimension_numbers = #tpu.dot_dimension_numbers<[1], [0], [0], [1], [0, 0, 1, 1], [], []>} : vector<128x128xbf16>, vector<128x32xbf16>, vector<128x32xf32> -> vector<128x32xf32>
    %c0_61 = arith.constant 0 : index
    %c0_62 = arith.constant 0 : index
    %179 = vector.load %arg10[%c0_61, %c0_62] : memref<1x32xf32, #tpu.memory_space<vmem>>, vector<1x32xf32>
    %180 = vector.broadcast %179 : vector<1x32xf32> to vector<128x32xf32>
    %181 = arith.addf %178, %180 : vector<128x32xf32>
    %182 = arith.addf %138, %181 : vector<128x32xf32>
    %c0_63 = arith.constant 0 : index
    %c0_64 = arith.constant 0 : index
    %183 = vector.load %arg11[%c0_63, %c0_64] : memref<128x32xf32, #tpu.memory_space<vmem>>, vector<128x32xf32>
    tpu.vector_store %arg11[%c0_63, %c0_64], %182 {strides = array<i32>} : memref<128x32xf32, #tpu.memory_space<vmem>>, vector<128x32xf32>,
    return
  }
  func.func @transform_0(%arg0: i32) -> (i32, i32) {
    %c0_i32 = arith.constant 0 : i32
    %c0_i32_0 = arith.constant 0 : i32
    return %arg0, %c0_i32 : i32, i32
  }
  func.func @transform_1(%arg0: i32) -> (i32, i32) {
    %c0_i32 = arith.constant 0 : i32
    %c0_i32_0 = arith.constant 0 : i32
    %c0_i32_1 = arith.constant 0 : i32
    return %c0_i32, %c0_i32_0 : i32, i32
  }
  func.func @transform_2(%arg0: i32) -> (i32, i32) {
    %c0_i32 = arith.constant 0 : i32
    %c0_i32_0 = arith.constant 0 : i32
    %c0_i32_1 = arith.constant 0 : i32
    return %c0_i32, %c0_i32_0 : i32, i32
  }
  func.func @transform_3(%arg0: i32) -> (i32, i32) {
    %c0_i32 = arith.constant 0 : i32
    %c0_i32_0 = arith.constant 0 : i32
    %c0_i32_1 = arith.constant 0 : i32
    return %c0_i32, %c0_i32_0 : i32, i32
  }
  func.func @transform_4(%arg0: i32) -> (i32, i32) {
    %c0_i32 = arith.constant 0 : i32
    %c0_i32_0 = arith.constant 0 : i32
    %c0_i32_1 = arith.constant 0 : i32
    return %c0_i32, %c0_i32_0 : i32, i32
  }
  func.func @transform_5(%arg0: i32) -> (i32, i32, i32) {
    %c0_i32 = arith.constant 0 : i32
    %c0_i32_0 = arith.constant 0 : i32
    %c0_i32_1 = arith.constant 0 : i32
    %c0_i32_2 = arith.constant 0 : i32
    return %c0_i32, %c0_i32_0, %c0_i32_1 : i32, i32, i32
  }
  func.func @transform_6(%arg0: i32) -> (i32, i32) {
    %c0_i32 = arith.constant 0 : i32
    %c0_i32_0 = arith.constant 0 : i32
    %c0_i32_1 = arith.constant 0 : i32
    return %c0_i32, %c0_i32_0 : i32, i32
  }
  func.func @transform_7(%arg0: i32) -> (i32, i32) {
    %c0_i32 = arith.constant 0 : i32
    %c0_i32_0 = arith.constant 0 : i32
    %c0_i32_1 = arith.constant 0 : i32
    return %c0_i32, %c0_i32_0 : i32, i32
  }
  func.func @transform_8(%arg0: i32) -> (i32, i32) {
    %c0_i32 = arith.constant 0 : i32
    %c0_i32_0 = arith.constant 0 : i32
    %c0_i32_1 = arith.constant 0 : i32
    return %c0_i32, %c0_i32_0 : i32, i32
  }
  func.func @transform_9(%arg0: i32) -> (i32, i32) {
    %c0_i32 = arith.constant 0 : i32
    %c0_i32_0 = arith.constant 0 : i32
    %c0_i32_1 = arith.constant 0 : i32
    return %c0_i32, %c0_i32_0 : i32, i32
  }
  func.func @transform_10(%arg0: i32) -> (i32, i32) {
    %c0_i32 = arith.constant 0 : i32
    %c0_i32_0 = arith.constant 0 : i32
    return %arg0, %c0_i32 : i32, i32
  }
}

</mosaic_0001>

<llo_original>
// kernel: swin_block_forward.1
$region0: #{swin_block_forward.1}
  #allocation0 [shape = 'u32[]', space=smem, size = 0x4, offset = 0x4, fixed_abs, tag = 'smem constant byte address 0x4 - core index']
  #allocation1 [shape = 'u32[144,128]{1,0:T(1,128)}', space=vmem, size = 0x12000, scoped, tag = 'internal scratch']
  %s0 = inlined_call_operand.vmem [shape: f32[128,32], index: 0, kind: input, shape index: {}]
  %s1 = inlined_call_operand.vmem [shape: bf16[32,96], index: 1, kind: input, shape index: {}]
  %s2 = inlined_call_operand.vmem [shape: f32[1,96], index: 2, kind: input, shape index: {}]
  %s3 = inlined_call_operand.vmem [shape: bf16[32,32], index: 3, kind: input, shape index: {}]
  %s4 = inlined_call_operand.vmem [shape: f32[1,32], index: 4, kind: input, shape index: {}]
  %s5 = inlined_call_operand.vmem [shape: bf16[4,128,128], index: 5, kind: input, shape index: {}]
  %s6 = inlined_call_operand.vmem [shape: bf16[32,128], index: 6, kind: input, shape index: {}]
  %s7 = inlined_call_operand.vmem [shape: f32[1,128], index: 7, kind: input, shape index: {}]
  %s8 = inlined_call_operand.vmem [shape: bf16[128,32], index: 8, kind: input, shape index: {}]
  %s9 = inlined_call_operand.vmem [shape: f32[1,32], index: 9, kind: input, shape index: {}]
  %s10 = inlined_call_operand.vmem [shape: f32[128,32], index: 10, kind: output, shape index: {}]
  %s11 = sld [smem:[#allocation0]]
  $region50: #{swin_block_forward.1} parent=0
    _
  %s13 = ssub.s32 1, %s11
  %s14 = scalar_select 0, %s13, %s11
  // Predicated region
  $region2: #{swin_block_forward.1} parent=0 // pred_check
    _
  $region3: #{swin_block_forward.1} parent=0 // pred_check_branch
    %16 = sbr.rel (0) target = $region5
  $region4: #{swin_block_forward.1} parent=0 // pred_region
    _
  $region5: #{swin_block_forward.1} parent=0 // pred_fallthru
    _
  // Predicated region
  $region6: #{swin_block_forward.1} parent=0 // pred_check
    _
  $region7: #{swin_block_forward.1} parent=0 // pred_check_branch
    %18 = sbr.rel (0) target = $region9
  $region8: #{swin_block_forward.1} parent=0 // pred_region
    _
  $region9: #{swin_block_forward.1} parent=0 // pred_fallthru
    _
  // Predicated region
  $region10: #{swin_block_forward.1} parent=0 // pred_check
    _
  $region11: #{swin_block_forward.1} parent=0 // pred_check_branch
    %20 = sbr.rel (0) target = $region13
  $region12: #{swin_block_forward.1} parent=0 // pred_region
    _
  $region13: #{swin_block_forward.1} parent=0 // pred_fallthru
    _
  // Predicated region
  $region14: #{swin_block_forward.1} parent=0 // pred_check
    _
  $region15: #{swin_block_forward.1} parent=0 // pred_check_branch
    %22 = sbr.rel (0) target = $region17
  $region16: #{swin_block_forward.1} parent=0 // pred_region
    _
  $region17: #{swin_block_forward.1} parent=0 // pred_fallthru
    _
  // Predicated region
  $region18: #{swin_block_forward.1} parent=0 // pred_check
    _
  $region19: #{swin_block_forward.1} parent=0 // pred_check_branch
    %24 = sbr.rel (0) target = $region21
  $region20: #{swin_block_forward.1} parent=0 // pred_region
    _
  $region21: #{swin_block_forward.1} parent=0 // pred_fallthru
    _
  // Predicated region
  $region22: #{swin_block_forward.1} parent=0 // pred_check
    _
  $region23: #{swin_block_forward.1} parent=0 // pred_check_branch
    %26 = sbr.rel (0) target = $region25
  $region24: #{swin_block_forward.1} parent=0 // pred_region
    _
  $region25: #{swin_block_forward.1} parent=0 // pred_fallthru
    _
  // Predicated region
  $region26: #{swin_block_forward.1} parent=0 // pred_check
    _
  $region27: #{swin_block_forward.1} parent=0 // pred_check_branch
    %28 = sbr.rel (0) target = $region29
  $region28: #{swin_block_forward.1} parent=0 // pred_region
    _
  $region29: #{swin_block_forward.1} parent=0 // pred_fallthru
    _
  // Predicated region
  $region30: #{swin_block_forward.1} parent=0 // pred_check
    _
  $region31: #{swin_block_forward.1} parent=0 // pred_check_branch
    %30 = sbr.rel (0) target = $region33
  $region32: #{swin_block_forward.1} parent=0 // pred_region
    _
  $region33: #{swin_block_forward.1} parent=0 // pred_fallthru
    _
  // Predicated region
  $region34: #{swin_block_forward.1} parent=0 // pred_check
    _
  $region35: #{swin_block_forward.1} parent=0 // pred_check_branch
    %32 = sbr.rel (0) target = $region37
  $region36: #{swin_block_forward.1} parent=0 // pred_region
    _
  $region37: #{swin_block_forward.1} parent=0 // pred_fallthru
    _
  // Predicated region
  $region38: #{swin_block_forward.1} parent=0 // pred_check
    _
  $region39: #{swin_block_forward.1} parent=0 // pred_check_branch
    %34 = sbr.rel (0) target = $region41
  $region40: #{swin_block_forward.1} parent=0 // pred_region
    _
  $region41: #{swin_block_forward.1} parent=0 // pred_fallthru
    _
  %v36 = vld [vmem:[%s0] sm:$0xff]
  %v37 = vld [vmem:[%s0 + $0x8] sm:$0xff]
  %v38 = vld [vmem:[%s0 + $0x10] sm:$0xff]
  %v39 = vld [vmem:[%s0 + $0x18] sm:$0xff]
  %v40 = vld [vmem:[%s0 + $0x20] sm:$0xff]
  %v41 = vld [vmem:[%s0 + $0x28] sm:$0xff]
  %v42 = vld [vmem:[%s0 + $0x30] sm:$0xff]
  %v43 = vld [vmem:[%s0 + $0x38] sm:$0xff]
  %v44 = vld [vmem:[%s0 + $0x40] sm:$0xff]
  %v45 = vld [vmem:[%s0 + $0x48] sm:$0xff]
  %v46 = vld [vmem:[%s0 + $0x50] sm:$0xff]
  %v47 = vld [vmem:[%s0 + $0x58] sm:$0xff]
  %v48 = vld [vmem:[%s0 + $0x60] sm:$0xff]
  %v49 = vld [vmem:[%s0 + $0x68] sm:$0xff]
  %v50 = vld [vmem:[%s0 + $0x70] sm:$0xff]
  %v51 = vld [vmem:[%s0 + $0x78] sm:$0xff]
  %vm52 = vcmask 261120
  %v53 = vsel %vm52, %v36, 0.0
  %54 = vadd.xlane.f32.xlu0 %v53
  %v55 = vpop.xlane.xlu0 %54
  %v56 = vsel %vm52, %v37, 0.0
  %57 = vadd.xlane.f32.xlu0 %v56
  %v58 = vpop.xlane.xlu0 %57
  %v59 = vsel %vm52, %v38, 0.0
  %60 = vadd.xlane.f32.xlu0 %v59
  %v61 = vpop.xlane.xlu0 %60
  %v62 = vsel %vm52, %v39, 0.0
  %63 = vadd.xlane.f32.xlu0 %v62
  %v64 = vpop.xlane.xlu0 %63
  %v65 = vsel %vm52, %v40, 0.0
  %66 = vadd.xlane.f32.xlu0 %v65
  %v67 = vpop.xlane.xlu0 %66
  %v68 = vsel %vm52, %v41, 0.0
  %69 = vadd.xlane.f32.xlu0 %v68
  %v70 = vpop.xlane.xlu0 %69
  %v71 = vsel %vm52, %v42, 0.0
  %72 = vadd.xlane.f32.xlu0 %v71
  %v73 = vpop.xlane.xlu0 %72
  %v74 = vsel %vm52, %v43, 0.0
  %75 = vadd.xlane.f32.xlu0 %v74
  %v76 = vpop.xlane.xlu0 %75
  %v77 = vsel %vm52, %v44, 0.0
  %78 = vadd.xlane.f32.xlu0 %v77
  %v79 = vpop.xlane.xlu0 %78
  %v80 = vsel %vm52, %v45, 0.0
  %81 = vadd.xlane.f32.xlu0 %v80
  %v82 = vpop.xlane.xlu0 %81
  %v83 = vsel %vm52, %v46, 0.0
  %84 = vadd.xlane.f32.xlu0 %v83
  %v85 = vpop.xlane.xlu0 %84
  %v86 = vsel %vm52, %v47, 0.0
  %87 = vadd.xlane.f32.xlu0 %v86
  %v88 = vpop.xlane.xlu0 %87
  %v89 = vsel %vm52, %v48, 0.0
  %90 = vadd.xlane.f32.xlu0 %v89
  %v91 = vpop.xlane.xlu0 %90
  %v92 = vsel %vm52, %v49, 0.0
  %93 = vadd.xlane.f32.xlu0 %v92
  %v94 = vpop.xlane.xlu0 %93
  %v95 = vsel %vm52, %v50, 0.0
  %96 = vadd.xlane.f32.xlu0 %v95
  %v97 = vpop.xlane.xlu0 %96
  %v98 = vsel %vm52, %v51, 0.0
  %99 = vadd.xlane.f32.xlu0 %v98
  %v100 = vpop.xlane.xlu0 %99
  %v101 = vrcp.pop 32.0
  %v102 = vmul.f32 %v55, %v101
  %v103 = vmul.f32 %v58, %v101
  %v104 = vmul.f32 %v61, %v101
  %v105 = vmul.f32 %v64, %v101
  %v106 = vmul.f32 %v67, %v101
  %v107 = vmul.f32 %v70, %v101
  %v108 = vmul.f32 %v73, %v101
  %v109 = vmul.f32 %v76, %v101
  %v110 = vmul.f32 %v79, %v101
  %v111 = vmul.f32 %v82, %v101
  %v112 = vmul.f32 %v85, %v101
  %v113 = vmul.f32 %v88, %v101
  %v114 = vmul.f32 %v91, %v101
  %v115 = vmul.f32 %v94, %v101
  %v116 = vmul.f32 %v97, %v101
  %v117 = vmul.f32 %v100, %v101
  %v118 = vsub.f32 %v36, %v102
  %v119 = vsub.f32 %v37, %v103
  %v120 = vsub.f32 %v38, %v104
  %v121 = vsub.f32 %v39, %v105
  %v122 = vsub.f32 %v40, %v106
  %v123 = vsub.f32 %v41, %v107
  %v124 = vsub.f32 %v42, %v108
  %v125 = vsub.f32 %v43, %v109
  %v126 = vsub.f32 %v44, %v110
  %v127 = vsub.f32 %v45, %v111
  %v128 = vsub.f32 %v46, %v112
  %v129 = vsub.f32 %v47, %v113
  %v130 = vsub.f32 %v48, %v114
  %v131 = vsub.f32 %v49, %v115
  %v132 = vsub.f32 %v50, %v116
  %v133 = vsub.f32 %v51, %v117
  %v134 = vmul.f32 %v118, %v118
  %v135 = vmul.f32 %v119, %v119
  %v136 = vmul.f32 %v120, %v120
  %v137 = vmul.f32 %v121, %v121
  %v138 = vmul.f32 %v122, %v122
  %v139 = vmul.f32 %v123, %v123
  %v140 = vmul.f32 %v124, %v124
  %v141 = vmul.f32 %v125, %v125
  %v142 = vmul.f32 %v126, %v126
  %v143 = vmul.f32 %v127, %v127
  %v144 = vmul.f32 %v128, %v128
  %v145 = vmul.f32 %v129, %v129
  %v146 = vmul.f32 %v130, %v130
  %v147 = vmul.f32 %v131, %v131
  %v148 = vmul.f32 %v132, %v132
  %v149 = vmul.f32 %v133, %v133
  %v150 = vsel %vm52, %v134, 0.0
  %151 = vadd.xlane.f32.xlu0 %v150
  %v152 = vpop.xlane.xlu0 %151
  %v153 = vsel %vm52, %v135, 0.0
  %154 = vadd.xlane.f32.xlu0 %v153
  %v155 = vpop.xlane.xlu0 %154
  %v156 = vsel %vm52, %v136, 0.0
  %157 = vadd.xlane.f32.xlu0 %v156
  %v158 = vpop.xlane.xlu0 %157
  %v159 = vsel %vm52, %v137, 0.0
  %160 = vadd.xlane.f32.xlu0 %v159
  %v161 = vpop.xlane.xlu0 %160
  %v162 = vsel %vm52, %v138, 0.0
  %163 = vadd.xlane.f32.xlu0 %v162
  %v164 = vpop.xlane.xlu0 %163
  %v165 = vsel %vm52, %v139, 0.0
  %166 = vadd.xlane.f32.xlu0 %v165
  %v167 = vpop.xlane.xlu0 %166
  %v168 = vsel %vm52, %v140, 0.0
  %169 = vadd.xlane.f32.xlu0 %v168
  %v170 = vpop.xlane.xlu0 %169
  %v171 = vsel %vm52, %v141, 0.0
  %172 = vadd.xlane.f32.xlu0 %v171
  %v173 = vpop.xlane.xlu0 %172
  %v174 = vsel %vm52, %v142, 0.0
  %175 = vadd.xlane.f32.xlu0 %v174
  %v176 = vpop.xlane.xlu0 %175
  %v177 = vsel %vm52, %v143, 0.0
  %178 = vadd.xlane.f32.xlu0 %v177
  %v179 = vpop.xlane.xlu0 %178
  %v180 = vsel %vm52, %v144, 0.0
  %181 = vadd.xlane.f32.xlu0 %v180
  %v182 = vpop.xlane.xlu0 %181
  %v183 = vsel %vm52, %v145, 0.0
  %184 = vadd.xlane.f32.xlu0 %v183
  %v185 = vpop.xlane.xlu0 %184
  %v186 = vsel %vm52, %v146, 0.0
  %187 = vadd.xlane.f32.xlu0 %v186
  %v188 = vpop.xlane.xlu0 %187
  %v189 = vsel %vm52, %v147, 0.0
  %190 = vadd.xlane.f32.xlu0 %v189
  %v191 = vpop.xlane.xlu0 %190
  %v192 = vsel %vm52, %v148, 0.0
  %193 = vadd.xlane.f32.xlu0 %v192
  %v194 = vpop.xlane.xlu0 %193
  %v195 = vsel %vm52, %v149, 0.0
  %196 = vadd.xlane.f32.xlu0 %v195
  %v197 = vpop.xlane.xlu0 %196
  %v198 = vmul.f32 %v152, %v101
  %v199 = vmul.f32 %v155, %v101
  %v200 = vmul.f32 %v158, %v101
  %v201 = vmul.f32 %v161, %v101
  %v202 = vmul.f32 %v164, %v101
  %v203 = vmul.f32 %v167, %v101
  %v204 = vmul.f32 %v170, %v101
  %v205 = vmul.f32 %v173, %v101
  %v206 = vmul.f32 %v176, %v101
  %v207 = vmul.f32 %v179, %v101
  %v208 = vmul.f32 %v182, %v101
  %v209 = vmul.f32 %v185, %v101
  %v210 = vmul.f32 %v188, %v101
  %v211 = vmul.f32 %v191, %v101
  %v212 = vmul.f32 %v194, %v101
  %v213 = vmul.f32 %v197, %v101
  %v214 = vadd.f32 %v198, 1e-05
  %v215 = vadd.f32 %v199, 1e-05
  %v216 = vadd.f32 %v200, 1e-05
  %v217 = vadd.f32 %v201, 1e-05
  %v218 = vadd.f32 %v202, 1e-05
  %v219 = vadd.f32 %v203, 1e-05
  %v220 = vadd.f32 %v204, 1e-05
  %v221 = vadd.f32 %v205, 1e-05
  %v222 = vadd.f32 %v206, 1e-05
  %v223 = vadd.f32 %v207, 1e-05
  %v224 = vadd.f32 %v208, 1e-05
  %v225 = vadd.f32 %v209, 1e-05
  %v226 = vadd.f32 %v210, 1e-05
  %v227 = vadd.f32 %v211, 1e-05
  %v228 = vadd.f32 %v212, 1e-05
  %v229 = vadd.f32 %v213, 1e-05
  %v230 = vrsqrt.pop %v214
  %v231 = vrsqrt.pop %v215
  %v232 = vrsqrt.pop %v216
  %v233 = vrsqrt.pop %v217
  %v234 = vrsqrt.pop %v218
  %v235 = vrsqrt.pop %v219
  %v236 = vrsqrt.pop %v220
  %v237 = vrsqrt.pop %v221
  %v238 = vrsqrt.pop %v222
  %v239 = vrsqrt.pop %v223
  %v240 = vrsqrt.pop %v224
  %v241 = vrsqrt.pop %v225
  %v242 = vrsqrt.pop %v226
  %v243 = vrsqrt.pop %v227
  %v244 = vrsqrt.pop %v228
  %v245 = vrsqrt.pop %v229
  %v246 = vmul.f32 %v118, %v230
  %v247 = vmul.f32 %v119, %v231
  %v248 = vmul.f32 %v120, %v232
  %v249 = vmul.f32 %v121, %v233
  %v250 = vmul.f32 %v122, %v234
  %v251 = vmul.f32 %v123, %v235
  %v252 = vmul.f32 %v124, %v236
  %v253 = vmul.f32 %v125, %v237
  %v254 = vmul.f32 %v126, %v238
  %v255 = vmul.f32 %v127, %v239
  %v256 = vmul.f32 %v128, %v240
  %v257 = vmul.f32 %v129, %v241
  %v258 = vmul.f32 %v130, %v242
  %v259 = vmul.f32 %v131, %v243
  %v260 = vmul.f32 %v132, %v244
  %v261 = vmul.f32 %v133, %v245
  %v262 = vpack.c.bf16 %v247, %v246
  %v263 = vpack.c.bf16 %v249, %v248
  %v264 = vpack.c.bf16 %v251, %v250
  %v265 = vpack.c.bf16 %v253, %v252
  %v266 = vpack.c.bf16 %v255, %v254
  %v267 = vpack.c.bf16 %v257, %v256
  %v268 = vpack.c.bf16 %v259, %v258
  %v269 = vpack.c.bf16 %v261, %v260
  %v270 = vld [vmem:[%s1] sm:$0xf]
  %v271 = vld [vmem:[%s1 + $0x4] sm:$0xf]
  %v272 = vld [vmem:[%s1 + $0x8] sm:$0xf]
  %v273 = vld [vmem:[%s1 + $0xc] sm:$0xf]
  %v274 = vld [vmem:[%s2] sm:$0x1]
  %v276 = vlaneseq
  %v277 = vshrl.u32 %v276, 7
  %v278 = vsub.s32 0, %v277
  %v279 = vrot.slane %v274, %v278
  %v285 = vunpack.c.l.b16 %v270
  %v286 = vunpack.c.l.b16 %v271
  %v287 = vunpack.c.l.b16 %v272
  %v288 = vunpack.c.l.b16 %v273
  %v289 = vpack.c.b16 %v286, %v285
  %v290 = vpack.c.b16 %v288, %v287
  %v294 = vsel %vm52, %v262, 0
  %v297 = vsel %vm52, %v263, 0
  %v300 = vsel %vm52, %v264, 0
  %v303 = vsel %vm52, %v265, 0
  %v306 = vsel %vm52, %v266, 0
  %v309 = vsel %vm52, %v267, 0
  %v312 = vsel %vm52, %v268, 0
  %v315 = vsel %vm52, %v269, 0
  %317 = vmatprep.subr.bf16.mxu0 0
  %318 = vmatpush1.bf16.msra.mxu0 %v289
  %319 = vmatprep.subr.bf16.mxu0 0
  %320 = vmatpush1.bf16.msra.mxu0 %v290
  %321 = vmatprep.subr.bf16.mxu0 0
  %322 = vmatpush1.bf16.msra.mxu0 0
  %323 = vmatprep.subr.bf16.mxu0 0
  %324 = vmatpush1.bf16.msra.mxu0 0
  %325 = vmatprep.subr.bf16.mxu0 0
  %326 = vmatpush1.bf16.msra.mxu0 0
  %327 = vmatprep.subr.bf16.mxu0 0
  %328 = vmatpush1.bf16.msra.mxu0 0
  %329 = vmatprep.subr.bf16.mxu0 0
  %330 = vmatpush1.bf16.msra.mxu0 0
  %331 = vmatprep.subr.bf16.mxu0 0
  %332 = vmatpush1.bf16.msra.mxu0 0
  %333 = vmatprep.subr.bf16.mxu0 0
  %334 = vmatpush1.bf16.msra.mxu0 0
  %335 = vmatprep.subr.bf16.mxu0 0
  %336 = vmatpush1.bf16.msra.mxu0 0
  %337 = vmatprep.subr.bf16.mxu0 0
  %338 = vmatpush1.bf16.msra.mxu0 0
  %339 = vmatprep.subr.bf16.mxu0 0
  %340 = vmatpush1.bf16.msra.mxu0 0
  %341 = vmatprep.subr.bf16.mxu0 0
  %342 = vmatpush1.bf16.msra.mxu0 0
  %343 = vmatprep.subr.bf16.mxu0 0
  %344 = vmatpush1.bf16.msra.mxu0 0
  %345 = vmatprep.subr.bf16.mxu0 0
  %346 = vmatpush1.bf16.msra.mxu0 0
  %347 = vmatprep.subr.bf16.mxu0 0
  %348 = vmatpush1.bf16.msra.mxu0 0
  %349 = vmatprep.mubr.bf16.mxu0 0
  %350 = vmatmul.mubr.bf16.gmra.mrb[0].mxu0 %v294
  %v351 = vpop.f32.mrb[0].mxu0
  %v352 = vadd.f32 %v279, %v351
  %v353 = vpop.f32.mrb[0].mxu0
  %v354 = vpop.f32.mrb[0].mxu0
  %v355 = vadd.f32 %v279, %v354
  %v356 = vpop.f32.mrb[0].mxu0
  %357 = vmatprep.mubr.bf16.mxu0 0
  %358 = vmatmul.mubr.bf16.gmra.mrb[0].mxu0 %v297
  %v359 = vpop.f32.mrb[0].mxu0
  %v360 = vadd.f32 %v279, %v359
  %v361 = vpop.f32.mrb[0].mxu0
  %v362 = vpop.f32.mrb[0].mxu0
  %v363 = vadd.f32 %v279, %v362
  %v364 = vpop.f32.mrb[0].mxu0
  %365 = vmatprep.mubr.bf16.mxu0 0
  %366 = vmatmul.mubr.bf16.gmra.mrb[0].mxu0 %v300
  %v367 = vpop.f32.mrb[0].mxu0
  %v368 = vadd.f32 %v279, %v367
  %v369 = vpop.f32.mrb[0].mxu0
  %v370 = vpop.f32.mrb[0].mxu0
  %v371 = vadd.f32 %v279, %v370
  %v372 = vpop.f32.mrb[0].mxu0
  %373 = vmatprep.mubr.bf16.mxu0 0
  %374 = vmatmul.mubr.bf16.gmra.mrb[0].mxu0 %v303
  %v375 = vpop.f32.mrb[0].mxu0
  %v376 = vadd.f32 %v279, %v375
  %v377 = vpop.f32.mrb[0].mxu0
  %v378 = vpop.f32.mrb[0].mxu0
  %v379 = vadd.f32 %v279, %v378
  %v380 = vpop.f32.mrb[0].mxu0
  %381 = vmatprep.mubr.bf16.mxu0 0
  %382 = vmatmul.mubr.bf16.gmra.mrb[0].mxu0 %v306
  %v383 = vpop.f32.mrb[0].mxu0
  %v384 = vadd.f32 %v279, %v383
  %v385 = vpop.f32.mrb[0].mxu0
  %v386 = vpop.f32.mrb[0].mxu0
  %v387 = vadd.f32 %v279, %v386
  %v388 = vpop.f32.mrb[0].mxu0
  %389 = vmatprep.mubr.bf16.mxu0 0
  %390 = vmatmul.mubr.bf16.gmra.mrb[0].mxu0 %v309
  %v391 = vpop.f32.mrb[0].mxu0
  %v392 = vadd.f32 %v279, %v391
  %v393 = vpop.f32.mrb[0].mxu0
  %v394 = vpop.f32.mrb[0].mxu0
  %v395 = vadd.f32 %v279, %v394
  %v396 = vpop.f32.mrb[0].mxu0
  %397 = vmatprep.mubr.bf16.mxu0 0
  %398 = vmatmul.mubr.bf16.gmra.mrb[0].mxu0 %v312
  %v399 = vpop.f32.mrb[0].mxu0
  %v400 = vadd.f32 %v279, %v399
  %v401 = vpop.f32.mrb[0].mxu0
  %v402 = vpop.f32.mrb[0].mxu0
  %v403 = vadd.f32 %v279, %v402
  %v404 = vpop.f32.mrb[0].mxu0
  %405 = vmatprep.mubr.bf16.mxu0 0
  %406 = vmatmul.mubr.bf16.gmra.mrb[0].mxu0 %v315
  %v407 = vpop.f32.mrb[0].mxu0
  %v408 = vadd.f32 %v279, %v407
  %v409 = vpop.f32.mrb[0].mxu0
  %v410 = vpop.f32.mrb[0].mxu0
  %v411 = vadd.f32 %v279, %v410
  %v412 = vpop.f32.mrb[0].mxu0
  %413 = vdwg.mxu0
  %v414 = vld [vmem:[%s3] sm:$0xf]
  %v415 = vld [vmem:[%s3 + $0x4] sm:$0xf]
  %v416 = vld [vmem:[%s3 + $0x8] sm:$0xf]
  %v417 = vld [vmem:[%s3 + $0xc] sm:$0xf]
  %v418 = vpack.c.bf16 %v355, %v352
  %v419 = vpack.c.bf16 %v363, %v360
  %v420 = vpack.c.bf16 %v371, %v368
  %v421 = vpack.c.bf16 %v379, %v376
  %v422 = vpack.c.bf16 %v387, %v384
  %v423 = vpack.c.bf16 %v395, %v392
  %v424 = vpack.c.bf16 %v403, %v400
  %v425 = vpack.c.bf16 %v411, %v408
  %v426 = vld [vmem:[%s5] sm:$0xf]
  %v427 = vld [vmem:[%s5 + $0x4] sm:$0xf]
  %v428 = vld [vmem:[%s5 + $0x8] sm:$0xf]
  %v429 = vld [vmem:[%s5 + $0xc] sm:$0xf]
  %v430 = vld [vmem:[%s5 + $0x10] sm:$0xf]
  %v431 = vld [vmem:[%s5 + $0x14] sm:$0xf]
  %v432 = vld [vmem:[%s5 + $0x18] sm:$0xf]
  %v433 = vld [vmem:[%s5 + $0x1c] sm:$0xf]
  %v434 = vld [vmem:[%s5 + $0x20] sm:$0xf]
  %v435 = vld [vmem:[%s5 + $0x24] sm:$0xf]
  %v436 = vld [vmem:[%s5 + $0x28] sm:$0xf]
  %v437 = vld [vmem:[%s5 + $0x2c] sm:$0xf]
  %v438 = vld [vmem:[%s5 + $0x30] sm:$0xf]
  %v439 = vld [vmem:[%s5 + $0x34] sm:$0xf]
  %v440 = vld [vmem:[%s5 + $0x38] sm:$0xf]
  %v441 = vld [vmem:[%s5 + $0x3c] sm:$0xf]
  %v442 = vunpack.c.l.bf16 %v426
  %v443 = vunpack.c.l.bf16 %v427
  %v444 = vunpack.c.l.bf16 %v428
  %v445 = vunpack.c.l.bf16 %v429
  %v446 = vunpack.c.l.bf16 %v430
  %v447 = vunpack.c.l.bf16 %v431
  %v448 = vunpack.c.l.bf16 %v432
  %v449 = vunpack.c.l.bf16 %v433
  %v450 = vunpack.c.l.bf16 %v434
  %v451 = vunpack.c.l.bf16 %v435
  %v452 = vunpack.c.l.bf16 %v436
  %v453 = vunpack.c.l.bf16 %v437
  %v454 = vunpack.c.l.bf16 %v438
  %v455 = vunpack.c.l.bf16 %v439
  %v456 = vunpack.c.l.bf16 %v440
  %v457 = vunpack.c.l.bf16 %v441
  %466 = vrot.lane.b32.xlu0 %v418, 96
  %v467 = vpop.permute.xlu0 %466
  %468 = vrot.lane.b32.xlu0 %v419, 96
  %v469 = vpop.permute.xlu0 %468
  %470 = vrot.lane.b32.xlu0 %v420, 96
  %v471 = vpop.permute.xlu0 %470
  %472 = vrot.lane.b32.xlu0 %v421, 96
  %v473 = vpop.permute.xlu0 %472
  %474 = vrot.lane.b32.xlu0 %v422, 96
  %v475 = vpop.permute.xlu0 %474
  %476 = vrot.lane.b32.xlu0 %v423, 96
  %v477 = vpop.permute.xlu0 %476
  %478 = vrot.lane.b32.xlu0 %v424, 96
  %v479 = vpop.permute.xlu0 %478
  %480 = vrot.lane.b32.xlu0 %v425, 96
  %v481 = vpop.permute.xlu0 %480
  %vm482 = vcmask 64512
  %v484 = vsel %vm482, %v418, 0
  %v487 = vsel %vm482, %v419, 0
  %v490 = vsel %vm482, %v420, 0
  %v493 = vsel %vm482, %v421, 0
  %v496 = vsel %vm482, %v422, 0
  %v499 = vsel %vm482, %v423, 0
  %v502 = vsel %vm482, %v424, 0
  %v505 = vsel %vm482, %v425, 0
  %v508 = vsel %vm482, %v467, 0
  %v511 = vsel %vm482, %v469, 0
  %v514 = vsel %vm482, %v471, 0
  %v517 = vsel %vm482, %v473, 0
  %v520 = vsel %vm482, %v475, 0
  %v523 = vsel %vm482, %v477, 0
  %v526 = vsel %vm482, %v479, 0
  %v529 = vsel %vm482, %v481, 0
  %531 = vmatprep.subr.bf16.mxu0 0
  %532 = vmatpush1.bf16.xpose.msra.mxu0 %v508
  %533 = vmatprep.subr.bf16.mxu0 0
  %534 = vmatpush1.bf16.xpose.msra.mxu0 %v511
  %535 = vmatprep.subr.bf16.mxu0 0
  %536 = vmatpush1.bf16.xpose.msra.mxu0 %v514
  %537 = vmatprep.subr.bf16.mxu0 0
  %538 = vmatpush1.bf16.xpose.msra.mxu0 %v517
  %539 = vmatprep.subr.bf16.mxu0 0
  %540 = vmatpush1.bf16.xpose.msra.mxu0 %v520
  %541 = vmatprep.subr.bf16.mxu0 0
  %542 = vmatpush1.bf16.xpose.msra.mxu0 %v523
  %543 = vmatprep.subr.bf16.mxu0 0
  %544 = vmatpush1.bf16.xpose.msra.mxu0 %v526
  %545 = vmatprep.subr.bf16.mxu0 0
  %546 = vmatpush1.bf16.xpose.msra.mxu0 %v529
  %547 = vmatprep.subr.bf16.mxu0 0
  %548 = vmatpush1.bf16.xpose.msra.mxu0 0
  %549 = vmatprep.subr.bf16.mxu0 0
  %550 = vmatpush1.bf16.xpose.msra.mxu0 0
  %551 = vmatprep.subr.bf16.mxu0 0
  %552 = vmatpush1.bf16.xpose.msra.mxu0 0
  %553 = vmatprep.subr.bf16.mxu0 0
  %554 = vmatpush1.bf16.xpose.msra.mxu0 0
  %555 = vmatprep.subr.bf16.mxu0 0
  %556 = vmatpush1.bf16.xpose.msra.mxu0 0
  %557 = vmatprep.subr.bf16.mxu0 0
  %558 = vmatpush1.bf16.xpose.msra.mxu0 0
  %559 = vmatprep.subr.bf16.mxu0 0
  %560 = vmatpush1.bf16.xpose.msra.mxu0 0
  %561 = vmatprep.subr.bf16.mxu0 0
  %562 = vmatpush1.bf16.xpose.msra.mxu0 0
  %563 = vmatprep.mubr.bf16.mxu0 0
  %564 = vmatmul.mubr.bf16.gmra.mrb[0].mxu0 %v484
  %v565 = vpop.f32.mrb[0].mxu0
  %v566 = vadd.f32 %v442, %v565
  %v567 = vpop.f32.mrb[0].mxu0
  %v568 = vpop.f32.mrb[0].mxu0
  %v569 = vadd.f32 %v443, %v568
  %v570 = vpop.f32.mrb[0].mxu0
  %571 = vmatprep.mubr.bf16.mxu0 0
  %572 = vmatmul.mubr.bf16.gmra.mrb[0].mxu0 %v487
  %v573 = vpop.f32.mrb[0].mxu0
  %v574 = vadd.f32 %v444, %v573
  %v575 = vpop.f32.mrb[0].mxu0
  %v576 = vpop.f32.mrb[0].mxu0
  %v577 = vadd.f32 %v445, %v576
  %v578 = vpop.f32.mrb[0].mxu0
  %579 = vmatprep.mubr.bf16.mxu0 0
  %580 = vmatmul.mubr.bf16.gmra.mrb[0].mxu0 %v490
  %v581 = vpop.f32.mrb[0].mxu0
  %v582 = vadd.f32 %v446, %v581
  %v583 = vpop.f32.mrb[0].mxu0
  %v584 = vpop.f32.mrb[0].mxu0
  %v585 = vadd.f32 %v447, %v584
  %v586 = vpop.f32.mrb[0].mxu0
  %587 = vmatprep.mubr.bf16.mxu0 0
  %588 = vmatmul.mubr.bf16.gmra.mrb[0].mxu0 %v493
  %v589 = vpop.f32.mrb[0].mxu0
  %v590 = vadd.f32 %v448, %v589
  %v591 = vpop.f32.mrb[0].mxu0
  %v592 = vpop.f32.mrb[0].mxu0
  %v593 = vadd.f32 %v449, %v592
  %v594 = vpop.f32.mrb[0].mxu0
  %595 = vmatprep.mubr.bf16.mxu0 0
  %596 = vmatmul.mubr.bf16.gmra.mrb[0].mxu0 %v496
  %v597 = vpop.f32.mrb[0].mxu0
  %v598 = vadd.f32 %v450, %v597
  %v599 = vpop.f32.mrb[0].mxu0
  %v600 = vpop.f32.mrb[0].mxu0
  %v601 = vadd.f32 %v451, %v600
  %v602 = vpop.f32.mrb[0].mxu0
  %603 = vmatprep.mubr.bf16.mxu0 0
  %604 = vmatmul.mubr.bf16.gmra.mrb[0].mxu0 %v499
  %v605 = vpop.f32.mrb[0].mxu0
  %v606 = vadd.f32 %v452, %v605
  %v607 = vpop.f32.mrb[0].mxu0
  %v608 = vpop.f32.mrb[0].mxu0
  %v609 = vadd.f32 %v453, %v608
  %v610 = vpop.f32.mrb[0].mxu0
  %611 = vmatprep.mubr.bf16.mxu0 0
  %612 = vmatmul.mubr.bf16.gmra.mrb[0].mxu0 %v502
  %v613 = vpop.f32.mrb[0].mxu0
  %v614 = vadd.f32 %v454, %v613
  %v615 = vpop.f32.mrb[0].mxu0
  %v616 = vpop.f32.mrb[0].mxu0
  %v617 = vadd.f32 %v455, %v616
  %v618 = vpop.f32.mrb[0].mxu0
  %619 = vmatprep.mubr.bf16.mxu0 0
  %620 = vmatmul.mubr.bf16.gmra.mrb[0].mxu0 %v505
  %v621 = vpop.f32.mrb[0].mxu0
  %v622 = vadd.f32 %v456, %v621
  %v623 = vpop.f32.mrb[0].mxu0
  %v624 = vpop.f32.mrb[0].mxu0
  %v625 = vadd.f32 %v457, %v624
  %v626 = vpop.f32.mrb[0].mxu0
  %627 = vdwg.mxu0
  %628 = vmax.xlane.f32.xlu0 %v566
  %v629 = vpop.xlane.xlu0 %628
  %630 = vmax.xlane.f32.xlu0 %v569
  %v631 = vpop.xlane.xlu0 %630
  %632 = vmax.xlane.f32.xlu0 %v574
  %v633 = vpop.xlane.xlu0 %632
  %634 = vmax.xlane.f32.xlu0 %v577
  %v635 = vpop.xlane.xlu0 %634
  %636 = vmax.xlane.f32.xlu0 %v582
  %v637 = vpop.xlane.xlu0 %636
  %638 = vmax.xlane.f32.xlu0 %v585
  %v639 = vpop.xlane.xlu0 %638
  %640 = vmax.xlane.f32.xlu0 %v590
  %v641 = vpop.xlane.xlu0 %640
  %642 = vmax.xlane.f32.xlu0 %v593
  %v643 = vpop.xlane.xlu0 %642
  %644 = vmax.xlane.f32.xlu0 %v598
  %v645 = vpop.xlane.xlu0 %644
  %646 = vmax.xlane.f32.xlu0 %v601
  %v647 = vpop.xlane.xlu0 %646
  %648 = vmax.xlane.f32.xlu0 %v606
  %v649 = vpop.xlane.xlu0 %648
  %650 = vmax.xlane.f32.xlu0 %v609
  %v651 = vpop.xlane.xlu0 %650
  %652 = vmax.xlane.f32.xlu0 %v614
  %v653 = vpop.xlane.xlu0 %652
  %654 = vmax.xlane.f32.xlu0 %v617
  %v655 = vpop.xlane.xlu0 %654
  %656 = vmax.xlane.f32.xlu0 %v622
  %v657 = vpop.xlane.xlu0 %656
  %658 = vmax.xlane.f32.xlu0 %v625
  %v659 = vpop.xlane.xlu0 %658
  %v660 = vsub.f32 %v566, %v629
  %v661 = vsub.f32 %v569, %v631
  %v662 = vsub.f32 %v574, %v633
  %v663 = vsub.f32 %v577, %v635
  %v664 = vsub.f32 %v582, %v637
  %v665 = vsub.f32 %v585, %v639
  %v666 = vsub.f32 %v590, %v641
  %v667 = vsub.f32 %v593, %v643
  %v668 = vsub.f32 %v598, %v645
  %v669 = vsub.f32 %v601, %v647
  %v670 = vsub.f32 %v606, %v649
  %v671 = vsub.f32 %v609, %v651
  %v672 = vsub.f32 %v614, %v653
  %v673 = vsub.f32 %v617, %v655
  %v674 = vsub.f32 %v622, %v657
  %v675 = vsub.f32 %v625, %v659
  %v676 = vmul.f32 %v660, 1.442695
  %v677 = vpow.pop %v676
  %v678 = vmul.f32 %v661, 1.442695
  %v679 = vpow.pop %v678
  %v680 = vmul.f32 %v662, 1.442695
  %v681 = vpow.pop %v680
  %v682 = vmul.f32 %v663, 1.442695
  %v683 = vpow.pop %v682
  %v684 = vmul.f32 %v664, 1.442695
  %v685 = vpow.pop %v684
  %v686 = vmul.f32 %v665, 1.442695
  %v687 = vpow.pop %v686
  %v688 = vmul.f32 %v666, 1.442695
  %v689 = vpow.pop %v688
  %v690 = vmul.f32 %v667, 1.442695
  %v691 = vpow.pop %v690
  %v692 = vmul.f32 %v668, 1.442695
  %v693 = vpow.pop %v692
  %v694 = vmul.f32 %v669, 1.442695
  %v695 = vpow.pop %v694
  %v696 = vmul.f32 %v670, 1.442695
  %v697 = vpow.pop %v696
  %v698 = vmul.f32 %v671, 1.442695
  %v699 = vpow.pop %v698
  %v700 = vmul.f32 %v672, 1.442695
  %v701 = vpow.pop %v700
  %v702 = vmul.f32 %v673, 1.442695
  %v703 = vpow.pop %v702
  %v704 = vmul.f32 %v674, 1.442695
  %v705 = vpow.pop %v704
  %v706 = vmul.f32 %v675, 1.442695
  %v707 = vpow.pop %v706
  %708 = vadd.xlane.f32.xlu0 %v677
  %v709 = vpop.xlane.xlu0 %708
  %710 = vadd.xlane.f32.xlu0 %v679
  %v711 = vpop.xlane.xlu0 %710
  %712 = vadd.xlane.f32.xlu0 %v681
  %v713 = vpop.xlane.xlu0 %712
  %714 = vadd.xlane.f32.xlu0 %v683
  %v715 = vpop.xlane.xlu0 %714
  %716 = vadd.xlane.f32.xlu0 %v685
  %v717 = vpop.xlane.xlu0 %716
  %718 = vadd.xlane.f32.xlu0 %v687
  %v719 = vpop.xlane.xlu0 %718
  %720 = vadd.xlane.f32.xlu0 %v689
  %v721 = vpop.xlane.xlu0 %720
  %722 = vadd.xlane.f32.xlu0 %v691
  %v723 = vpop.xlane.xlu0 %722
  %724 = vadd.xlane.f32.xlu0 %v693
  %v725 = vpop.xlane.xlu0 %724
  %726 = vadd.xlane.f32.xlu0 %v695
  %v727 = vpop.xlane.xlu0 %726
  %728 = vadd.xlane.f32.xlu0 %v697
  %v729 = vpop.xlane.xlu0 %728
  %730 = vadd.xlane.f32.xlu0 %v699
  %v731 = vpop.xlane.xlu0 %730
  %732 = vadd.xlane.f32.xlu0 %v701
  %v733 = vpop.xlane.xlu0 %732
  %734 = vadd.xlane.f32.xlu0 %v703
  %v735 = vpop.xlane.xlu0 %734
  %736 = vadd.xlane.f32.xlu0 %v705
  %v737 = vpop.xlane.xlu0 %736
  %738 = vadd.xlane.f32.xlu0 %v707
  %v739 = vpop.xlane.xlu0 %738
  %v740 = vrcp.pop %v709
  %v741 = vrcp.pop %v711
  %v742 = vrcp.pop %v713
  %v743 = vrcp.pop %v715
  %v744 = vrcp.pop %v717
  %v745 = vrcp.pop %v719
  %v746 = vrcp.pop %v721
  %v747 = vrcp.pop %v723
  %v748 = vrcp.pop %v725
  %v749 = vrcp.pop %v727
  %v750 = vrcp.pop %v729
  %v751 = vrcp.pop %v731
  %v752 = vrcp.pop %v733
  %v753 = vrcp.pop %v735
  %v754 = vrcp.pop %v737
  %v755 = vrcp.pop %v739
  %v756 = vmul.f32 %v677, %v740
  %v757 = vmul.f32 %v679, %v741
  %v758 = vmul.f32 %v681, %v742
  %v759 = vmul.f32 %v683, %v743
  %v760 = vmul.f32 %v685, %v744
  %v761 = vmul.f32 %v687, %v745
  %v762 = vmul.f32 %v689, %v746
  %v763 = vmul.f32 %v691, %v747
  %v764 = vmul.f32 %v693, %v748
  %v765 = vmul.f32 %v695, %v749
  %v766 = vmul.f32 %v697, %v750
  %v767 = vmul.f32 %v699, %v751
  %v768 = vmul.f32 %v701, %v752
  %v769 = vmul.f32 %v703, %v753
  %v770 = vmul.f32 %v705, %v754
  %v771 = vmul.f32 %v707, %v755
  %v772 = vpack.c.bf16 %v757, %v756
  %v773 = vpack.c.bf16 %v759, %v758
  %v774 = vpack.c.bf16 %v761, %v760
  %v775 = vpack.c.bf16 %v763, %v762
  %v776 = vpack.c.bf16 %v765, %v764
  %v777 = vpack.c.bf16 %v767, %v766
  %v778 = vpack.c.bf16 %v769, %v768
  %v779 = vpack.c.bf16 %v771, %v770
  %780 = vrot.lane.b32.xlu0 %v418, 64
  %v781 = vpop.permute.xlu0 %780
  %782 = vrot.lane.b32.xlu0 %v419, 64
  %v783 = vpop.permute.xlu0 %782
  %784 = vrot.lane.b32.xlu0 %v420, 64
  %v785 = vpop.permute.xlu0 %784
  %786 = vrot.lane.b32.xlu0 %v421, 64
  %v787 = vpop.permute.xlu0 %786
  %788 = vrot.lane.b32.xlu0 %v422, 64
  %v789 = vpop.permute.xlu0 %788
  %790 = vrot.lane.b32.xlu0 %v423, 64
  %v791 = vpop.permute.xlu0 %790
  %792 = vrot.lane.b32.xlu0 %v424, 64
  %v793 = vpop.permute.xlu0 %792
  %794 = vrot.lane.b32.xlu0 %v425, 64
  %v795 = vpop.permute.xlu0 %794
  %804 = vmatprep.subr.bf16.mxu0 0
  %805 = vmatpush1.bf16.msra.mxu0 %v781
  %806 = vmatprep.subr.bf16.mxu0 0
  %807 = vmatpush1.bf16.msra.mxu0 %v783
  %808 = vmatprep.subr.bf16.mxu0 0
  %809 = vmatpush1.bf16.msra.mxu0 %v785
  %810 = vmatprep.subr.bf16.mxu0 0
  %811 = vmatpush1.bf16.msra.mxu0 %v787
  %812 = vmatprep.subr.bf16.mxu0 0
  %813 = vmatpush1.bf16.msra.mxu0 %v789
  %814 = vmatprep.subr.bf16.mxu0 0
  %815 = vmatpush1.bf16.msra.mxu0 %v791
  %816 = vmatprep.subr.bf16.mxu0 0
  %817 = vmatpush1.bf16.msra.mxu0 %v793
  %818 = vmatprep.subr.bf16.mxu0 0
  %819 = vmatpush1.bf16.msra.mxu0 %v795
  %820 = vmatprep.subr.bf16.mxu0 0
  %821 = vmatpush1.bf16.msra.mxu0 0
  %822 = vmatprep.subr.bf16.mxu0 0
  %823 = vmatpush1.bf16.msra.mxu0 0
  %824 = vmatprep.subr.bf16.mxu0 0
  %825 = vmatpush1.bf16.msra.mxu0 0
  %826 = vmatprep.subr.bf16.mxu0 0
  %827 = vmatpush1.bf16.msra.mxu0 0
  %828 = vmatprep.subr.bf16.mxu0 0
  %829 = vmatpush1.bf16.msra.mxu0 0
  %830 = vmatprep.subr.bf16.mxu0 0
  %831 = vmatpush1.bf16.msra.mxu0 0
  %832 = vmatprep.subr.bf16.mxu0 0
  %833 = vmatpush1.bf16.msra.mxu0 0
  %834 = vmatprep.subr.bf16.mxu0 0
  %835 = vmatpush1.bf16.msra.mxu0 0
  %836 = vmatprep.mubr.bf16.mxu0 0
  %837 = vmatmul.mubr.bf16.gmra.mrb[0].mxu0 %v772
  %v838 = vpop.f32.mrb[0].mxu0
  %v839 = vadd.f32 0.0, %v838
  %v840 = vpop.f32.mrb[0].mxu0
  %v841 = vpop.f32.mrb[0].mxu0
  %v842 = vadd.f32 0.0, %v841
  %v843 = vpop.f32.mrb[0].mxu0
  %844 = vmatprep.mubr.bf16.mxu0 0
  %845 = vmatmul.mubr.bf16.gmra.mrb[0].mxu0 %v773
  %v846 = vpop.f32.mrb[0].mxu0
  %v847 = vadd.f32 0.0, %v846
  %v848 = vpop.f32.mrb[0].mxu0
  %v849 = vpop.f32.mrb[0].mxu0
  %v850 = vadd.f32 0.0, %v849
  %v851 = vpop.f32.mrb[0].mxu0
  %852 = vmatprep.mubr.bf16.mxu0 0
  %853 = vmatmul.mubr.bf16.gmra.mrb[0].mxu0 %v774
  %v854 = vpop.f32.mrb[0].mxu0
  %v855 = vadd.f32 0.0, %v854
  %v856 = vpop.f32.mrb[0].mxu0
  %v857 = vpop.f32.mrb[0].mxu0
  %v858 = vadd.f32 0.0, %v857
  %v859 = vpop.f32.mrb[0].mxu0
  %860 = vmatprep.mubr.bf16.mxu0 0
  %861 = vmatmul.mubr.bf16.gmra.mrb[0].mxu0 %v775
  %v862 = vpop.f32.mrb[0].mxu0
  %v863 = vadd.f32 0.0, %v862
  %v864 = vpop.f32.mrb[0].mxu0
  %v865 = vpop.f32.mrb[0].mxu0
  %v866 = vadd.f32 0.0, %v865
  %v867 = vpop.f32.mrb[0].mxu0
  %868 = vmatprep.mubr.bf16.mxu0 0
  %869 = vmatmul.mubr.bf16.gmra.mrb[0].mxu0 %v776
  %v870 = vpop.f32.mrb[0].mxu0
  %v871 = vadd.f32 0.0, %v870
  %v872 = vpop.f32.mrb[0].mxu0
  %v873 = vpop.f32.mrb[0].mxu0
  %v874 = vadd.f32 0.0, %v873
  %v875 = vpop.f32.mrb[0].mxu0
  %876 = vmatprep.mubr.bf16.mxu0 0
  %877 = vmatmul.mubr.bf16.gmra.mrb[0].mxu0 %v777
  %v878 = vpop.f32.mrb[0].mxu0
  %v879 = vadd.f32 0.0, %v878
  %v880 = vpop.f32.mrb[0].mxu0
  %v881 = vpop.f32.mrb[0].mxu0
  %v882 = vadd.f32 0.0, %v881
  %v883 = vpop.f32.mrb[0].mxu0
  %884 = vmatprep.mubr.bf16.mxu0 0
  %885 = vmatmul.mubr.bf16.gmra.mrb[0].mxu0 %v778
  %v886 = vpop.f32.mrb[0].mxu0
  %v887 = vadd.f32 0.0, %v886
  %v888 = vpop.f32.mrb[0].mxu0
  %v889 = vpop.f32.mrb[0].mxu0
  %v890 = vadd.f32 0.0, %v889
  %v891 = vpop.f32.mrb[0].mxu0
  %892 = vmatprep.mubr.bf16.mxu0 0
  %893 = vmatmul.mubr.bf16.gmra.mrb[0].mxu0 %v779
  %v894 = vpop.f32.mrb[0].mxu0
  %v895 = vadd.f32 0.0, %v894
  %v896 = vpop.f32.mrb[0].mxu0
  %v897 = vpop.f32.mrb[0].mxu0
  %v898 = vadd.f32 0.0, %v897
  %v899 = vpop.f32.mrb[0].mxu0
  %900 = vdwg.mxu0
  %v901 = vpack.c.bf16 %v842, %v839
  %v902 = vpack.c.bf16 %v850, %v847
  %v903 = vpack.c.bf16 %v858, %v855
  %v904 = vpack.c.bf16 %v866, %v863
  %v905 = vpack.c.bf16 %v874, %v871
  %v906 = vpack.c.bf16 %v882, %v879
  %v907 = vpack.c.bf16 %v890, %v887
  %v908 = vpack.c.bf16 %v898, %v895
  %s909 = scalar_lea.vmem %s5, 64
  %v910 = vld [vmem:[%s909] sm:$0xf]
  %v911 = vld [vmem:[%s909 + $0x4] sm:$0xf]
  %v912 = vld [vmem:[%s909 + $0x8] sm:$0xf]
  %v913 = vld [vmem:[%s909 + $0xc] sm:$0xf]
  %v914 = vld [vmem:[%s909 + $0x10] sm:$0xf]
  %v915 = vld [vmem:[%s909 + $0x14] sm:$0xf]
  %v916 = vld [vmem:[%s909 + $0x18] sm:$0xf]
  %v917 = vld [vmem:[%s909 + $0x1c] sm:$0xf]
  %v918 = vld [vmem:[%s909 + $0x20] sm:$0xf]
  %v919 = vld [vmem:[%s909 + $0x24] sm:$0xf]
  %v920 = vld [vmem:[%s909 + $0x28] sm:$0xf]
  %v921 = vld [vmem:[%s909 + $0x2c] sm:$0xf]
  %v922 = vld [vmem:[%s909 + $0x30] sm:$0xf]
  %v923 = vld [vmem:[%s909 + $0x34] sm:$0xf]
  %v924 = vld [vmem:[%s909 + $0x38] sm:$0xf]
  %v925 = vld [vmem:[%s909 + $0x3c] sm:$0xf]
  %v926 = vunpack.c.l.bf16 %v910
  %v927 = vunpack.c.l.bf16 %v911
  %v928 = vunpack.c.l.bf16 %v912
  %v929 = vunpack.c.l.bf16 %v913
  %v930 = vunpack.c.l.bf16 %v914
  %v931 = vunpack.c.l.bf16 %v915
  %v932 = vunpack.c.l.bf16 %v916
  %v933 = vunpack.c.l.bf16 %v917
  %v934 = vunpack.c.l.bf16 %v918
  %v935 = vunpack.c.l.bf16 %v919
  %v936 = vunpack.c.l.bf16 %v920
  %v937 = vunpack.c.l.bf16 %v921
  %v938 = vunpack.c.l.bf16 %v922
  %v939 = vunpack.c.l.bf16 %v923
  %v940 = vunpack.c.l.bf16 %v924
  %v941 = vunpack.c.l.bf16 %v925
  %942 = vrot.lane.b32.xlu0 %v418, 120
  %v943 = vpop.permute.xlu0 %942
  %944 = vrot.lane.b32.xlu0 %v419, 120
  %v945 = vpop.permute.xlu0 %944
  %946 = vrot.lane.b32.xlu0 %v420, 120
  %v947 = vpop.permute.xlu0 %946
  %948 = vrot.lane.b32.xlu0 %v421, 120
  %v949 = vpop.permute.xlu0 %948
  %950 = vrot.lane.b32.xlu0 %v422, 120
  %v951 = vpop.permute.xlu0 %950
  %952 = vrot.lane.b32.xlu0 %v423, 120
  %v953 = vpop.permute.xlu0 %952
  %954 = vrot.lane.b32.xlu0 %v424, 120
  %v955 = vpop.permute.xlu0 %954
  %956 = vrot.lane.b32.xlu0 %v425, 120
  %v957 = vpop.permute.xlu0 %956
  %958 = vrot.lane.b32.xlu0 %v418, 88
  %v959 = vpop.permute.xlu0 %958
  %960 = vrot.lane.b32.xlu0 %v419, 88
  %v961 = vpop.permute.xlu0 %960
  %962 = vrot.lane.b32.xlu0 %v420, 88
  %v963 = vpop.permute.xlu0 %962
  %964 = vrot.lane.b32.xlu0 %v421, 88
  %v965 = vpop.permute.xlu0 %964
  %966 = vrot.lane.b32.xlu0 %v422, 88
  %v967 = vpop.permute.xlu0 %966
  %968 = vrot.lane.b32.xlu0 %v423, 88
  %v969 = vpop.permute.xlu0 %968
  %970 = vrot.lane.b32.xlu0 %v424, 88
  %v971 = vpop.permute.xlu0 %970
  %972 = vrot.lane.b32.xlu0 %v425, 88
  %v973 = vpop.permute.xlu0 %972
  %v975 = vsel %vm482, %v943, 0
  %v978 = vsel %vm482, %v945, 0
  %v981 = vsel %vm482, %v947, 0
  %v984 = vsel %vm482, %v949, 0
  %v987 = vsel %vm482, %v951, 0
  %v990 = vsel %vm482, %v953, 0
  %v993 = vsel %vm482, %v955, 0
  %v996 = vsel %vm482, %v957, 0
  %v999 = vsel %vm482, %v959, 0
  %v1002 = vsel %vm482, %v961, 0
  %v1005 = vsel %vm482, %v963, 0
  %v1008 = vsel %vm482, %v965, 0
  %v1011 = vsel %vm482, %v967, 0
  %v1014 = vsel %vm482, %v969, 0
  %v1017 = vsel %vm482, %v971, 0
  %v1020 = vsel %vm482, %v973, 0
  %1022 = vmatprep.subr.bf16.mxu0 0
  %1023 = vmatpush1.bf16.xpose.msra.mxu0 %v999
  %1024 = vmatprep.subr.bf16.mxu0 0
  %1025 = vmatpush1.bf16.xpose.msra.mxu0 %v1002
  %1026 = vmatprep.subr.bf16.mxu0 0
  %1027 = vmatpush1.bf16.xpose.msra.mxu0 %v1005
  %1028 = vmatprep.subr.bf16.mxu0 0
  %1029 = vmatpush1.bf16.xpose.msra.mxu0 %v1008
  %1030 = vmatprep.subr.bf16.mxu0 0
  %1031 = vmatpush1.bf16.xpose.msra.mxu0 %v1011
  %1032 = vmatprep.subr.bf16.mxu0 0
  %1033 = vmatpush1.bf16.xpose.msra.mxu0 %v1014
  %1034 = vmatprep.subr.bf16.mxu0 0
  %1035 = vmatpush1.bf16.xpose.msra.mxu0 %v1017
  %1036 = vmatprep.subr.bf16.mxu0 0
  %1037 = vmatpush1.bf16.xpose.msra.mxu0 %v1020
  %1038 = vmatprep.subr.bf16.mxu0 0
  %1039 = vmatpush1.bf16.xpose.msra.mxu0 0
  %1040 = vmatprep.subr.bf16.mxu0 0
  %1041 = vmatpush1.bf16.xpose.msra.mxu0 0
  %1042 = vmatprep.subr.bf16.mxu0 0
  %1043 = vmatpush1.bf16.xpose.msra.mxu0 0
  %1044 = vmatprep.subr.bf16.mxu0 0
  %1045 = vmatpush1.bf16.xpose.msra.mxu0 0
  %1046 = vmatprep.subr.bf16.mxu0 0
  %1047 = vmatpush1.bf16.xpose.msra.mxu0 0
  %1048 = vmatprep.subr.bf16.mxu0 0
  %1049 = vmatpush1.bf16.xpose.msra.mxu0 0
  %1050 = vmatprep.subr.bf16.mxu0 0
  %1051 = vmatpush1.bf16.xpose.msra.mxu0 0
  %1052 = vmatprep.subr.bf16.mxu0 0
  %1053 = vmatpush1.bf16.xpose.msra.mxu0 0
  %1054 = vmatprep.mubr.bf16.mxu0 0
  %1055 = vmatmul.mubr.bf16.gmra.mrb[0].mxu0 %v975
  %v1056 = vpop.f32.mrb[0].mxu0
  %v1057 = vadd.f32 %v926, %v1056
  %v1058 = vpop.f32.mrb[0].mxu0
  %v1059 = vpop.f32.mrb[0].mxu0
  %v1060 = vadd.f32 %v927, %v1059
  %v1061 = vpop.f32.mrb[0].mxu0
  %1062 = vmatprep.mubr.bf16.mxu0 0
  %1063 = vmatmul.mubr.bf16.gmra.mrb[0].mxu0 %v978
  %v1064 = vpop.f32.mrb[0].mxu0
  %v1065 = vadd.f32 %v928, %v1064
  %v1066 = vpop.f32.mrb[0].mxu0
  %v1067 = vpop.f32.mrb[0].mxu0
  %v1068 = vadd.f32 %v929, %v1067
  %v1069 = vpop.f32.mrb[0].mxu0
  %1070 = vmatprep.mubr.bf16.mxu0 0
  %1071 = vmatmul.mubr.bf16.gmra.mrb[0].mxu0 %v981
  %v1072 = vpop.f32.mrb[0].mxu0
  %v1073 = vadd.f32 %v930, %v1072
  %v1074 = vpop.f32.mrb[0].mxu0
  %v1075 = vpop.f32.mrb[0].mxu0
  %v1076 = vadd.f32 %v931, %v1075
  %v1077 = vpop.f32.mrb[0].mxu0
  %1078 = vmatprep.mubr.bf16.mxu0 0
  %1079 = vmatmul.mubr.bf16.gmra.mrb[0].mxu0 %v984
  %v1080 = vpop.f32.mrb[0].mxu0
  %v1081 = vadd.f32 %v932, %v1080
  %v1082 = vpop.f32.mrb[0].mxu0
  %v1083 = vpop.f32.mrb[0].mxu0
  %v1084 = vadd.f32 %v933, %v1083
  %v1085 = vpop.f32.mrb[0].mxu0
  %1086 = vmatprep.mubr.bf16.mxu0 0
  %1087 = vmatmul.mubr.bf16.gmra.mrb[0].mxu0 %v987
  %v1088 = vpop.f32.mrb[0].mxu0
  %v1089 = vadd.f32 %v934, %v1088
  %v1090 = vpop.f32.mrb[0].mxu0
  %v1091 = vpop.f32.mrb[0].mxu0
  %v1092 = vadd.f32 %v935, %v1091
  %v1093 = vpop.f32.mrb[0].mxu0
  %1094 = vmatprep.mubr.bf16.mxu0 0
  %1095 = vmatmul.mubr.bf16.gmra.mrb[0].mxu0 %v990
  %v1096 = vpop.f32.mrb[0].mxu0
  %v1097 = vadd.f32 %v936, %v1096
  %v1098 = vpop.f32.mrb[0].mxu0
  %v1099 = vpop.f32.mrb[0].mxu0
  %v1100 = vadd.f32 %v937, %v1099
  %v1101 = vpop.f32.mrb[0].mxu0
  %1102 = vmatprep.mubr.bf16.mxu0 0
  %1103 = vmatmul.mubr.bf16.gmra.mrb[0].mxu0 %v993
  %v1104 = vpop.f32.mrb[0].mxu0
  %v1105 = vadd.f32 %v938, %v1104
  %v1106 = vpop.f32.mrb[0].mxu0
  %v1107 = vpop.f32.mrb[0].mxu0
  %v1108 = vadd.f32 %v939, %v1107
  %v1109 = vpop.f32.mrb[0].mxu0
  %1110 = vmatprep.mubr.bf16.mxu0 0
  %1111 = vmatmul.mubr.bf16.gmra.mrb[0].mxu0 %v996
  %v1112 = vpop.f32.mrb[0].mxu0
  %v1113 = vadd.f32 %v940, %v1112
  %v1114 = vpop.f32.mrb[0].mxu0
  %v1115 = vpop.f32.mrb[0].mxu0
  %v1116 = vadd.f32 %v941, %v1115
  %v1117 = vpop.f32.mrb[0].mxu0
  %1118 = vdwg.mxu0
  %1119 = vmax.xlane.f32.xlu0 %v1057
  %v1120 = vpop.xlane.xlu0 %1119
  %1121 = vmax.xlane.f32.xlu0 %v1060
  %v1122 = vpop.xlane.xlu0 %1121
  %1123 = vmax.xlane.f32.xlu0 %v1065
  %v1124 = vpop.xlane.xlu0 %1123
  %1125 = vmax.xlane.f32.xlu0 %v1068
  %v1126 = vpop.xlane.xlu0 %1125
  %1127 = vmax.xlane.f32.xlu0 %v1073
  %v1128 = vpop.xlane.xlu0 %1127
  %1129 = vmax.xlane.f32.xlu0 %v1076
  %v1130 = vpop.xlane.xlu0 %1129
  %1131 = vmax.xlane.f32.xlu0 %v1081
  %v1132 = vpop.xlane.xlu0 %1131
  %1133 = vmax.xlane.f32.xlu0 %v1084
  %v1134 = vpop.xlane.xlu0 %1133
  %1135 = vmax.xlane.f32.xlu0 %v1089
  %v1136 = vpop.xlane.xlu0 %1135
  %1137 = vmax.xlane.f32.xlu0 %v1092
  %v1138 = vpop.xlane.xlu0 %1137
  %1139 = vmax.xlane.f32.xlu0 %v1097
  %v1140 = vpop.xlane.xlu0 %1139
  %1141 = vmax.xlane.f32.xlu0 %v1100
  %v1142 = vpop.xlane.xlu0 %1141
  %1143 = vmax.xlane.f32.xlu0 %v1105
  %v1144 = vpop.xlane.xlu0 %1143
  %1145 = vmax.xlane.f32.xlu0 %v1108
  %v1146 = vpop.xlane.xlu0 %1145
  %1147 = vmax.xlane.f32.xlu0 %v1113
  %v1148 = vpop.xlane.xlu0 %1147
  %1149 = vmax.xlane.f32.xlu0 %v1116
  %v1150 = vpop.xlane.xlu0 %1149
  %v1151 = vsub.f32 %v1057, %v1120
  %v1152 = vsub.f32 %v1060, %v1122
  %v1153 = vsub.f32 %v1065, %v1124
  %v1154 = vsub.f32 %v1068, %v1126
  %v1155 = vsub.f32 %v1073, %v1128
  %v1156 = vsub.f32 %v1076, %v1130
  %v1157 = vsub.f32 %v1081, %v1132
  %v1158 = vsub.f32 %v1084, %v1134
  %v1159 = vsub.f32 %v1089, %v1136
  %v1160 = vsub.f32 %v1092, %v1138
  %v1161 = vsub.f32 %v1097, %v1140
  %v1162 = vsub.f32 %v1100, %v1142
  %v1163 = vsub.f32 %v1105, %v1144
  %v1164 = vsub.f32 %v1108, %v1146
  %v1165 = vsub.f32 %v1113, %v1148
  %v1166 = vsub.f32 %v1116, %v1150
  %v1167 = vmul.f32 %v1151, 1.442695
  %v1168 = vpow.pop %v1167
  %v1169 = vmul.f32 %v1152, 1.442695
  %v1170 = vpow.pop %v1169
  %v1171 = vmul.f32 %v1153, 1.442695
  %v1172 = vpow.pop %v1171
  %v1173 = vmul.f32 %v1154, 1.442695
  %v1174 = vpow.pop %v1173
  %v1175 = vmul.f32 %v1155, 1.442695
  %v1176 = vpow.pop %v1175
  %v1177 = vmul.f32 %v1156, 1.442695
  %v1178 = vpow.pop %v1177
  %v1179 = vmul.f32 %v1157, 1.442695
  %v1180 = vpow.pop %v1179
  %v1181 = vmul.f32 %v1158, 1.442695
  %v1182 = vpow.pop %v1181
  %v1183 = vmul.f32 %v1159, 1.442695
  %v1184 = vpow.pop %v1183
  %v1185 = vmul.f32 %v1160, 1.442695
  %v1186 = vpow.pop %v1185
  %v1187 = vmul.f32 %v1161, 1.442695
  %v1188 = vpow.pop %v1187
  %v1189 = vmul.f32 %v1162, 1.442695
  %v1190 = vpow.pop %v1189
  %v1191 = vmul.f32 %v1163, 1.442695
  %v1192 = vpow.pop %v1191
  %v1193 = vmul.f32 %v1164, 1.442695
  %v1194 = vpow.pop %v1193
  %v1195 = vmul.f32 %v1165, 1.442695
  %v1196 = vpow.pop %v1195
  %v1197 = vmul.f32 %v1166, 1.442695
  %v1198 = vpow.pop %v1197
  %1199 = vadd.xlane.f32.xlu0 %v1168
  %v1200 = vpop.xlane.xlu0 %1199
  %1201 = vadd.xlane.f32.xlu0 %v1170
  %v1202 = vpop.xlane.xlu0 %1201
  %1203 = vadd.xlane.f32.xlu0 %v1172
  %v1204 = vpop.xlane.xlu0 %1203
  %1205 = vadd.xlane.f32.xlu0 %v1174
  %v1206 = vpop.xlane.xlu0 %1205
  %1207 = vadd.xlane.f32.xlu0 %v1176
  %v1208 = vpop.xlane.xlu0 %1207
  %1209 = vadd.xlane.f32.xlu0 %v1178
  %v1210 = vpop.xlane.xlu0 %1209
  %1211 = vadd.xlane.f32.xlu0 %v1180
  %v1212 = vpop.xlane.xlu0 %1211
  %1213 = vadd.xlane.f32.xlu0 %v1182
  %v1214 = vpop.xlane.xlu0 %1213
  %1215 = vadd.xlane.f32.xlu0 %v1184
  %v1216 = vpop.xlane.xlu0 %1215
  %1217 = vadd.xlane.f32.xlu0 %v1186
  %v1218 = vpop.xlane.xlu0 %1217
  %1219 = vadd.xlane.f32.xlu0 %v1188
  %v1220 = vpop.xlane.xlu0 %1219
  %1221 = vadd.xlane.f32.xlu0 %v1190
  %v1222 = vpop.xlane.xlu0 %1221
  %1223 = vadd.xlane.f32.xlu0 %v1192
  %v1224 = vpop.xlane.xlu0 %1223
  %1225 = vadd.xlane.f32.xlu0 %v1194
  %v1226 = vpop.xlane.xlu0 %1225
  %1227 = vadd.xlane.f32.xlu0 %v1196
  %v1228 = vpop.xlane.xlu0 %1227
  %1229 = vadd.xlane.f32.xlu0 %v1198
  %v1230 = vpop.xlane.xlu0 %1229
  %v1231 = vrcp.pop %v1200
  %v1232 = vrcp.pop %v1202
  %v1233 = vrcp.pop %v1204
  %v1234 = vrcp.pop %v1206
  %v1235 = vrcp.pop %v1208
  %v1236 = vrcp.pop %v1210
  %v1237 = vrcp.pop %v1212
  %v1238 = vrcp.pop %v1214
  %v1239 = vrcp.pop %v1216
  %v1240 = vrcp.pop %v1218
  %v1241 = vrcp.pop %v1220
  %v1242 = vrcp.pop %v1222
  %v1243 = vrcp.pop %v1224
  %v1244 = vrcp.pop %v1226
  %v1245 = vrcp.pop %v1228
  %v1246 = vrcp.pop %v1230
  %v1247 = vmul.f32 %v1168, %v1231
  %v1248 = vmul.f32 %v1170, %v1232
  %v1249 = vmul.f32 %v1172, %v1233
  %v1250 = vmul.f32 %v1174, %v1234
  %v1251 = vmul.f32 %v1176, %v1235
  %v1252 = vmul.f32 %v1178, %v1236
  %v1253 = vmul.f32 %v1180, %v1237
  %v1254 = vmul.f32 %v1182, %v1238
  %v1255 = vmul.f32 %v1184, %v1239
  %v1256 = vmul.f32 %v1186, %v1240
  %v1257 = vmul.f32 %v1188, %v1241
  %v1258 = vmul.f32 %v1190, %v1242
  %v1259 = vmul.f32 %v1192, %v1243
  %v1260 = vmul.f32 %v1194, %v1244
  %v1261 = vmul.f32 %v1196, %v1245
  %v1262 = vmul.f32 %v1198, %v1246
  %v1263 = vpack.c.bf16 %v1248, %v1247
  %v1264 = vpack.c.bf16 %v1250, %v1249
  %v1265 = vpack.c.bf16 %v1252, %v1251
  %v1266 = vpack.c.bf16 %v1254, %v1253
  %v1267 = vpack.c.bf16 %v1256, %v1255
  %v1268 = vpack.c.bf16 %v1258, %v1257
  %v1269 = vpack.c.bf16 %v1260, %v1259
  %v1270 = vpack.c.bf16 %v1262, %v1261
  %1271 = vrot.lane.b32.xlu0 %v418, 56
  %v1272 = vpop.permute.xlu0 %1271
  %1273 = vrot.lane.b32.xlu0 %v419, 56
  %v1274 = vpop.permute.xlu0 %1273
  %1275 = vrot.lane.b32.xlu0 %v420, 56
  %v1276 = vpop.permute.xlu0 %1275
  %1277 = vrot.lane.b32.xlu0 %v421, 56
  %v1278 = vpop.permute.xlu0 %1277
  %1279 = vrot.lane.b32.xlu0 %v422, 56
  %v1280 = vpop.permute.xlu0 %1279
  %1281 = vrot.lane.b32.xlu0 %v423, 56
  %v1282 = vpop.permute.xlu0 %1281
  %1283 = vrot.lane.b32.xlu0 %v424, 56
  %v1284 = vpop.permute.xlu0 %1283
  %1285 = vrot.lane.b32.xlu0 %v425, 56
  %v1286 = vpop.permute.xlu0 %1285
  %1295 = vmatprep.subr.bf16.mxu0 0
  %1296 = vmatpush1.bf16.msra.mxu0 %v1272
  %1297 = vmatprep.subr.bf16.mxu0 0
  %1298 = vmatpush1.bf16.msra.mxu0 %v1274
  %1299 = vmatprep.subr.bf16.mxu0 0
  %1300 = vmatpush1.bf16.msra.mxu0 %v1276
  %1301 = vmatprep.subr.bf16.mxu0 0
  %1302 = vmatpush1.bf16.msra.mxu0 %v1278
  %1303 = vmatprep.subr.bf16.mxu0 0
  %1304 = vmatpush1.bf16.msra.mxu0 %v1280
  %1305 = vmatprep.subr.bf16.mxu0 0
  %1306 = vmatpush1.bf16.msra.mxu0 %v1282
  %1307 = vmatprep.subr.bf16.mxu0 0
  %1308 = vmatpush1.bf16.msra.mxu0 %v1284
  %1309 = vmatprep.subr.bf16.mxu0 0
  %1310 = vmatpush1.bf16.msra.mxu0 %v1286
  %1311 = vmatprep.subr.bf16.mxu0 0
  %1312 = vmatpush1.bf16.msra.mxu0 0
  %1313 = vmatprep.subr.bf16.mxu0 0
  %1314 = vmatpush1.bf16.msra.mxu0 0
  %1315 = vmatprep.subr.bf16.mxu0 0
  %1316 = vmatpush1.bf16.msra.mxu0 0
  %1317 = vmatprep.subr.bf16.mxu0 0
  %1318 = vmatpush1.bf16.msra.mxu0 0
  %1319 = vmatprep.subr.bf16.mxu0 0
  %1320 = vmatpush1.bf16.msra.mxu0 0
  %1321 = vmatprep.subr.bf16.mxu0 0
  %1322 = vmatpush1.bf16.msra.mxu0 0
  %1323 = vmatprep.subr.bf16.mxu0 0
  %1324 = vmatpush1.bf16.msra.mxu0 0
  %1325 = vmatprep.subr.bf16.mxu0 0
  %1326 = vmatpush1.bf16.msra.mxu0 0
  %1327 = vmatprep.mubr.bf16.mxu0 0
  %1328 = vmatmul.mubr.bf16.gmra.mrb[0].mxu0 %v1263
  %v1329 = vpop.f32.mrb[0].mxu0
  %v1330 = vadd.f32 0.0, %v1329
  %v1331 = vpop.f32.mrb[0].mxu0
  %v1332 = vpop.f32.mrb[0].mxu0
  %v1333 = vadd.f32 0.0, %v1332
  %v1334 = vpop.f32.mrb[0].mxu0
  %1335 = vmatprep.mubr.bf16.mxu0 0
  %1336 = vmatmul.mubr.bf16.gmra.mrb[0].mxu0 %v1264
  %v1337 = vpop.f32.mrb[0].mxu0
  %v1338 = vadd.f32 0.0, %v1337
  %v1339 = vpop.f32.mrb[0].mxu0
  %v1340 = vpop.f32.mrb[0].mxu0
  %v1341 = vadd.f32 0.0, %v1340
  %v1342 = vpop.f32.mrb[0].mxu0
  %1343 = vmatprep.mubr.bf16.mxu0 0
  %1344 = vmatmul.mubr.bf16.gmra.mrb[0].mxu0 %v1265
  %v1345 = vpop.f32.mrb[0].mxu0
  %v1346 = vadd.f32 0.0, %v1345
  %v1347 = vpop.f32.mrb[0].mxu0
  %v1348 = vpop.f32.mrb[0].mxu0
  %v1349 = vadd.f32 0.0, %v1348
  %v1350 = vpop.f32.mrb[0].mxu0
  %1351 = vmatprep.mubr.bf16.mxu0 0
  %1352 = vmatmul.mubr.bf16.gmra.mrb[0].mxu0 %v1266
  %v1353 = vpop.f32.mrb[0].mxu0
  %v1354 = vadd.f32 0.0, %v1353
  %v1355 = vpop.f32.mrb[0].mxu0
  %v1356 = vpop.f32.mrb[0].mxu0
  %v1357 = vadd.f32 0.0, %v1356
  %v1358 = vpop.f32.mrb[0].mxu0
  %1359 = vmatprep.mubr.bf16.mxu0 0
  %1360 = vmatmul.mubr.bf16.gmra.mrb[0].mxu0 %v1267
  %v1361 = vpop.f32.mrb[0].mxu0
  %v1362 = vadd.f32 0.0, %v1361
  %v1363 = vpop.f32.mrb[0].mxu0
  %v1364 = vpop.f32.mrb[0].mxu0
  %v1365 = vadd.f32 0.0, %v1364
  %v1366 = vpop.f32.mrb[0].mxu0
  %1367 = vmatprep.mubr.bf16.mxu0 0
  %1368 = vmatmul.mubr.bf16.gmra.mrb[0].mxu0 %v1268
  %v1369 = vpop.f32.mrb[0].mxu0
  %v1370 = vadd.f32 0.0, %v1369
  %v1371 = vpop.f32.mrb[0].mxu0
  %v1372 = vpop.f32.mrb[0].mxu0
  %v1373 = vadd.f32 0.0, %v1372
  %v1374 = vpop.f32.mrb[0].mxu0
  %1375 = vmatprep.mubr.bf16.mxu0 0
  %1376 = vmatmul.mubr.bf16.gmra.mrb[0].mxu0 %v1269
  %v1377 = vpop.f32.mrb[0].mxu0
  %v1378 = vadd.f32 0.0, %v1377
  %v1379 = vpop.f32.mrb[0].mxu0
  %v1380 = vpop.f32.mrb[0].mxu0
  %v1381 = vadd.f32 0.0, %v1380
  %v1382 = vpop.f32.mrb[0].mxu0
  %1383 = vmatprep.mubr.bf16.mxu0 0
  %1384 = vmatmul.mubr.bf16.gmra.mrb[0].mxu0 %v1270
  %v1385 = vpop.f32.mrb[0].mxu0
  %v1386 = vadd.f32 0.0, %v1385
  %v1387 = vpop.f32.mrb[0].mxu0
  %v1388 = vpop.f32.mrb[0].mxu0
  %v1389 = vadd.f32 0.0, %v1388
  %v1390 = vpop.f32.mrb[0].mxu0
  %1391 = vdwg.mxu0
  %v1392 = vpack.c.bf16 %v1333, %v1330
  %v1393 = vpack.c.bf16 %v1341, %v1338
  %v1394 = vpack.c.bf16 %v1349, %v1346
  %v1395 = vpack.c.bf16 %v1357, %v1354
  %v1396 = vpack.c.bf16 %v1365, %v1362
  %v1397 = vpack.c.bf16 %v1373, %v1370
  %v1398 = vpack.c.bf16 %v1381, %v1378
  %v1399 = vpack.c.bf16 %v1389, %v1386
  %v1401 = vsel %vm482, %v1392, 0
  %v1404 = vsel %vm482, %v1393, 0
  %v1407 = vsel %vm482, %v1394, 0
  %v1410 = vsel %vm482, %v1395, 0
  %v1413 = vsel %vm482, %v1396, 0
  %v1416 = vsel %vm482, %v1397, 0
  %v1419 = vsel %vm482, %v1398, 0
  %v1422 = vsel %vm482, %v1399, 0
  %vm1424 = vcmask 1043456
  %v1426 = vsel %vm1424, %v415, 0
  %1428 = vmatprep.subr.bf16.mxu0 0
  %1429 = vmatpush1.bf16.msra.mxu0 %v1426
  %1430 = vmatprep.subr.bf16.mxu0 0
  %1431 = vmatpush1.bf16.msra.mxu0 0
  %1432 = vmatprep.subr.bf16.mxu0 0
  %1433 = vmatpush1.bf16.msra.mxu0 0
  %1434 = vmatprep.subr.bf16.mxu0 0
  %1435 = vmatpush1.bf16.msra.mxu0 0
  %1436 = vmatprep.subr.bf16.mxu0 0
  %1437 = vmatpush1.bf16.msra.mxu0 0
  %1438 = vmatprep.subr.bf16.mxu0 0
  %1439 = vmatpush1.bf16.msra.mxu0 0
  %1440 = vmatprep.subr.bf16.mxu0 0
  %1441 = vmatpush1.bf16.msra.mxu0 0
  %1442 = vmatprep.subr.bf16.mxu0 0
  %1443 = vmatpush1.bf16.msra.mxu0 0
  %1444 = vmatprep.subr.bf16.mxu0 0
  %1445 = vmatpush1.bf16.msra.mxu0 0
  %1446 = vmatprep.subr.bf16.mxu0 0
  %1447 = vmatpush1.bf16.msra.mxu0 0
  %1448 = vmatprep.subr.bf16.mxu0 0
  %1449 = vmatpush1.bf16.msra.mxu0 0
  %1450 = vmatprep.subr.bf16.mxu0 0
  %1451 = vmatpush1.bf16.msra.mxu0 0
  %1452 = vmatprep.subr.bf16.mxu0 0
  %1453 = vmatpush1.bf16.msra.mxu0 0
  %1454 = vmatprep.subr.bf16.mxu0 0
  %1455 = vmatpush1.bf16.msra.mxu0 0
  %1456 = vmatprep.subr.bf16.mxu0 0
  %1457 = vmatpush1.bf16.msra.mxu0 0
  %1458 = vmatprep.subr.bf16.mxu0 0
  %1459 = vmatpush1.bf16.msra.mxu0 0
  %1460 = vmatprep.mubr.bf16.mxu0 0
  %1461 = vmatmul.mubr.bf16.gmra.mrb[0].mxu0 %v1401
  %v1462 = vpop.f32.mrb[0].mxu0
  %v1463 = vadd.f32 0.0, %v1462
  %v1464 = vpop.f32.mrb[0].mxu0
  %v1465 = vpop.f32.mrb[0].mxu0
  %v1466 = vadd.f32 0.0, %v1465
  %v1467 = vpop.f32.mrb[0].mxu0
  %1468 = vmatprep.mubr.bf16.mxu0 0
  %1469 = vmatmul.mubr.bf16.gmra.mrb[0].mxu0 %v1404
  %v1470 = vpop.f32.mrb[0].mxu0
  %v1471 = vadd.f32 0.0, %v1470
  %v1472 = vpop.f32.mrb[0].mxu0
  %v1473 = vpop.f32.mrb[0].mxu0
  %v1474 = vadd.f32 0.0, %v1473
  %v1475 = vpop.f32.mrb[0].mxu0
  %1476 = vmatprep.mubr.bf16.mxu0 0
  %1477 = vmatmul.mubr.bf16.gmra.mrb[0].mxu0 %v1407
  %v1478 = vpop.f32.mrb[0].mxu0
  %v1479 = vadd.f32 0.0, %v1478
  %v1480 = vpop.f32.mrb[0].mxu0
  %v1481 = vpop.f32.mrb[0].mxu0
  %v1482 = vadd.f32 0.0, %v1481
  %v1483 = vpop.f32.mrb[0].mxu0
  %1484 = vmatprep.mubr.bf16.mxu0 0
  %1485 = vmatmul.mubr.bf16.gmra.mrb[0].mxu0 %v1410
  %v1486 = vpop.f32.mrb[0].mxu0
  %v1487 = vadd.f32 0.0, %v1486
  %v1488 = vpop.f32.mrb[0].mxu0
  %v1489 = vpop.f32.mrb[0].mxu0
  %v1490 = vadd.f32 0.0, %v1489
  %v1491 = vpop.f32.mrb[0].mxu0
  %1492 = vmatprep.mubr.bf16.mxu0 0
  %1493 = vmatmul.mubr.bf16.gmra.mrb[0].mxu0 %v1413
  %v1494 = vpop.f32.mrb[0].mxu0
  %v1495 = vadd.f32 0.0, %v1494
  %v1496 = vpop.f32.mrb[0].mxu0
  %v1497 = vpop.f32.mrb[0].mxu0
  %v1498 = vadd.f32 0.0, %v1497
  %v1499 = vpop.f32.mrb[0].mxu0
  %1500 = vmatprep.mubr.bf16.mxu0 0
  %1501 = vmatmul.mubr.bf16.gmra.mrb[0].mxu0 %v1416
  %v1502 = vpop.f32.mrb[0].mxu0
  %v1503 = vadd.f32 0.0, %v1502
  %v1504 = vpop.f32.mrb[0].mxu0
  %v1505 = vpop.f32.mrb[0].mxu0
  %v1506 = vadd.f32 0.0, %v1505
  %v1507 = vpop.f32.mrb[0].mxu0
  %1508 = vmatprep.mubr.bf16.mxu0 0
  %1509 = vmatmul.mubr.bf16.gmra.mrb[0].mxu0 %v1419
  %v1510 = vpop.f32.mrb[0].mxu0
  %v1511 = vadd.f32 0.0, %v1510
  %v1512 = vpop.f32.mrb[0].mxu0
  %v1513 = vpop.f32.mrb[0].mxu0
  %v1514 = vadd.f32 0.0, %v1513
  %v1515 = vpop.f32.mrb[0].mxu0
  %1516 = vmatprep.mubr.bf16.mxu0 0
  %1517 = vmatmul.mubr.bf16.gmra.mrb[0].mxu0 %v1422
  %v1518 = vpop.f32.mrb[0].mxu0
  %v1519 = vadd.f32 0.0, %v1518
  %v1520 = vpop.f32.mrb[0].mxu0
  %v1521 = vpop.f32.mrb[0].mxu0
  %v1522 = vadd.f32 0.0, %v1521
  %v1523 = vpop.f32.mrb[0].mxu0
  %1524 = vdwg.mxu0
  %v1526 = vsel %vm482, %v901, 0
  %v1529 = vsel %vm482, %v902, 0
  %v1532 = vsel %vm482, %v903, 0
  %v1535 = vsel %vm482, %v904, 0
  %v1538 = vsel %vm482, %v905, 0
  %v1541 = vsel %vm482, %v906, 0
  %v1544 = vsel %vm482, %v907, 0
  %v1547 = vsel %vm482, %v908, 0
  %v1550 = vsel %vm1424, %v414, 0
  %1552 = vmatprep.subr.bf16.mxu0 0
  %1553 = vmatpush1.bf16.msra.mxu0 %v1550
  %1554 = vmatprep.subr.bf16.mxu0 0
  %1555 = vmatpush1.bf16.msra.mxu0 0
  %1556 = vmatprep.subr.bf16.mxu0 0
  %1557 = vmatpush1.bf16.msra.mxu0 0
  %1558 = vmatprep.subr.bf16.mxu0 0
  %1559 = vmatpush1.bf16.msra.mxu0 0
  %1560 = vmatprep.subr.bf16.mxu0 0
  %1561 = vmatpush1.bf16.msra.mxu0 0
  %1562 = vmatprep.subr.bf16.mxu0 0
  %1563 = vmatpush1.bf16.msra.mxu0 0
  %1564 = vmatprep.subr.bf16.mxu0 0
  %1565 = vmatpush1.bf16.msra.mxu0 0
  %1566 = vmatprep.subr.bf16.mxu0 0
  %1567 = vmatpush1.bf16.msra.mxu0 0
  %1568 = vmatprep.subr.bf16.mxu0 0
  %1569 = vmatpush1.bf16.msra.mxu0 0
  %1570 = vmatprep.subr.bf16.mxu0 0
  %1571 = vmatpush1.bf16.msra.mxu0 0
  %1572 = vmatprep.subr.bf16.mxu0 0
  %1573 = vmatpush1.bf16.msra.mxu0 0
  %1574 = vmatprep.subr.bf16.mxu0 0
  %1575 = vmatpush1.bf16.msra.mxu0 0
  %1576 = vmatprep.subr.bf16.mxu0 0
  %1577 = vmatpush1.bf16.msra.mxu0 0
  %1578 = vmatprep.subr.bf16.mxu0 0
  %1579 = vmatpush1.bf16.msra.mxu0 0
  %1580 = vmatprep.subr.bf16.mxu0 0
  %1581 = vmatpush1.bf16.msra.mxu0 0
  %1582 = vmatprep.subr.bf16.mxu0 0
  %1583 = vmatpush1.bf16.msra.mxu0 0
  %1584 = vmatprep.mubr.bf16.mxu0 0
  %1585 = vmatmul.mubr.bf16.gmra.mrb[0].mxu0 %v1526
  %v1586 = vpop.f32.mrb[0].mxu0
  %v1587 = vadd.f32 %v1463, %v1586
  %v1588 = vpop.f32.mrb[0].mxu0
  %v1589 = vpop.f32.mrb[0].mxu0
  %v1590 = vadd.f32 %v1466, %v1589
  %v1591 = vpop.f32.mrb[0].mxu0
  %1592 = vmatprep.mubr.bf16.mxu0 0
  %1593 = vmatmul.mubr.bf16.gmra.mrb[0].mxu0 %v1529
  %v1594 = vpop.f32.mrb[0].mxu0
  %v1595 = vadd.f32 %v1471, %v1594
  %v1596 = vpop.f32.mrb[0].mxu0
  %v1597 = vpop.f32.mrb[0].mxu0
  %v1598 = vadd.f32 %v1474, %v1597
  %v1599 = vpop.f32.mrb[0].mxu0
  %1600 = vmatprep.mubr.bf16.mxu0 0
  %1601 = vmatmul.mubr.bf16.gmra.mrb[0].mxu0 %v1532
  %v1602 = vpop.f32.mrb[0].mxu0
  %v1603 = vadd.f32 %v1479, %v1602
  %v1604 = vpop.f32.mrb[0].mxu0
  %v1605 = vpop.f32.mrb[0].mxu0
  %v1606 = vadd.f32 %v1482, %v1605
  %v1607 = vpop.f32.mrb[0].mxu0
  %1608 = vmatprep.mubr.bf16.mxu0 0
  %1609 = vmatmul.mubr.bf16.gmra.mrb[0].mxu0 %v1535
  %v1610 = vpop.f32.mrb[0].mxu0
  %v1611 = vadd.f32 %v1487, %v1610
  %v1612 = vpop.f32.mrb[0].mxu0
  %v1613 = vpop.f32.mrb[0].mxu0
  %v1614 = vadd.f32 %v1490, %v1613
  %v1615 = vpop.f32.mrb[0].mxu0
  %1616 = vmatprep.mubr.bf16.mxu0 0
  %1617 = vmatmul.mubr.bf16.gmra.mrb[0].mxu0 %v1538
  %v1618 = vpop.f32.mrb[0].mxu0
  %v1619 = vadd.f32 %v1495, %v1618
  %v1620 = vpop.f32.mrb[0].mxu0
  %v1621 = vpop.f32.mrb[0].mxu0
  %v1622 = vadd.f32 %v1498, %v1621
  %v1623 = vpop.f32.mrb[0].mxu0
  %1624 = vmatprep.mubr.bf16.mxu0 0
  %1625 = vmatmul.mubr.bf16.gmra.mrb[0].mxu0 %v1541
  %v1626 = vpop.f32.mrb[0].mxu0
  %v1627 = vadd.f32 %v1503, %v1626
  %v1628 = vpop.f32.mrb[0].mxu0
  %v1629 = vpop.f32.mrb[0].mxu0
  %v1630 = vadd.f32 %v1506, %v1629
  %v1631 = vpop.f32.mrb[0].mxu0
  %1632 = vmatprep.mubr.bf16.mxu0 0
  %1633 = vmatmul.mubr.bf16.gmra.mrb[0].mxu0 %v1544
  %v1634 = vpop.f32.mrb[0].mxu0
  %v1635 = vadd.f32 %v1511, %v1634
  %v1636 = vpop.f32.mrb[0].mxu0
  %v1637 = vpop.f32.mrb[0].mxu0
  %v1638 = vadd.f32 %v1514, %v1637
  %v1639 = vpop.f32.mrb[0].mxu0
  %1640 = vmatprep.mubr.bf16.mxu0 0
  %1641 = vmatmul.mubr.bf16.gmra.mrb[0].mxu0 %v1547
  %v1642 = vpop.f32.mrb[0].mxu0
  %v1643 = vadd.f32 %v1519, %v1642
  %v1644 = vpop.f32.mrb[0].mxu0
  %v1645 = vpop.f32.mrb[0].mxu0
  %v1646 = vadd.f32 %v1522, %v1645
  %v1647 = vpop.f32.mrb[0].mxu0
  %1648 = vdwg.mxu0
  %s1649 = scalar_lea.vmem %s5, 128
  %v1650 = vld [vmem:[%s1649] sm:$0xf]
  %v1651 = vld [vmem:[%s1649 + $0x4] sm:$0xf]
  %v1652 = vld [vmem:[%s1649 + $0x8] sm:$0xf]
  %v1653 = vld [vmem:[%s1649 + $0xc] sm:$0xf]
  %v1654 = vld [vmem:[%s1649 + $0x10] sm:$0xf]
  %v1655 = vld [vmem:[%s1649 + $0x14] sm:$0xf]
  %v1656 = vld [vmem:[%s1649 + $0x18] sm:$0xf]
  %v1657 = vld [vmem:[%s1649 + $0x1c] sm:$0xf]
  %v1658 = vld [vmem:[%s1649 + $0x20] sm:$0xf]
  %v1659 = vld [vmem:[%s1649 + $0x24] sm:$0xf]
  %v1660 = vld [vmem:[%s1649 + $0x28] sm:$0xf]
  %v1661 = vld [vmem:[%s1649 + $0x2c] sm:$0xf]
  %v1662 = vld [vmem:[%s1649 + $0x30] sm:$0xf]
  %v1663 = vld [vmem:[%s1649 + $0x34] sm:$0xf]
  %v1664 = vld [vmem:[%s1649 + $0x38] sm:$0xf]
  %v1665 = vld [vmem:[%s1649 + $0x3c] sm:$0xf]
  %v1666 = vunpack.c.l.bf16 %v1650
  %v1667 = vunpack.c.l.bf16 %v1651
  %v1668 = vunpack.c.l.bf16 %v1652
  %v1669 = vunpack.c.l.bf16 %v1653
  %v1670 = vunpack.c.l.bf16 %v1654
  %v1671 = vunpack.c.l.bf16 %v1655
  %v1672 = vunpack.c.l.bf16 %v1656
  %v1673 = vunpack.c.l.bf16 %v1657
  %v1674 = vunpack.c.l.bf16 %v1658
  %v1675 = vunpack.c.l.bf16 %v1659
  %v1676 = vunpack.c.l.bf16 %v1660
  %v1677 = vunpack.c.l.bf16 %v1661
  %v1678 = vunpack.c.l.bf16 %v1662
  %v1679 = vunpack.c.l.bf16 %v1663
  %v1680 = vunpack.c.l.bf16 %v1664
  %v1681 = vunpack.c.l.bf16 %v1665
  %1682 = vrot.lane.b32.xlu0 %v418, 112
  %v1683 = vpop.permute.xlu0 %1682
  %1684 = vrot.lane.b32.xlu0 %v419, 112
  %v1685 = vpop.permute.xlu0 %1684
  %1686 = vrot.lane.b32.xlu0 %v420, 112
  %v1687 = vpop.permute.xlu0 %1686
  %1688 = vrot.lane.b32.xlu0 %v421, 112
  %v1689 = vpop.permute.xlu0 %1688
  %1690 = vrot.lane.b32.xlu0 %v422, 112
  %v1691 = vpop.permute.xlu0 %1690
  %1692 = vrot.lane.b32.xlu0 %v423, 112
  %v1693 = vpop.permute.xlu0 %1692
  %1694 = vrot.lane.b32.xlu0 %v424, 112
  %v1695 = vpop.permute.xlu0 %1694
  %1696 = vrot.lane.b32.xlu0 %v425, 112
  %v1697 = vpop.permute.xlu0 %1696
  %1698 = vrot.lane.b32.xlu0 %v418, 80
  %v1699 = vpop.permute.xlu0 %1698
  %1700 = vrot.lane.b32.xlu0 %v419, 80
  %v1701 = vpop.permute.xlu0 %1700
  %1702 = vrot.lane.b32.xlu0 %v420, 80
  %v1703 = vpop.permute.xlu0 %1702
  %1704 = vrot.lane.b32.xlu0 %v421, 80
  %v1705 = vpop.permute.xlu0 %1704
  %1706 = vrot.lane.b32.xlu0 %v422, 80
  %v1707 = vpop.permute.xlu0 %1706
  %1708 = vrot.lane.b32.xlu0 %v423, 80
  %v1709 = vpop.permute.xlu0 %1708
  %1710 = vrot.lane.b32.xlu0 %v424, 80
  %v1711 = vpop.permute.xlu0 %1710
  %1712 = vrot.lane.b32.xlu0 %v425, 80
  %v1713 = vpop.permute.xlu0 %1712
  %v1715 = vsel %vm482, %v1683, 0
  %v1718 = vsel %vm482, %v1685, 0
  %v1721 = vsel %vm482, %v1687, 0
  %v1724 = vsel %vm482, %v1689, 0
  %v1727 = vsel %vm482, %v1691, 0
  %v1730 = vsel %vm482, %v1693, 0
  %v1733 = vsel %vm482, %v1695, 0
  %v1736 = vsel %vm482, %v1697, 0
  %v1739 = vsel %vm482, %v1699, 0
  %v1742 = vsel %vm482, %v1701, 0
  %v1745 = vsel %vm482, %v1703, 0
  %v1748 = vsel %vm482, %v1705, 0
  %v1751 = vsel %vm482, %v1707, 0
  %v1754 = vsel %vm482, %v1709, 0
  %v1757 = vsel %vm482, %v1711, 0
  %v1760 = vsel %vm482, %v1713, 0
  %1762 = vmatprep.subr.bf16.mxu0 0
  %1763 = vmatpush1.bf16.xpose.msra.mxu0 %v1739
  %1764 = vmatprep.subr.bf16.mxu0 0
  %1765 = vmatpush1.bf16.xpose.msra.mxu0 %v1742
  %1766 = vmatprep.subr.bf16.mxu0 0
  %1767 = vmatpush1.bf16.xpose.msra.mxu0 %v1745
  %1768 = vmatprep.subr.bf16.mxu0 0
  %1769 = vmatpush1.bf16.xpose.msra.mxu0 %v1748
  %1770 = vmatprep.subr.bf16.mxu0 0
  %1771 = vmatpush1.bf16.xpose.msra.mxu0 %v1751
  %1772 = vmatprep.subr.bf16.mxu0 0
  %1773 = vmatpush1.bf16.xpose.msra.mxu0 %v1754
  %1774 = vmatprep.subr.bf16.mxu0 0
  %1775 = vmatpush1.bf16.xpose.msra.mxu0 %v1757
  %1776 = vmatprep.subr.bf16.mxu0 0
  %1777 = vmatpush1.bf16.xpose.msra.mxu0 %v1760
  %1778 = vmatprep.subr.bf16.mxu0 0
  %1779 = vmatpush1.bf16.xpose.msra.mxu0 0
  %1780 = vmatprep.subr.bf16.mxu0 0
  %1781 = vmatpush1.bf16.xpose.msra.mxu0 0
  %1782 = vmatprep.subr.bf16.mxu0 0
  %1783 = vmatpush1.bf16.xpose.msra.mxu0 0
  %1784 = vmatprep.subr.bf16.mxu0 0
  %1785 = vmatpush1.bf16.xpose.msra.mxu0 0
  %1786 = vmatprep.subr.bf16.mxu0 0
  %1787 = vmatpush1.bf16.xpose.msra.mxu0 0
  %1788 = vmatprep.subr.bf16.mxu0 0
  %1789 = vmatpush1.bf16.xpose.msra.mxu0 0
  %1790 = vmatprep.subr.bf16.mxu0 0
  %1791 = vmatpush1.bf16.xpose.msra.mxu0 0
  %1792 = vmatprep.subr.bf16.mxu0 0
  %1793 = vmatpush1.bf16.xpose.msra.mxu0 0
  %1794 = vmatprep.mubr.bf16.mxu0 0
  %1795 = vmatmul.mubr.bf16.gmra.mrb[0].mxu0 %v1715
  %v1796 = vpop.f32.mrb[0].mxu0
  %v1797 = vadd.f32 %v1666, %v1796
  %v1798 = vpop.f32.mrb[0].mxu0
  %v1799 = vpop.f32.mrb[0].mxu0
  %v1800 = vadd.f32 %v1667, %v1799
  %v1801 = vpop.f32.mrb[0].mxu0
  %1802 = vmatprep.mubr.bf16.mxu0 0
  %1803 = vmatmul.mubr.bf16.gmra.mrb[0].mxu0 %v1718
  %v1804 = vpop.f32.mrb[0].mxu0
  %v1805 = vadd.f32 %v1668, %v1804
  %v1806 = vpop.f32.mrb[0].mxu0
  %v1807 = vpop.f32.mrb[0].mxu0
  %v1808 = vadd.f32 %v1669, %v1807
  %v1809 = vpop.f32.mrb[0].mxu0
  %1810 = vmatprep.mubr.bf16.mxu0 0
  %1811 = vmatmul.mubr.bf16.gmra.mrb[0].mxu0 %v1721
  %v1812 = vpop.f32.mrb[0].mxu0
  %v1813 = vadd.f32 %v1670, %v1812
  %v1814 = vpop.f32.mrb[0].mxu0
  %v1815 = vpop.f32.mrb[0].mxu0
  %v1816 = vadd.f32 %v1671, %v1815
  %v1817 = vpop.f32.mrb[0].mxu0
  %1818 = vmatprep.mubr.bf16.mxu0 0
  %1819 = vmatmul.mubr.bf16.gmra.mrb[0].mxu0 %v1724
  %v1820 = vpop.f32.mrb[0].mxu0
  %v1821 = vadd.f32 %v1672, %v1820
  %v1822 = vpop.f32.mrb[0].mxu0
  %v1823 = vpop.f32.mrb[0].mxu0
  %v1824 = vadd.f32 %v1673, %v1823
  %v1825 = vpop.f32.mrb[0].mxu0
  %1826 = vmatprep.mubr.bf16.mxu0 0
  %1827 = vmatmul.mubr.bf16.gmra.mrb[0].mxu0 %v1727
  %v1828 = vpop.f32.mrb[0].mxu0
  %v1829 = vadd.f32 %v1674, %v1828
  %v1830 = vpop.f32.mrb[0].mxu0
  %v1831 = vpop.f32.mrb[0].mxu0
  %v1832 = vadd.f32 %v1675, %v1831
  %v1833 = vpop.f32.mrb[0].mxu0
  %1834 = vmatprep.mubr.bf16.mxu0 0
  %1835 = vmatmul.mubr.bf16.gmra.mrb[0].mxu0 %v1730
  %v1836 = vpop.f32.mrb[0].mxu0
  %v1837 = vadd.f32 %v1676, %v1836
  %v1838 = vpop.f32.mrb[0].mxu0
  %v1839 = vpop.f32.mrb[0].mxu0
  %v1840 = vadd.f32 %v1677, %v1839
  %v1841 = vpop.f32.mrb[0].mxu0
  %1842 = vmatprep.mubr.bf16.mxu0 0
  %1843 = vmatmul.mubr.bf16.gmra.mrb[0].mxu0 %v1733
  %v1844 = vpop.f32.mrb[0].mxu0
  %v1845 = vadd.f32 %v1678, %v1844
  %v1846 = vpop.f32.mrb[0].mxu0
  %v1847 = vpop.f32.mrb[0].mxu0
  %v1848 = vadd.f32 %v1679, %v1847
  %v1849 = vpop.f32.mrb[0].mxu0
  %1850 = vmatprep.mubr.bf16.mxu0 0
  %1851 = vmatmul.mubr.bf16.gmra.mrb[0].mxu0 %v1736
  %v1852 = vpop.f32.mrb[0].mxu0
  %v1853 = vadd.f32 %v1680, %v1852
  %v1854 = vpop.f32.mrb[0].mxu0
  %v1855 = vpop.f32.mrb[0].mxu0
  %v1856 = vadd.f32 %v1681, %v1855
  %v1857 = vpop.f32.mrb[0].mxu0
  %1858 = vdwg.mxu0
  %1859 = vmax.xlane.f32.xlu0 %v1797
  %v1860 = vpop.xlane.xlu0 %1859
  %1861 = vmax.xlane.f32.xlu0 %v1800
  %v1862 = vpop.xlane.xlu0 %1861
  %1863 = vmax.xlane.f32.xlu0 %v1805
  %v1864 = vpop.xlane.xlu0 %1863
  %1865 = vmax.xlane.f32.xlu0 %v1808
  %v1866 = vpop.xlane.xlu0 %1865
  %1867 = vmax.xlane.f32.xlu0 %v1813
  %v1868 = vpop.xlane.xlu0 %1867
  %1869 = vmax.xlane.f32.xlu0 %v1816
  %v1870 = vpop.xlane.xlu0 %1869
  %1871 = vmax.xlane.f32.xlu0 %v1821
  %v1872 = vpop.xlane.xlu0 %1871
  %1873 = vmax.xlane.f32.xlu0 %v1824
  %v1874 = vpop.xlane.xlu0 %1873
  %1875 = vmax.xlane.f32.xlu0 %v1829
  %v1876 = vpop.xlane.xlu0 %1875
  %1877 = vmax.xlane.f32.xlu0 %v1832
  %v1878 = vpop.xlane.xlu0 %1877
  %1879 = vmax.xlane.f32.xlu0 %v1837
  %v1880 = vpop.xlane.xlu0 %1879
  %1881 = vmax.xlane.f32.xlu0 %v1840
  %v1882 = vpop.xlane.xlu0 %1881
  %1883 = vmax.xlane.f32.xlu0 %v1845
  %v1884 = vpop.xlane.xlu0 %1883
  %1885 = vmax.xlane.f32.xlu0 %v1848
  %v1886 = vpop.xlane.xlu0 %1885
  %1887 = vmax.xlane.f32.xlu0 %v1853
  %v1888 = vpop.xlane.xlu0 %1887
  %1889 = vmax.xlane.f32.xlu0 %v1856
  %v1890 = vpop.xlane.xlu0 %1889
  %v1891 = vsub.f32 %v1797, %v1860
  %v1892 = vsub.f32 %v1800, %v1862
  %v1893 = vsub.f32 %v1805, %v1864
  %v1894 = vsub.f32 %v1808, %v1866
  %v1895 = vsub.f32 %v1813, %v1868
  %v1896 = vsub.f32 %v1816, %v1870
  %v1897 = vsub.f32 %v1821, %v1872
  %v1898 = vsub.f32 %v1824, %v1874
  %v1899 = vsub.f32 %v1829, %v1876
  %v1900 = vsub.f32 %v1832, %v1878
  %v1901 = vsub.f32 %v1837, %v1880
  %v1902 = vsub.f32 %v1840, %v1882
  %v1903 = vsub.f32 %v1845, %v1884
  %v1904 = vsub.f32 %v1848, %v1886
  %v1905 = vsub.f32 %v1853, %v1888
  %v1906 = vsub.f32 %v1856, %v1890
  %v1907 = vmul.f32 %v1891, 1.442695
  %v1908 = vpow.pop %v1907
  %v1909 = vmul.f32 %v1892, 1.442695
  %v1910 = vpow.pop %v1909
  %v1911 = vmul.f32 %v1893, 1.442695
  %v1912 = vpow.pop %v1911
  %v1913 = vmul.f32 %v1894, 1.442695
  %v1914 = vpow.pop %v1913
  %v1915 = vmul.f32 %v1895, 1.442695
  %v1916 = vpow.pop %v1915
  %v1917 = vmul.f32 %v1896, 1.442695
  %v1918 = vpow.pop %v1917
  %v1919 = vmul.f32 %v1897, 1.442695
  %v1920 = vpow.pop %v1919
  %v1921 = vmul.f32 %v1898, 1.442695
  %v1922 = vpow.pop %v1921
  %v1923 = vmul.f32 %v1899, 1.442695
  %v1924 = vpow.pop %v1923
  %v1925 = vmul.f32 %v1900, 1.442695
  %v1926 = vpow.pop %v1925
  %v1927 = vmul.f32 %v1901, 1.442695
  %v1928 = vpow.pop %v1927
  %v1929 = vmul.f32 %v1902, 1.442695
  %v1930 = vpow.pop %v1929
  %v1931 = vmul.f32 %v1903, 1.442695
  %v1932 = vpow.pop %v1931
  %v1933 = vmul.f32 %v1904, 1.442695
  %v1934 = vpow.pop %v1933
  %v1935 = vmul.f32 %v1905, 1.442695
  %v1936 = vpow.pop %v1935
  %v1937 = vmul.f32 %v1906, 1.442695
  %v1938 = vpow.pop %v1937
  %1939 = vadd.xlane.f32.xlu0 %v1908
  %v1940 = vpop.xlane.xlu0 %1939
  %1941 = vadd.xlane.f32.xlu0 %v1910
  %v1942 = vpop.xlane.xlu0 %1941
  %1943 = vadd.xlane.f32.xlu0 %v1912
  %v1944 = vpop.xlane.xlu0 %1943
  %1945 = vadd.xlane.f32.xlu0 %v1914
  %v1946 = vpop.xlane.xlu0 %1945
  %1947 = vadd.xlane.f32.xlu0 %v1916
  %v1948 = vpop.xlane.xlu0 %1947
  %1949 = vadd.xlane.f32.xlu0 %v1918
  %v1950 = vpop.xlane.xlu0 %1949
  %1951 = vadd.xlane.f32.xlu0 %v1920
  %v1952 = vpop.xlane.xlu0 %1951
  %1953 = vadd.xlane.f32.xlu0 %v1922
  %v1954 = vpop.xlane.xlu0 %1953
  %1955 = vadd.xlane.f32.xlu0 %v1924
  %v1956 = vpop.xlane.xlu0 %1955
  %1957 = vadd.xlane.f32.xlu0 %v1926
  %v1958 = vpop.xlane.xlu0 %1957
  %1959 = vadd.xlane.f32.xlu0 %v1928
  %v1960 = vpop.xlane.xlu0 %1959
  %1961 = vadd.xlane.f32.xlu0 %v1930
  %v1962 = vpop.xlane.xlu0 %1961
  %1963 = vadd.xlane.f32.xlu0 %v1932
  %v1964 = vpop.xlane.xlu0 %1963
  %1965 = vadd.xlane.f32.xlu0 %v1934
  %v1966 = vpop.xlane.xlu0 %1965
  %1967 = vadd.xlane.f32.xlu0 %v1936
  %v1968 = vpop.xlane.xlu0 %1967
  %1969 = vadd.xlane.f32.xlu0 %v1938
  %v1970 = vpop.xlane.xlu0 %1969
  %v1971 = vrcp.pop %v1940
  %v1972 = vrcp.pop %v1942
  %v1973 = vrcp.pop %v1944
  %v1974 = vrcp.pop %v1946
  %v1975 = vrcp.pop %v1948
  %v1976 = vrcp.pop %v1950
  %v1977 = vrcp.pop %v1952
  %v1978 = vrcp.pop %v1954
  %v1979 = vrcp.pop %v1956
  %v1980 = vrcp.pop %v1958
  %v1981 = vrcp.pop %v1960
  %v1982 = vrcp.pop %v1962
  %v1983 = vrcp.pop %v1964
  %v1984 = vrcp.pop %v1966
  %v1985 = vrcp.pop %v1968
  %v1986 = vrcp.pop %v1970
  %v1987 = vmul.f32 %v1908, %v1971
  %v1988 = vmul.f32 %v1910, %v1972
  %v1989 = vmul.f32 %v1912, %v1973
  %v1990 = vmul.f32 %v1914, %v1974
  %v1991 = vmul.f32 %v1916, %v1975
  %v1992 = vmul.f32 %v1918, %v1976
  %v1993 = vmul.f32 %v1920, %v1977
  %v1994 = vmul.f32 %v1922, %v1978
  %v1995 = vmul.f32 %v1924, %v1979
  %v1996 = vmul.f32 %v1926, %v1980
  %v1997 = vmul.f32 %v1928, %v1981
  %v1998 = vmul.f32 %v1930, %v1982
  %v1999 = vmul.f32 %v1932, %v1983
  %v2000 = vmul.f32 %v1934, %v1984
  %v2001 = vmul.f32 %v1936, %v1985
  %v2002 = vmul.f32 %v1938, %v1986
  %v2003 = vpack.c.bf16 %v1988, %v1987
  %v2004 = vpack.c.bf16 %v1990, %v1989
  %v2005 = vpack.c.bf16 %v1992, %v1991
  %v2006 = vpack.c.bf16 %v1994, %v1993
  %v2007 = vpack.c.bf16 %v1996, %v1995
  %v2008 = vpack.c.bf16 %v1998, %v1997
  %v2009 = vpack.c.bf16 %v2000, %v1999
  %v2010 = vpack.c.bf16 %v2002, %v2001
  %2011 = vrot.lane.b32.xlu0 %v418, 48
  %v2012 = vpop.permute.xlu0 %2011
  %2013 = vrot.lane.b32.xlu0 %v419, 48
  %v2014 = vpop.permute.xlu0 %2013
  %2015 = vrot.lane.b32.xlu0 %v420, 48
  %v2016 = vpop.permute.xlu0 %2015
  %2017 = vrot.lane.b32.xlu0 %v421, 48
  %v2018 = vpop.permute.xlu0 %2017
  %2019 = vrot.lane.b32.xlu0 %v422, 48
  %v2020 = vpop.permute.xlu0 %2019
  %2021 = vrot.lane.b32.xlu0 %v423, 48
  %v2022 = vpop.permute.xlu0 %2021
  %2023 = vrot.lane.b32.xlu0 %v424, 48
  %v2024 = vpop.permute.xlu0 %2023
  %2025 = vrot.lane.b32.xlu0 %v425, 48
  %v2026 = vpop.permute.xlu0 %2025
  %2035 = vmatprep.subr.bf16.mxu0 0
  %2036 = vmatpush1.bf16.msra.mxu0 %v2012
  %2037 = vmatprep.subr.bf16.mxu0 0
  %2038 = vmatpush1.bf16.msra.mxu0 %v2014
  %2039 = vmatprep.subr.bf16.mxu0 0
  %2040 = vmatpush1.bf16.msra.mxu0 %v2016
  %2041 = vmatprep.subr.bf16.mxu0 0
  %2042 = vmatpush1.bf16.msra.mxu0 %v2018
  %2043 = vmatprep.subr.bf16.mxu0 0
  %2044 = vmatpush1.bf16.msra.mxu0 %v2020
  %2045 = vmatprep.subr.bf16.mxu0 0
  %2046 = vmatpush1.bf16.msra.mxu0 %v2022
  %2047 = vmatprep.subr.bf16.mxu0 0
  %2048 = vmatpush1.bf16.msra.mxu0 %v2024
  %2049 = vmatprep.subr.bf16.mxu0 0
  %2050 = vmatpush1.bf16.msra.mxu0 %v2026
  %2051 = vmatprep.subr.bf16.mxu0 0
  %2052 = vmatpush1.bf16.msra.mxu0 0
  %2053 = vmatprep.subr.bf16.mxu0 0
  %2054 = vmatpush1.bf16.msra.mxu0 0
  %2055 = vmatprep.subr.bf16.mxu0 0
  %2056 = vmatpush1.bf16.msra.mxu0 0
  %2057 = vmatprep.subr.bf16.mxu0 0
  %2058 = vmatpush1.bf16.msra.mxu0 0
  %2059 = vmatprep.subr.bf16.mxu0 0
  %2060 = vmatpush1.bf16.msra.mxu0 0
  %2061 = vmatprep.subr.bf16.mxu0 0
  %2062 = vmatpush1.bf16.msra.mxu0 0
  %2063 = vmatprep.subr.bf16.mxu0 0
  %2064 = vmatpush1.bf16.msra.mxu0 0
  %2065 = vmatprep.subr.bf16.mxu0 0
  %2066 = vmatpush1.bf16.msra.mxu0 0
  %2067 = vmatprep.mubr.bf16.mxu0 0
  %2068 = vmatmul.mubr.bf16.gmra.mrb[0].mxu0 %v2003
  %v2069 = vpop.f32.mrb[0].mxu0
  %v2070 = vadd.f32 0.0, %v2069
  %v2071 = vpop.f32.mrb[0].mxu0
  %v2072 = vpop.f32.mrb[0].mxu0
  %v2073 = vadd.f32 0.0, %v2072
  %v2074 = vpop.f32.mrb[0].mxu0
  %2075 = vmatprep.mubr.bf16.mxu0 0
  %2076 = vmatmul.mubr.bf16.gmra.mrb[0].mxu0 %v2004
  %v2077 = vpop.f32.mrb[0].mxu0
  %v2078 = vadd.f32 0.0, %v2077
  %v2079 = vpop.f32.mrb[0].mxu0
  %v2080 = vpop.f32.mrb[0].mxu0
  %v2081 = vadd.f32 0.0, %v2080
  %v2082 = vpop.f32.mrb[0].mxu0
  %2083 = vmatprep.mubr.bf16.mxu0 0
  %2084 = vmatmul.mubr.bf16.gmra.mrb[0].mxu0 %v2005
  %v2085 = vpop.f32.mrb[0].mxu0
  %v2086 = vadd.f32 0.0, %v2085
  %v2087 = vpop.f32.mrb[0].mxu0
  %v2088 = vpop.f32.mrb[0].mxu0
  %v2089 = vadd.f32 0.0, %v2088
  %v2090 = vpop.f32.mrb[0].mxu0
  %2091 = vmatprep.mubr.bf16.mxu0 0
  %2092 = vmatmul.mubr.bf16.gmra.mrb[0].mxu0 %v2006
  %v2093 = vpop.f32.mrb[0].mxu0
  %v2094 = vadd.f32 0.0, %v2093
  %v2095 = vpop.f32.mrb[0].mxu0
  %v2096 = vpop.f32.mrb[0].mxu0
  %v2097 = vadd.f32 0.0, %v2096
  %v2098 = vpop.f32.mrb[0].mxu0
  %2099 = vmatprep.mubr.bf16.mxu0 0
  %2100 = vmatmul.mubr.bf16.gmra.mrb[0].mxu0 %v2007
  %v2101 = vpop.f32.mrb[0].mxu0
  %v2102 = vadd.f32 0.0, %v2101
  %v2103 = vpop.f32.mrb[0].mxu0
  %v2104 = vpop.f32.mrb[0].mxu0
  %v2105 = vadd.f32 0.0, %v2104
  %v2106 = vpop.f32.mrb[0].mxu0
  %2107 = vmatprep.mubr.bf16.mxu0 0
  %2108 = vmatmul.mubr.bf16.gmra.mrb[0].mxu0 %v2008
  %v2109 = vpop.f32.mrb[0].mxu0
  %v2110 = vadd.f32 0.0, %v2109
  %v2111 = vpop.f32.mrb[0].mxu0
  %v2112 = vpop.f32.mrb[0].mxu0
  %v2113 = vadd.f32 0.0, %v2112
  %v2114 = vpop.f32.mrb[0].mxu0
  %2115 = vmatprep.mubr.bf16.mxu0 0
  %2116 = vmatmul.mubr.bf16.gmra.mrb[0].mxu0 %v2009
  %v2117 = vpop.f32.mrb[0].mxu0
  %v2118 = vadd.f32 0.0, %v2117
  %v2119 = vpop.f32.mrb[0].mxu0
  %v2120 = vpop.f32.mrb[0].mxu0
  %v2121 = vadd.f32 0.0, %v2120
  %v2122 = vpop.f32.mrb[0].mxu0
  %2123 = vmatprep.mubr.bf16.mxu0 0
  %2124 = vmatmul.mubr.bf16.gmra.mrb[0].mxu0 %v2010
  %v2125 = vpop.f32.mrb[0].mxu0
  %v2126 = vadd.f32 0.0, %v2125
  %v2127 = vpop.f32.mrb[0].mxu0
  %v2128 = vpop.f32.mrb[0].mxu0
  %v2129 = vadd.f32 0.0, %v2128
  %v2130 = vpop.f32.mrb[0].mxu0
  %2131 = vdwg.mxu0
  %v2132 = vpack.c.bf16 %v2073, %v2070
  %v2133 = vpack.c.bf16 %v2081, %v2078
  %v2134 = vpack.c.bf16 %v2089, %v2086
  %v2135 = vpack.c.bf16 %v2097, %v2094
  %v2136 = vpack.c.bf16 %v2105, %v2102
  %v2137 = vpack.c.bf16 %v2113, %v2110
  %v2138 = vpack.c.bf16 %v2121, %v2118
  %v2139 = vpack.c.bf16 %v2129, %v2126
  %v2141 = vsel %vm482, %v2132, 0
  %v2144 = vsel %vm482, %v2133, 0
  %v2147 = vsel %vm482, %v2134, 0
  %v2150 = vsel %vm482, %v2135, 0
  %v2153 = vsel %vm482, %v2136, 0
  %v2156 = vsel %vm482, %v2137, 0
  %v2159 = vsel %vm482, %v2138, 0
  %v2162 = vsel %vm482, %v2139, 0
  %v2165 = vsel %vm1424, %v416, 0
  %2167 = vmatprep.subr.bf16.mxu0 0
  %2168 = vmatpush1.bf16.msra.mxu0 %v2165
  %2169 = vmatprep.subr.bf16.mxu0 0
  %2170 = vmatpush1.bf16.msra.mxu0 0
  %2171 = vmatprep.subr.bf16.mxu0 0
  %2172 = vmatpush1.bf16.msra.mxu0 0
  %2173 = vmatprep.subr.bf16.mxu0 0
  %2174 = vmatpush1.bf16.msra.mxu0 0
  %2175 = vmatprep.subr.bf16.mxu0 0
  %2176 = vmatpush1.bf16.msra.mxu0 0
  %2177 = vmatprep.subr.bf16.mxu0 0
  %2178 = vmatpush1.bf16.msra.mxu0 0
  %2179 = vmatprep.subr.bf16.mxu0 0
  %2180 = vmatpush1.bf16.msra.mxu0 0
  %2181 = vmatprep.subr.bf16.mxu0 0
  %2182 = vmatpush1.bf16.msra.mxu0 0
  %2183 = vmatprep.subr.bf16.mxu0 0
  %2184 = vmatpush1.bf16.msra.mxu0 0
  %2185 = vmatprep.subr.bf16.mxu0 0
  %2186 = vmatpush1.bf16.msra.mxu0 0
  %2187 = vmatprep.subr.bf16.mxu0 0
  %2188 = vmatpush1.bf16.msra.mxu0 0
  %2189 = vmatprep.subr.bf16.mxu0 0
  %2190 = vmatpush1.bf16.msra.mxu0 0
  %2191 = vmatprep.subr.bf16.mxu0 0
  %2192 = vmatpush1.bf16.msra.mxu0 0
  %2193 = vmatprep.subr.bf16.mxu0 0
  %2194 = vmatpush1.bf16.msra.mxu0 0
  %2195 = vmatprep.subr.bf16.mxu0 0
  %2196 = vmatpush1.bf16.msra.mxu0 0
  %2197 = vmatprep.subr.bf16.mxu0 0
  %2198 = vmatpush1.bf16.msra.mxu0 0
  %2199 = vmatprep.mubr.bf16.mxu0 0
  %2200 = vmatmul.mubr.bf16.gmra.mrb[0].mxu0 %v2141
  %v2201 = vpop.f32.mrb[0].mxu0
  %v2202 = vadd.f32 0.0, %v2201
  %v2203 = vpop.f32.mrb[0].mxu0
  %v2204 = vpop.f32.mrb[0].mxu0
  %v2205 = vadd.f32 0.0, %v2204
  %v2206 = vpop.f32.mrb[0].mxu0
  %2207 = vmatprep.mubr.bf16.mxu0 0
  %2208 = vmatmul.mubr.bf16.gmra.mrb[0].mxu0 %v2144
  %v2209 = vpop.f32.mrb[0].mxu0
  %v2210 = vadd.f32 0.0, %v2209
  %v2211 = vpop.f32.mrb[0].mxu0
  %v2212 = vpop.f32.mrb[0].mxu0
  %v2213 = vadd.f32 0.0, %v2212
  %v2214 = vpop.f32.mrb[0].mxu0
  %2215 = vmatprep.mubr.bf16.mxu0 0
  %2216 = vmatmul.mubr.bf16.gmra.mrb[0].mxu0 %v2147
  %v2217 = vpop.f32.mrb[0].mxu0
  %v2218 = vadd.f32 0.0, %v2217
  %v2219 = vpop.f32.mrb[0].mxu0
  %v2220 = vpop.f32.mrb[0].mxu0
  %v2221 = vadd.f32 0.0, %v2220
  %v2222 = vpop.f32.mrb[0].mxu0
  %2223 = vmatprep.mubr.bf16.mxu0 0
  %2224 = vmatmul.mubr.bf16.gmra.mrb[0].mxu0 %v2150
  %v2225 = vpop.f32.mrb[0].mxu0
  %v2226 = vadd.f32 0.0, %v2225
  %v2227 = vpop.f32.mrb[0].mxu0
  %v2228 = vpop.f32.mrb[0].mxu0
  %v2229 = vadd.f32 0.0, %v2228
  %v2230 = vpop.f32.mrb[0].mxu0
  %2231 = vmatprep.mubr.bf16.mxu0 0
  %2232 = vmatmul.mubr.bf16.gmra.mrb[0].mxu0 %v2153
  %v2233 = vpop.f32.mrb[0].mxu0
  %v2234 = vadd.f32 0.0, %v2233
  %v2235 = vpop.f32.mrb[0].mxu0
  %v2236 = vpop.f32.mrb[0].mxu0
  %v2237 = vadd.f32 0.0, %v2236
  %v2238 = vpop.f32.mrb[0].mxu0
  %2239 = vmatprep.mubr.bf16.mxu0 0
  %2240 = vmatmul.mubr.bf16.gmra.mrb[0].mxu0 %v2156
  %v2241 = vpop.f32.mrb[0].mxu0
  %v2242 = vadd.f32 0.0, %v2241
  %v2243 = vpop.f32.mrb[0].mxu0
  %v2244 = vpop.f32.mrb[0].mxu0
  %v2245 = vadd.f32 0.0, %v2244
  %v2246 = vpop.f32.mrb[0].mxu0
  %2247 = vmatprep.mubr.bf16.mxu0 0
  %2248 = vmatmul.mubr.bf16.gmra.mrb[0].mxu0 %v2159
  %v2249 = vpop.f32.mrb[0].mxu0
  %v2250 = vadd.f32 0.0, %v2249
  %v2251 = vpop.f32.mrb[0].mxu0
  %v2252 = vpop.f32.mrb[0].mxu0
  %v2253 = vadd.f32 0.0, %v2252
  %v2254 = vpop.f32.mrb[0].mxu0
  %2255 = vmatprep.mubr.bf16.mxu0 0
  %2256 = vmatmul.mubr.bf16.gmra.mrb[0].mxu0 %v2162
  %v2257 = vpop.f32.mrb[0].mxu0
  %v2258 = vadd.f32 0.0, %v2257
  %v2259 = vpop.f32.mrb[0].mxu0
  %v2260 = vpop.f32.mrb[0].mxu0
  %v2261 = vadd.f32 0.0, %v2260
  %v2262 = vpop.f32.mrb[0].mxu0
  %2263 = vdwg.mxu0
  %v2264 = vadd.f32 %v1587, %v2202
  %v2265 = vadd.f32 %v1590, %v2205
  %v2266 = vadd.f32 %v1595, %v2210
  %v2267 = vadd.f32 %v1598, %v2213
  %v2268 = vadd.f32 %v1603, %v2218
  %v2269 = vadd.f32 %v1606, %v2221
  %v2270 = vadd.f32 %v1611, %v2226
  %v2271 = vadd.f32 %v1614, %v2229
  %v2272 = vadd.f32 %v1619, %v2234
  %v2273 = vadd.f32 %v1622, %v2237
  %v2274 = vadd.f32 %v1627, %v2242
  %v2275 = vadd.f32 %v1630, %v2245
  %v2276 = vadd.f32 %v1635, %v2250
  %v2277 = vadd.f32 %v1638, %v2253
  %v2278 = vadd.f32 %v1643, %v2258
  %v2279 = vadd.f32 %v1646, %v2261
  %s2280 = scalar_lea.vmem %s5, 192
  %v2281 = vld [vmem:[%s2280] sm:$0xf]
  %v2282 = vld [vmem:[%s2280 + $0x4] sm:$0xf]
  %v2283 = vld [vmem:[%s2280 + $0x8] sm:$0xf]
  %v2284 = vld [vmem:[%s2280 + $0xc] sm:$0xf]
  %v2285 = vld [vmem:[%s2280 + $0x10] sm:$0xf]
  %v2286 = vld [vmem:[%s2280 + $0x14] sm:$0xf]
  %v2287 = vld [vmem:[%s2280 + $0x18] sm:$0xf]
  %v2288 = vld [vmem:[%s2280 + $0x1c] sm:$0xf]
  %v2289 = vld [vmem:[%s2280 + $0x20] sm:$0xf]
  %v2290 = vld [vmem:[%s2280 + $0x24] sm:$0xf]
  %v2291 = vld [vmem:[%s2280 + $0x28] sm:$0xf]
  %v2292 = vld [vmem:[%s2280 + $0x2c] sm:$0xf]
  %v2293 = vld [vmem:[%s2280 + $0x30] sm:$0xf]
  %v2294 = vld [vmem:[%s2280 + $0x34] sm:$0xf]
  %v2295 = vld [vmem:[%s2280 + $0x38] sm:$0xf]
  %v2296 = vld [vmem:[%s2280 + $0x3c] sm:$0xf]
  %v2297 = vunpack.c.l.bf16 %v2281
  %v2298 = vunpack.c.l.bf16 %v2282
  %v2299 = vunpack.c.l.bf16 %v2283
  %v2300 = vunpack.c.l.bf16 %v2284
  %v2301 = vunpack.c.l.bf16 %v2285
  %v2302 = vunpack.c.l.bf16 %v2286
  %v2303 = vunpack.c.l.bf16 %v2287
  %v2304 = vunpack.c.l.bf16 %v2288
  %v2305 = vunpack.c.l.bf16 %v2289
  %v2306 = vunpack.c.l.bf16 %v2290
  %v2307 = vunpack.c.l.bf16 %v2291
  %v2308 = vunpack.c.l.bf16 %v2292
  %v2309 = vunpack.c.l.bf16 %v2293
  %v2310 = vunpack.c.l.bf16 %v2294
  %v2311 = vunpack.c.l.bf16 %v2295
  %v2312 = vunpack.c.l.bf16 %v2296
  %2313 = vrot.lane.b32.xlu0 %v418, 104
  %v2314 = vpop.permute.xlu0 %2313
  %2315 = vrot.lane.b32.xlu0 %v419, 104
  %v2316 = vpop.permute.xlu0 %2315
  %2317 = vrot.lane.b32.xlu0 %v420, 104
  %v2318 = vpop.permute.xlu0 %2317
  %2319 = vrot.lane.b32.xlu0 %v421, 104
  %v2320 = vpop.permute.xlu0 %2319
  %2321 = vrot.lane.b32.xlu0 %v422, 104
  %v2322 = vpop.permute.xlu0 %2321
  %2323 = vrot.lane.b32.xlu0 %v423, 104
  %v2324 = vpop.permute.xlu0 %2323
  %2325 = vrot.lane.b32.xlu0 %v424, 104
  %v2326 = vpop.permute.xlu0 %2325
  %2327 = vrot.lane.b32.xlu0 %v425, 104
  %v2328 = vpop.permute.xlu0 %2327
  %2329 = vrot.lane.b32.xlu0 %v418, 72
  %v2330 = vpop.permute.xlu0 %2329
  %2331 = vrot.lane.b32.xlu0 %v419, 72
  %v2332 = vpop.permute.xlu0 %2331
  %2333 = vrot.lane.b32.xlu0 %v420, 72
  %v2334 = vpop.permute.xlu0 %2333
  %2335 = vrot.lane.b32.xlu0 %v421, 72
  %v2336 = vpop.permute.xlu0 %2335
  %2337 = vrot.lane.b32.xlu0 %v422, 72
  %v2338 = vpop.permute.xlu0 %2337
  %2339 = vrot.lane.b32.xlu0 %v423, 72
  %v2340 = vpop.permute.xlu0 %2339
  %2341 = vrot.lane.b32.xlu0 %v424, 72
  %v2342 = vpop.permute.xlu0 %2341
  %2343 = vrot.lane.b32.xlu0 %v425, 72
  %v2344 = vpop.permute.xlu0 %2343
  %v2346 = vsel %vm482, %v2314, 0
  %v2349 = vsel %vm482, %v2316, 0
  %v2352 = vsel %vm482, %v2318, 0
  %v2355 = vsel %vm482, %v2320, 0
  %v2358 = vsel %vm482, %v2322, 0
  %v2361 = vsel %vm482, %v2324, 0
  %v2364 = vsel %vm482, %v2326, 0
  %v2367 = vsel %vm482, %v2328, 0
  %v2370 = vsel %vm482, %v2330, 0
  %v2373 = vsel %vm482, %v2332, 0
  %v2376 = vsel %vm482, %v2334, 0
  %v2379 = vsel %vm482, %v2336, 0
  %v2382 = vsel %vm482, %v2338, 0
  %v2385 = vsel %vm482, %v2340, 0
  %v2388 = vsel %vm482, %v2342, 0
  %v2391 = vsel %vm482, %v2344, 0
  %2393 = vmatprep.subr.bf16.mxu0 0
  %2394 = vmatpush1.bf16.xpose.msra.mxu0 %v2370
  %2395 = vmatprep.subr.bf16.mxu0 0
  %2396 = vmatpush1.bf16.xpose.msra.mxu0 %v2373
  %2397 = vmatprep.subr.bf16.mxu0 0
  %2398 = vmatpush1.bf16.xpose.msra.mxu0 %v2376
  %2399 = vmatprep.subr.bf16.mxu0 0
  %2400 = vmatpush1.bf16.xpose.msra.mxu0 %v2379
  %2401 = vmatprep.subr.bf16.mxu0 0
  %2402 = vmatpush1.bf16.xpose.msra.mxu0 %v2382
  %2403 = vmatprep.subr.bf16.mxu0 0
  %2404 = vmatpush1.bf16.xpose.msra.mxu0 %v2385
  %2405 = vmatprep.subr.bf16.mxu0 0
  %2406 = vmatpush1.bf16.xpose.msra.mxu0 %v2388
  %2407 = vmatprep.subr.bf16.mxu0 0
  %2408 = vmatpush1.bf16.xpose.msra.mxu0 %v2391
  %2409 = vmatprep.subr.bf16.mxu0 0
  %2410 = vmatpush1.bf16.xpose.msra.mxu0 0
  %2411 = vmatprep.subr.bf16.mxu0 0
  %2412 = vmatpush1.bf16.xpose.msra.mxu0 0
  %2413 = vmatprep.subr.bf16.mxu0 0
  %2414 = vmatpush1.bf16.xpose.msra.mxu0 0
  %2415 = vmatprep.subr.bf16.mxu0 0
  %2416 = vmatpush1.bf16.xpose.msra.mxu0 0
  %2417 = vmatprep.subr.bf16.mxu0 0
  %2418 = vmatpush1.bf16.xpose.msra.mxu0 0
  %2419 = vmatprep.subr.bf16.mxu0 0
  %2420 = vmatpush1.bf16.xpose.msra.mxu0 0
  %2421 = vmatprep.subr.bf16.mxu0 0
  %2422 = vmatpush1.bf16.xpose.msra.mxu0 0
  %2423 = vmatprep.subr.bf16.mxu0 0
  %2424 = vmatpush1.bf16.xpose.msra.mxu0 0
  %2425 = vmatprep.mubr.bf16.mxu0 0
  %2426 = vmatmul.mubr.bf16.gmra.mrb[0].mxu0 %v2346
  %v2427 = vpop.f32.mrb[0].mxu0
  %v2428 = vadd.f32 %v2297, %v2427
  %v2429 = vpop.f32.mrb[0].mxu0
  %v2430 = vpop.f32.mrb[0].mxu0
  %v2431 = vadd.f32 %v2298, %v2430
  %v2432 = vpop.f32.mrb[0].mxu0
  %2433 = vmatprep.mubr.bf16.mxu0 0
  %2434 = vmatmul.mubr.bf16.gmra.mrb[0].mxu0 %v2349
  %v2435 = vpop.f32.mrb[0].mxu0
  %v2436 = vadd.f32 %v2299, %v2435
  %v2437 = vpop.f32.mrb[0].mxu0
  %v2438 = vpop.f32.mrb[0].mxu0
  %v2439 = vadd.f32 %v2300, %v2438
  %v2440 = vpop.f32.mrb[0].mxu0
  %2441 = vmatprep.mubr.bf16.mxu0 0
  %2442 = vmatmul.mubr.bf16.gmra.mrb[0].mxu0 %v2352
  %v2443 = vpop.f32.mrb[0].mxu0
  %v2444 = vadd.f32 %v2301, %v2443
  %v2445 = vpop.f32.mrb[0].mxu0
  %v2446 = vpop.f32.mrb[0].mxu0
  %v2447 = vadd.f32 %v2302, %v2446
  %v2448 = vpop.f32.mrb[0].mxu0
  %2449 = vmatprep.mubr.bf16.mxu0 0
  %2450 = vmatmul.mubr.bf16.gmra.mrb[0].mxu0 %v2355
  %v2451 = vpop.f32.mrb[0].mxu0
  %v2452 = vadd.f32 %v2303, %v2451
  %v2453 = vpop.f32.mrb[0].mxu0
  %v2454 = vpop.f32.mrb[0].mxu0
  %v2455 = vadd.f32 %v2304, %v2454
  %v2456 = vpop.f32.mrb[0].mxu0
  %2457 = vmatprep.mubr.bf16.mxu0 0
  %2458 = vmatmul.mubr.bf16.gmra.mrb[0].mxu0 %v2358
  %v2459 = vpop.f32.mrb[0].mxu0
  %v2460 = vadd.f32 %v2305, %v2459
  %v2461 = vpop.f32.mrb[0].mxu0
  %v2462 = vpop.f32.mrb[0].mxu0
  %v2463 = vadd.f32 %v2306, %v2462
  %v2464 = vpop.f32.mrb[0].mxu0
  %2465 = vmatprep.mubr.bf16.mxu0 0
  %2466 = vmatmul.mubr.bf16.gmra.mrb[0].mxu0 %v2361
  %v2467 = vpop.f32.mrb[0].mxu0
  %v2468 = vadd.f32 %v2307, %v2467
  %v2469 = vpop.f32.mrb[0].mxu0
  %v2470 = vpop.f32.mrb[0].mxu0
  %v2471 = vadd.f32 %v2308, %v2470
  %v2472 = vpop.f32.mrb[0].mxu0
  %2473 = vmatprep.mubr.bf16.mxu0 0
  %2474 = vmatmul.mubr.bf16.gmra.mrb[0].mxu0 %v2364
  %v2475 = vpop.f32.mrb[0].mxu0
  %v2476 = vadd.f32 %v2309, %v2475
  %v2477 = vpop.f32.mrb[0].mxu0
  %v2478 = vpop.f32.mrb[0].mxu0
  %v2479 = vadd.f32 %v2310, %v2478
  %v2480 = vpop.f32.mrb[0].mxu0
  %2481 = vmatprep.mubr.bf16.mxu0 0
  %2482 = vmatmul.mubr.bf16.gmra.mrb[0].mxu0 %v2367
  %v2483 = vpop.f32.mrb[0].mxu0
  %v2484 = vadd.f32 %v2311, %v2483
  %v2485 = vpop.f32.mrb[0].mxu0
  %v2486 = vpop.f32.mrb[0].mxu0
  %v2487 = vadd.f32 %v2312, %v2486
  %v2488 = vpop.f32.mrb[0].mxu0
  %2489 = vdwg.mxu0
  %2490 = vmax.xlane.f32.xlu0 %v2428
  %v2491 = vpop.xlane.xlu0 %2490
  %2492 = vmax.xlane.f32.xlu0 %v2431
  %v2493 = vpop.xlane.xlu0 %2492
  %2494 = vmax.xlane.f32.xlu0 %v2436
  %v2495 = vpop.xlane.xlu0 %2494
  %2496 = vmax.xlane.f32.xlu0 %v2439
  %v2497 = vpop.xlane.xlu0 %2496
  %2498 = vmax.xlane.f32.xlu0 %v2444
  %v2499 = vpop.xlane.xlu0 %2498
  %2500 = vmax.xlane.f32.xlu0 %v2447
  %v2501 = vpop.xlane.xlu0 %2500
  %2502 = vmax.xlane.f32.xlu0 %v2452
  %v2503 = vpop.xlane.xlu0 %2502
  %2504 = vmax.xlane.f32.xlu0 %v2455
  %v2505 = vpop.xlane.xlu0 %2504
  %2506 = vmax.xlane.f32.xlu0 %v2460
  %v2507 = vpop.xlane.xlu0 %2506
  %2508 = vmax.xlane.f32.xlu0 %v2463
  %v2509 = vpop.xlane.xlu0 %2508
  %2510 = vmax.xlane.f32.xlu0 %v2468
  %v2511 = vpop.xlane.xlu0 %2510
  %2512 = vmax.xlane.f32.xlu0 %v2471
  %v2513 = vpop.xlane.xlu0 %2512
  %2514 = vmax.xlane.f32.xlu0 %v2476
  %v2515 = vpop.xlane.xlu0 %2514
  %2516 = vmax.xlane.f32.xlu0 %v2479
  %v2517 = vpop.xlane.xlu0 %2516
  %2518 = vmax.xlane.f32.xlu0 %v2484
  %v2519 = vpop.xlane.xlu0 %2518
  %2520 = vmax.xlane.f32.xlu0 %v2487
  %v2521 = vpop.xlane.xlu0 %2520
  %v2522 = vsub.f32 %v2428, %v2491
  %v2523 = vsub.f32 %v2431, %v2493
  %v2524 = vsub.f32 %v2436, %v2495
  %v2525 = vsub.f32 %v2439, %v2497
  %v2526 = vsub.f32 %v2444, %v2499
  %v2527 = vsub.f32 %v2447, %v2501
  %v2528 = vsub.f32 %v2452, %v2503
  %v2529 = vsub.f32 %v2455, %v2505
  %v2530 = vsub.f32 %v2460, %v2507
  %v2531 = vsub.f32 %v2463, %v2509
  %v2532 = vsub.f32 %v2468, %v2511
  %v2533 = vsub.f32 %v2471, %v2513
  %v2534 = vsub.f32 %v2476, %v2515
  %v2535 = vsub.f32 %v2479, %v2517
  %v2536 = vsub.f32 %v2484, %v2519
  %v2537 = vsub.f32 %v2487, %v2521
  %v2538 = vmul.f32 %v2522, 1.442695
  %v2539 = vpow.pop %v2538
  %v2540 = vmul.f32 %v2523, 1.442695
  %v2541 = vpow.pop %v2540
  %v2542 = vmul.f32 %v2524, 1.442695
  %v2543 = vpow.pop %v2542
  %v2544 = vmul.f32 %v2525, 1.442695
  %v2545 = vpow.pop %v2544
  %v2546 = vmul.f32 %v2526, 1.442695
  %v2547 = vpow.pop %v2546
  %v2548 = vmul.f32 %v2527, 1.442695
  %v2549 = vpow.pop %v2548
  %v2550 = vmul.f32 %v2528, 1.442695
  %v2551 = vpow.pop %v2550
  %v2552 = vmul.f32 %v2529, 1.442695
  %v2553 = vpow.pop %v2552
  %v2554 = vmul.f32 %v2530, 1.442695
  %v2555 = vpow.pop %v2554
  %v2556 = vmul.f32 %v2531, 1.442695
  %v2557 = vpow.pop %v2556
  %v2558 = vmul.f32 %v2532, 1.442695
  %v2559 = vpow.pop %v2558
  %v2560 = vmul.f32 %v2533, 1.442695
  %v2561 = vpow.pop %v2560
  %v2562 = vmul.f32 %v2534, 1.442695
  %v2563 = vpow.pop %v2562
  %v2564 = vmul.f32 %v2535, 1.442695
  %v2565 = vpow.pop %v2564
  %v2566 = vmul.f32 %v2536, 1.442695
  %v2567 = vpow.pop %v2566
  %v2568 = vmul.f32 %v2537, 1.442695
  %v2569 = vpow.pop %v2568
  %2570 = vadd.xlane.f32.xlu0 %v2539
  %v2571 = vpop.xlane.xlu0 %2570
  %2572 = vadd.xlane.f32.xlu0 %v2541
  %v2573 = vpop.xlane.xlu0 %2572
  %2574 = vadd.xlane.f32.xlu0 %v2543
  %v2575 = vpop.xlane.xlu0 %2574
  %2576 = vadd.xlane.f32.xlu0 %v2545
  %v2577 = vpop.xlane.xlu0 %2576
  %2578 = vadd.xlane.f32.xlu0 %v2547
  %v2579 = vpop.xlane.xlu0 %2578
  %2580 = vadd.xlane.f32.xlu0 %v2549
  %v2581 = vpop.xlane.xlu0 %2580
  %2582 = vadd.xlane.f32.xlu0 %v2551
  %v2583 = vpop.xlane.xlu0 %2582
  %2584 = vadd.xlane.f32.xlu0 %v2553
  %v2585 = vpop.xlane.xlu0 %2584
  %2586 = vadd.xlane.f32.xlu0 %v2555
  %v2587 = vpop.xlane.xlu0 %2586
  %2588 = vadd.xlane.f32.xlu0 %v2557
  %v2589 = vpop.xlane.xlu0 %2588
  %2590 = vadd.xlane.f32.xlu0 %v2559
  %v2591 = vpop.xlane.xlu0 %2590
  %2592 = vadd.xlane.f32.xlu0 %v2561
  %v2593 = vpop.xlane.xlu0 %2592
  %2594 = vadd.xlane.f32.xlu0 %v2563
  %v2595 = vpop.xlane.xlu0 %2594
  %2596 = vadd.xlane.f32.xlu0 %v2565
  %v2597 = vpop.xlane.xlu0 %2596
  %2598 = vadd.xlane.f32.xlu0 %v2567
  %v2599 = vpop.xlane.xlu0 %2598
  %2600 = vadd.xlane.f32.xlu0 %v2569
  %v2601 = vpop.xlane.xlu0 %2600
  %v2602 = vrcp.pop %v2571
  %v2603 = vrcp.pop %v2573
  %v2604 = vrcp.pop %v2575
  %v2605 = vrcp.pop %v2577
  %v2606 = vrcp.pop %v2579
  %v2607 = vrcp.pop %v2581
  %v2608 = vrcp.pop %v2583
  %v2609 = vrcp.pop %v2585
  %v2610 = vrcp.pop %v2587
  %v2611 = vrcp.pop %v2589
  %v2612 = vrcp.pop %v2591
  %v2613 = vrcp.pop %v2593
  %v2614 = vrcp.pop %v2595
  %v2615 = vrcp.pop %v2597
  %v2616 = vrcp.pop %v2599
  %v2617 = vrcp.pop %v2601
  %v2618 = vmul.f32 %v2539, %v2602
  %v2619 = vmul.f32 %v2541, %v2603
  %v2620 = vmul.f32 %v2543, %v2604
  %v2621 = vmul.f32 %v2545, %v2605
  %v2622 = vmul.f32 %v2547, %v2606
  %v2623 = vmul.f32 %v2549, %v2607
  %v2624 = vmul.f32 %v2551, %v2608
  %v2625 = vmul.f32 %v2553, %v2609
  %v2626 = vmul.f32 %v2555, %v2610
  %v2627 = vmul.f32 %v2557, %v2611
  %v2628 = vmul.f32 %v2559, %v2612
  %v2629 = vmul.f32 %v2561, %v2613
  %v2630 = vmul.f32 %v2563, %v2614
  %v2631 = vmul.f32 %v2565, %v2615
  %v2632 = vmul.f32 %v2567, %v2616
  %v2633 = vmul.f32 %v2569, %v2617
  %v2634 = vpack.c.bf16 %v2619, %v2618
  %v2635 = vpack.c.bf16 %v2621, %v2620
  %v2636 = vpack.c.bf16 %v2623, %v2622
  %v2637 = vpack.c.bf16 %v2625, %v2624
  %v2638 = vpack.c.bf16 %v2627, %v2626
  %v2639 = vpack.c.bf16 %v2629, %v2628
  %v2640 = vpack.c.bf16 %v2631, %v2630
  %v2641 = vpack.c.bf16 %v2633, %v2632
  %2642 = vrot.lane.b32.xlu0 %v418, 40
  %v2643 = vpop.permute.xlu0 %2642
  %2644 = vrot.lane.b32.xlu0 %v419, 40
  %v2645 = vpop.permute.xlu0 %2644
  %2646 = vrot.lane.b32.xlu0 %v420, 40
  %v2647 = vpop.permute.xlu0 %2646
  %2648 = vrot.lane.b32.xlu0 %v421, 40
  %v2649 = vpop.permute.xlu0 %2648
  %2650 = vrot.lane.b32.xlu0 %v422, 40
  %v2651 = vpop.permute.xlu0 %2650
  %2652 = vrot.lane.b32.xlu0 %v423, 40
  %v2653 = vpop.permute.xlu0 %2652
  %2654 = vrot.lane.b32.xlu0 %v424, 40
  %v2655 = vpop.permute.xlu0 %2654
  %2656 = vrot.lane.b32.xlu0 %v425, 40
  %v2657 = vpop.permute.xlu0 %2656
  %2666 = vmatprep.subr.bf16.mxu0 0
  %2667 = vmatpush1.bf16.msra.mxu0 %v2643
  %2668 = vmatprep.subr.bf16.mxu0 0
  %2669 = vmatpush1.bf16.msra.mxu0 %v2645
  %2670 = vmatprep.subr.bf16.mxu0 0
  %2671 = vmatpush1.bf16.msra.mxu0 %v2647
  %2672 = vmatprep.subr.bf16.mxu0 0
  %2673 = vmatpush1.bf16.msra.mxu0 %v2649
  %2674 = vmatprep.subr.bf16.mxu0 0
  %2675 = vmatpush1.bf16.msra.mxu0 %v2651
  %2676 = vmatprep.subr.bf16.mxu0 0
  %2677 = vmatpush1.bf16.msra.mxu0 %v2653
  %2678 = vmatprep.subr.bf16.mxu0 0
  %2679 = vmatpush1.bf16.msra.mxu0 %v2655
  %2680 = vmatprep.subr.bf16.mxu0 0
  %2681 = vmatpush1.bf16.msra.mxu0 %v2657
  %2682 = vmatprep.subr.bf16.mxu0 0
  %2683 = vmatpush1.bf16.msra.mxu0 0
  %2684 = vmatprep.subr.bf16.mxu0 0
  %2685 = vmatpush1.bf16.msra.mxu0 0
  %2686 = vmatprep.subr.bf16.mxu0 0
  %2687 = vmatpush1.bf16.msra.mxu0 0
  %2688 = vmatprep.subr.bf16.mxu0 0
  %2689 = vmatpush1.bf16.msra.mxu0 0
  %2690 = vmatprep.subr.bf16.mxu0 0
  %2691 = vmatpush1.bf16.msra.mxu0 0
  %2692 = vmatprep.subr.bf16.mxu0 0
  %2693 = vmatpush1.bf16.msra.mxu0 0
  %2694 = vmatprep.subr.bf16.mxu0 0
  %2695 = vmatpush1.bf16.msra.mxu0 0
  %2696 = vmatprep.subr.bf16.mxu0 0
  %2697 = vmatpush1.bf16.msra.mxu0 0
  %2698 = vmatprep.mubr.bf16.mxu0 0
  %2699 = vmatmul.mubr.bf16.gmra.mrb[0].mxu0 %v2634
  %v2700 = vpop.f32.mrb[0].mxu0
  %v2701 = vadd.f32 0.0, %v2700
  %v2702 = vpop.f32.mrb[0].mxu0
  %v2703 = vpop.f32.mrb[0].mxu0
  %v2704 = vadd.f32 0.0, %v2703
  %v2705 = vpop.f32.mrb[0].mxu0
  %2706 = vmatprep.mubr.bf16.mxu0 0
  %2707 = vmatmul.mubr.bf16.gmra.mrb[0].mxu0 %v2635
  %v2708 = vpop.f32.mrb[0].mxu0
  %v2709 = vadd.f32 0.0, %v2708
  %v2710 = vpop.f32.mrb[0].mxu0
  %v2711 = vpop.f32.mrb[0].mxu0
  %v2712 = vadd.f32 0.0, %v2711
  %v2713 = vpop.f32.mrb[0].mxu0
  %2714 = vmatprep.mubr.bf16.mxu0 0
  %2715 = vmatmul.mubr.bf16.gmra.mrb[0].mxu0 %v2636
  %v2716 = vpop.f32.mrb[0].mxu0
  %v2717 = vadd.f32 0.0, %v2716
  %v2718 = vpop.f32.mrb[0].mxu0
  %v2719 = vpop.f32.mrb[0].mxu0
  %v2720 = vadd.f32 0.0, %v2719
  %v2721 = vpop.f32.mrb[0].mxu0
  %2722 = vmatprep.mubr.bf16.mxu0 0
  %2723 = vmatmul.mubr.bf16.gmra.mrb[0].mxu0 %v2637
  %v2724 = vpop.f32.mrb[0].mxu0
  %v2725 = vadd.f32 0.0, %v2724
  %v2726 = vpop.f32.mrb[0].mxu0
  %v2727 = vpop.f32.mrb[0].mxu0
  %v2728 = vadd.f32 0.0, %v2727
  %v2729 = vpop.f32.mrb[0].mxu0
  %2730 = vmatprep.mubr.bf16.mxu0 0
  %2731 = vmatmul.mubr.bf16.gmra.mrb[0].mxu0 %v2638
  %v2732 = vpop.f32.mrb[0].mxu0
  %v2733 = vadd.f32 0.0, %v2732
  %v2734 = vpop.f32.mrb[0].mxu0
  %v2735 = vpop.f32.mrb[0].mxu0
  %v2736 = vadd.f32 0.0, %v2735
  %v2737 = vpop.f32.mrb[0].mxu0
  %2738 = vmatprep.mubr.bf16.mxu0 0
  %2739 = vmatmul.mubr.bf16.gmra.mrb[0].mxu0 %v2639
  %v2740 = vpop.f32.mrb[0].mxu0
  %v2741 = vadd.f32 0.0, %v2740
  %v2742 = vpop.f32.mrb[0].mxu0
  %v2743 = vpop.f32.mrb[0].mxu0
  %v2744 = vadd.f32 0.0, %v2743
  %v2745 = vpop.f32.mrb[0].mxu0
  %2746 = vmatprep.mubr.bf16.mxu0 0
  %2747 = vmatmul.mubr.bf16.gmra.mrb[0].mxu0 %v2640
  %v2748 = vpop.f32.mrb[0].mxu0
  %v2749 = vadd.f32 0.0, %v2748
  %v2750 = vpop.f32.mrb[0].mxu0
  %v2751 = vpop.f32.mrb[0].mxu0
  %v2752 = vadd.f32 0.0, %v2751
  %v2753 = vpop.f32.mrb[0].mxu0
  %2754 = vmatprep.mubr.bf16.mxu0 0
  %2755 = vmatmul.mubr.bf16.gmra.mrb[0].mxu0 %v2641
  %v2756 = vpop.f32.mrb[0].mxu0
  %v2757 = vadd.f32 0.0, %v2756
  %v2758 = vpop.f32.mrb[0].mxu0
  %v2759 = vpop.f32.mrb[0].mxu0
  %v2760 = vadd.f32 0.0, %v2759
  %v2761 = vpop.f32.mrb[0].mxu0
  %2762 = vdwg.mxu0
  %v2763 = vpack.c.bf16 %v2704, %v2701
  %v2764 = vpack.c.bf16 %v2712, %v2709
  %v2765 = vpack.c.bf16 %v2720, %v2717
  %v2766 = vpack.c.bf16 %v2728, %v2725
  %v2767 = vpack.c.bf16 %v2736, %v2733
  %v2768 = vpack.c.bf16 %v2744, %v2741
  %v2769 = vpack.c.bf16 %v2752, %v2749
  %v2770 = vpack.c.bf16 %v2760, %v2757
  %v2772 = vsel %vm482, %v2763, 0
  %v2775 = vsel %vm482, %v2764, 0
  %v2778 = vsel %vm482, %v2765, 0
  %v2781 = vsel %vm482, %v2766, 0
  %v2784 = vsel %vm482, %v2767, 0
  %v2787 = vsel %vm482, %v2768, 0
  %v2790 = vsel %vm482, %v2769, 0
  %v2793 = vsel %vm482, %v2770, 0
  %v2796 = vsel %vm1424, %v417, 0
  %2798 = vmatprep.subr.bf16.mxu0 0
  %2799 = vmatpush1.bf16.msra.mxu0 %v2796
  %2800 = vmatprep.subr.bf16.mxu0 0
  %2801 = vmatpush1.bf16.msra.mxu0 0
  %2802 = vmatprep.subr.bf16.mxu0 0
  %2803 = vmatpush1.bf16.msra.mxu0 0
  %2804 = vmatprep.subr.bf16.mxu0 0
  %2805 = vmatpush1.bf16.msra.mxu0 0
  %2806 = vmatprep.subr.bf16.mxu0 0
  %2807 = vmatpush1.bf16.msra.mxu0 0
  %2808 = vmatprep.subr.bf16.mxu0 0
  %2809 = vmatpush1.bf16.msra.mxu0 0
  %2810 = vmatprep.subr.bf16.mxu0 0
  %2811 = vmatpush1.bf16.msra.mxu0 0
  %2812 = vmatprep.subr.bf16.mxu0 0
  %2813 = vmatpush1.bf16.msra.mxu0 0
  %2814 = vmatprep.subr.bf16.mxu0 0
  %2815 = vmatpush1.bf16.msra.mxu0 0
  %2816 = vmatprep.subr.bf16.mxu0 0
  %2817 = vmatpush1.bf16.msra.mxu0 0
  %2818 = vmatprep.subr.bf16.mxu0 0
  %2819 = vmatpush1.bf16.msra.mxu0 0
  %2820 = vmatprep.subr.bf16.mxu0 0
  %2821 = vmatpush1.bf16.msra.mxu0 0
  %2822 = vmatprep.subr.bf16.mxu0 0
  %2823 = vmatpush1.bf16.msra.mxu0 0
  %2824 = vmatprep.subr.bf16.mxu0 0
  %2825 = vmatpush1.bf16.msra.mxu0 0
  %2826 = vmatprep.subr.bf16.mxu0 0
  %2827 = vmatpush1.bf16.msra.mxu0 0
  %2828 = vmatprep.subr.bf16.mxu0 0
  %2829 = vmatpush1.bf16.msra.mxu0 0
  %2830 = vmatprep.mubr.bf16.mxu0 0
  %2831 = vmatmul.mubr.bf16.gmra.mrb[0].mxu0 %v2772
  %v2832 = vpop.f32.mrb[0].mxu0
  %v2833 = vadd.f32 0.0, %v2832
  %v2834 = vpop.f32.mrb[0].mxu0
  %v2835 = vpop.f32.mrb[0].mxu0
  %v2836 = vadd.f32 0.0, %v2835
  %v2837 = vpop.f32.mrb[0].mxu0
  %2838 = vmatprep.mubr.bf16.mxu0 0
  %2839 = vmatmul.mubr.bf16.gmra.mrb[0].mxu0 %v2775
  %v2840 = vpop.f32.mrb[0].mxu0
  %v2841 = vadd.f32 0.0, %v2840
  %v2842 = vpop.f32.mrb[0].mxu0
  %v2843 = vpop.f32.mrb[0].mxu0
  %v2844 = vadd.f32 0.0, %v2843
  %v2845 = vpop.f32.mrb[0].mxu0
  %2846 = vmatprep.mubr.bf16.mxu0 0
  %2847 = vmatmul.mubr.bf16.gmra.mrb[0].mxu0 %v2778
  %v2848 = vpop.f32.mrb[0].mxu0
  %v2849 = vadd.f32 0.0, %v2848
  %v2850 = vpop.f32.mrb[0].mxu0
  %v2851 = vpop.f32.mrb[0].mxu0
  %v2852 = vadd.f32 0.0, %v2851
  %v2853 = vpop.f32.mrb[0].mxu0
  %2854 = vmatprep.mubr.bf16.mxu0 0
  %2855 = vmatmul.mubr.bf16.gmra.mrb[0].mxu0 %v2781
  %v2856 = vpop.f32.mrb[0].mxu0
  %v2857 = vadd.f32 0.0, %v2856
  %v2858 = vpop.f32.mrb[0].mxu0
  %v2859 = vpop.f32.mrb[0].mxu0
  %v2860 = vadd.f32 0.0, %v2859
  %v2861 = vpop.f32.mrb[0].mxu0
  %2862 = vmatprep.mubr.bf16.mxu0 0
  %2863 = vmatmul.mubr.bf16.gmra.mrb[0].mxu0 %v2784
  %v2864 = vpop.f32.mrb[0].mxu0
  %v2865 = vadd.f32 0.0, %v2864
  %v2866 = vpop.f32.mrb[0].mxu0
  %v2867 = vpop.f32.mrb[0].mxu0
  %v2868 = vadd.f32 0.0, %v2867
  %v2869 = vpop.f32.mrb[0].mxu0
  %2870 = vmatprep.mubr.bf16.mxu0 0
  %2871 = vmatmul.mubr.bf16.gmra.mrb[0].mxu0 %v2787
  %v2872 = vpop.f32.mrb[0].mxu0
  %v2873 = vadd.f32 0.0, %v2872
  %v2874 = vpop.f32.mrb[0].mxu0
  %v2875 = vpop.f32.mrb[0].mxu0
  %v2876 = vadd.f32 0.0, %v2875
  %v2877 = vpop.f32.mrb[0].mxu0
  %2878 = vmatprep.mubr.bf16.mxu0 0
  %2879 = vmatmul.mubr.bf16.gmra.mrb[0].mxu0 %v2790
  %v2880 = vpop.f32.mrb[0].mxu0
  %v2881 = vadd.f32 0.0, %v2880
  %v2882 = vpop.f32.mrb[0].mxu0
  %v2883 = vpop.f32.mrb[0].mxu0
  %v2884 = vadd.f32 0.0, %v2883
  %v2885 = vpop.f32.mrb[0].mxu0
  %2886 = vmatprep.mubr.bf16.mxu0 0
  %2887 = vmatmul.mubr.bf16.gmra.mrb[0].mxu0 %v2793
  %v2888 = vpop.f32.mrb[0].mxu0
  %v2889 = vadd.f32 0.0, %v2888
  %v2890 = vpop.f32.mrb[0].mxu0
  %v2891 = vpop.f32.mrb[0].mxu0
  %v2892 = vadd.f32 0.0, %v2891
  %v2893 = vpop.f32.mrb[0].mxu0
  %2894 = vdwg.mxu0
  %v2895 = vadd.f32 %v2264, %v2833
  %v2896 = vadd.f32 %v2265, %v2836
  %v2897 = vadd.f32 %v2266, %v2841
  %v2898 = vadd.f32 %v2267, %v2844
  %v2899 = vadd.f32 %v2268, %v2849
  %v2900 = vadd.f32 %v2269, %v2852
  %v2901 = vadd.f32 %v2270, %v2857
  %v2902 = vadd.f32 %v2271, %v2860
  %v2903 = vadd.f32 %v2272, %v2865
  %v2904 = vadd.f32 %v2273, %v2868
  %v2905 = vadd.f32 %v2274, %v2873
  %v2906 = vadd.f32 %v2275, %v2876
  %v2907 = vadd.f32 %v2276, %v2881
  %v2908 = vadd.f32 %v2277, %v2884
  %v2909 = vadd.f32 %v2278, %v2889
  %v2910 = vadd.f32 %v2279, %v2892
  %v2911 = vadd.f32 %v36, %v2895
  %v2912 = vadd.f32 %v37, %v2896
  %v2913 = vadd.f32 %v38, %v2897
  %v2914 = vadd.f32 %v39, %v2898
  %v2915 = vadd.f32 %v40, %v2899
  %v2916 = vadd.f32 %v41, %v2900
  %v2917 = vadd.f32 %v42, %v2901
  %v2918 = vadd.f32 %v43, %v2902
  %v2919 = vadd.f32 %v44, %v2903
  %v2920 = vadd.f32 %v45, %v2904
  %v2921 = vadd.f32 %v46, %v2905
  %v2922 = vadd.f32 %v47, %v2906
  %v2923 = vadd.f32 %v48, %v2907
  %v2924 = vadd.f32 %v49, %v2908
  %v2925 = vadd.f32 %v50, %v2909
  %v2926 = vadd.f32 %v51, %v2910
  %v2927 = vld [vmem:[%s4] sm:$0x1]
  %v2929 = vlaneseq
  %v2930 = vshrl.u32 %v2929, 7
  %v2931 = vsub.s32 0, %v2930
  %v2932 = vrot.slane %v2927, %v2931
  %v2934 = vadd.f32 %v2911, %v2932
  %v2935 = vadd.f32 %v2912, %v2932
  %v2936 = vadd.f32 %v2913, %v2932
  %v2937 = vadd.f32 %v2914, %v2932
  %v2938 = vadd.f32 %v2915, %v2932
  %v2939 = vadd.f32 %v2916, %v2932
  %v2940 = vadd.f32 %v2917, %v2932
  %v2941 = vadd.f32 %v2918, %v2932
  %v2942 = vadd.f32 %v2919, %v2932
  %v2943 = vadd.f32 %v2920, %v2932
  %v2944 = vadd.f32 %v2921, %v2932
  %v2945 = vadd.f32 %v2922, %v2932
  %v2946 = vadd.f32 %v2923, %v2932
  %v2947 = vadd.f32 %v2924, %v2932
  %v2948 = vadd.f32 %v2925, %v2932
  %v2949 = vadd.f32 %v2926, %v2932
  %v2950 = vsel %vm52, %v2934, 0.0
  %2951 = vadd.xlane.f32.xlu0 %v2950
  %v2952 = vpop.xlane.xlu0 %2951
  %v2953 = vsel %vm52, %v2935, 0.0
  %2954 = vadd.xlane.f32.xlu0 %v2953
  %v2955 = vpop.xlane.xlu0 %2954
  %v2956 = vsel %vm52, %v2936, 0.0
  %2957 = vadd.xlane.f32.xlu0 %v2956
  %v2958 = vpop.xlane.xlu0 %2957
  %v2959 = vsel %vm52, %v2937, 0.0
  %2960 = vadd.xlane.f32.xlu0 %v2959
  %v2961 = vpop.xlane.xlu0 %2960
  %v2962 = vsel %vm52, %v2938, 0.0
  %2963 = vadd.xlane.f32.xlu0 %v2962
  %v2964 = vpop.xlane.xlu0 %2963
  %v2965 = vsel %vm52, %v2939, 0.0
  %2966 = vadd.xlane.f32.xlu0 %v2965
  %v2967 = vpop.xlane.xlu0 %2966
  %v2968 = vsel %vm52, %v2940, 0.0
  %2969 = vadd.xlane.f32.xlu0 %v2968
  %v2970 = vpop.xlane.xlu0 %2969
  %v2971 = vsel %vm52, %v2941, 0.0
  %2972 = vadd.xlane.f32.xlu0 %v2971
  %v2973 = vpop.xlane.xlu0 %2972
  %v2974 = vsel %vm52, %v2942, 0.0
  %2975 = vadd.xlane.f32.xlu0 %v2974
  %v2976 = vpop.xlane.xlu0 %2975
  %v2977 = vsel %vm52, %v2943, 0.0
  %2978 = vadd.xlane.f32.xlu0 %v2977
  %v2979 = vpop.xlane.xlu0 %2978
  %v2980 = vsel %vm52, %v2944, 0.0
  %2981 = vadd.xlane.f32.xlu0 %v2980
  %v2982 = vpop.xlane.xlu0 %2981
  %v2983 = vsel %vm52, %v2945, 0.0
  %2984 = vadd.xlane.f32.xlu0 %v2983
  %v2985 = vpop.xlane.xlu0 %2984
  %v2986 = vsel %vm52, %v2946, 0.0
  %2987 = vadd.xlane.f32.xlu0 %v2986
  %v2988 = vpop.xlane.xlu0 %2987
  %v2989 = vsel %vm52, %v2947, 0.0
  %2990 = vadd.xlane.f32.xlu0 %v2989
  %v2991 = vpop.xlane.xlu0 %2990
  %v2992 = vsel %vm52, %v2948, 0.0
  %2993 = vadd.xlane.f32.xlu0 %v2992
  %v2994 = vpop.xlane.xlu0 %2993
  %v2995 = vsel %vm52, %v2949, 0.0
  %2996 = vadd.xlane.f32.xlu0 %v2995
  %v2997 = vpop.xlane.xlu0 %2996
  %v2998 = vmul.f32 %v2952, %v101
  %v2999 = vmul.f32 %v2955, %v101
  %v3000 = vmul.f32 %v2958, %v101
  %v3001 = vmul.f32 %v2961, %v101
  %v3002 = vmul.f32 %v2964, %v101
  %v3003 = vmul.f32 %v2967, %v101
  %v3004 = vmul.f32 %v2970, %v101
  %v3005 = vmul.f32 %v2973, %v101
  %v3006 = vmul.f32 %v2976, %v101
  %v3007 = vmul.f32 %v2979, %v101
  %v3008 = vmul.f32 %v2982, %v101
  %v3009 = vmul.f32 %v2985, %v101
  %v3010 = vmul.f32 %v2988, %v101
  %v3011 = vmul.f32 %v2991, %v101
  %v3012 = vmul.f32 %v2994, %v101
  %v3013 = vmul.f32 %v2997, %v101
  %v3014 = vsub.f32 %v2934, %v2998
  %v3015 = vsub.f32 %v2935, %v2999
  %v3016 = vsub.f32 %v2936, %v3000
  %v3017 = vsub.f32 %v2937, %v3001
  %v3018 = vsub.f32 %v2938, %v3002
  %v3019 = vsub.f32 %v2939, %v3003
  %v3020 = vsub.f32 %v2940, %v3004
  %v3021 = vsub.f32 %v2941, %v3005
  %v3022 = vsub.f32 %v2942, %v3006
  %v3023 = vsub.f32 %v2943, %v3007
  %v3024 = vsub.f32 %v2944, %v3008
  %v3025 = vsub.f32 %v2945, %v3009
  %v3026 = vsub.f32 %v2946, %v3010
  %v3027 = vsub.f32 %v2947, %v3011
  %v3028 = vsub.f32 %v2948, %v3012
  %v3029 = vsub.f32 %v2949, %v3013
  %v3030 = vmul.f32 %v3014, %v3014
  %v3031 = vmul.f32 %v3015, %v3015
  %v3032 = vmul.f32 %v3016, %v3016
  %v3033 = vmul.f32 %v3017, %v3017
  %v3034 = vmul.f32 %v3018, %v3018
  %v3035 = vmul.f32 %v3019, %v3019
  %v3036 = vmul.f32 %v3020, %v3020
  %v3037 = vmul.f32 %v3021, %v3021
  %v3038 = vmul.f32 %v3022, %v3022
  %v3039 = vmul.f32 %v3023, %v3023
  %v3040 = vmul.f32 %v3024, %v3024
  %v3041 = vmul.f32 %v3025, %v3025
  %v3042 = vmul.f32 %v3026, %v3026
  %v3043 = vmul.f32 %v3027, %v3027
  %v3044 = vmul.f32 %v3028, %v3028
  %v3045 = vmul.f32 %v3029, %v3029
  %v3046 = vsel %vm52, %v3030, 0.0
  %3047 = vadd.xlane.f32.xlu0 %v3046
  %v3048 = vpop.xlane.xlu0 %3047
  %v3049 = vsel %vm52, %v3031, 0.0
  %3050 = vadd.xlane.f32.xlu0 %v3049
  %v3051 = vpop.xlane.xlu0 %3050
  %v3052 = vsel %vm52, %v3032, 0.0
  %3053 = vadd.xlane.f32.xlu0 %v3052
  %v3054 = vpop.xlane.xlu0 %3053
  %v3055 = vsel %vm52, %v3033, 0.0
  %3056 = vadd.xlane.f32.xlu0 %v3055
  %v3057 = vpop.xlane.xlu0 %3056
  %v3058 = vsel %vm52, %v3034, 0.0
  %3059 = vadd.xlane.f32.xlu0 %v3058
  %v3060 = vpop.xlane.xlu0 %3059
  %v3061 = vsel %vm52, %v3035, 0.0
  %3062 = vadd.xlane.f32.xlu0 %v3061
  %v3063 = vpop.xlane.xlu0 %3062
  %v3064 = vsel %vm52, %v3036, 0.0
  %3065 = vadd.xlane.f32.xlu0 %v3064
  %v3066 = vpop.xlane.xlu0 %3065
  %v3067 = vsel %vm52, %v3037, 0.0
  %3068 = vadd.xlane.f32.xlu0 %v3067
  %v3069 = vpop.xlane.xlu0 %3068
  %v3070 = vsel %vm52, %v3038, 0.0
  %3071 = vadd.xlane.f32.xlu0 %v3070
  %v3072 = vpop.xlane.xlu0 %3071
  %v3073 = vsel %vm52, %v3039, 0.0
  %3074 = vadd.xlane.f32.xlu0 %v3073
  %v3075 = vpop.xlane.xlu0 %3074
  %v3076 = vsel %vm52, %v3040, 0.0
  %3077 = vadd.xlane.f32.xlu0 %v3076
  %v3078 = vpop.xlane.xlu0 %3077
  %v3079 = vsel %vm52, %v3041, 0.0
  %3080 = vadd.xlane.f32.xlu0 %v3079
  %v3081 = vpop.xlane.xlu0 %3080
  %v3082 = vsel %vm52, %v3042, 0.0
  %3083 = vadd.xlane.f32.xlu0 %v3082
  %v3084 = vpop.xlane.xlu0 %3083
  %v3085 = vsel %vm52, %v3043, 0.0
  %3086 = vadd.xlane.f32.xlu0 %v3085
  %v3087 = vpop.xlane.xlu0 %3086
  %v3088 = vsel %vm52, %v3044, 0.0
  %3089 = vadd.xlane.f32.xlu0 %v3088
  %v3090 = vpop.xlane.xlu0 %3089
  %v3091 = vsel %vm52, %v3045, 0.0
  %3092 = vadd.xlane.f32.xlu0 %v3091
  %v3093 = vpop.xlane.xlu0 %3092
  %v3094 = vmul.f32 %v3048, %v101
  %v3095 = vmul.f32 %v3051, %v101
  %v3096 = vmul.f32 %v3054, %v101
  %v3097 = vmul.f32 %v3057, %v101
  %v3098 = vmul.f32 %v3060, %v101
  %v3099 = vmul.f32 %v3063, %v101
  %v3100 = vmul.f32 %v3066, %v101
  %v3101 = vmul.f32 %v3069, %v101
  %v3102 = vmul.f32 %v3072, %v101
  %v3103 = vmul.f32 %v3075, %v101
  %v3104 = vmul.f32 %v3078, %v101
  %v3105 = vmul.f32 %v3081, %v101
  %v3106 = vmul.f32 %v3084, %v101
  %v3107 = vmul.f32 %v3087, %v101
  %v3108 = vmul.f32 %v3090, %v101
  %v3109 = vmul.f32 %v3093, %v101
  %v3110 = vadd.f32 %v3094, 1e-05
  %v3111 = vadd.f32 %v3095, 1e-05
  %v3112 = vadd.f32 %v3096, 1e-05
  %v3113 = vadd.f32 %v3097, 1e-05
  %v3114 = vadd.f32 %v3098, 1e-05
  %v3115 = vadd.f32 %v3099, 1e-05
  %v3116 = vadd.f32 %v3100, 1e-05
  %v3117 = vadd.f32 %v3101, 1e-05
  %v3118 = vadd.f32 %v3102, 1e-05
  %v3119 = vadd.f32 %v3103, 1e-05
  %v3120 = vadd.f32 %v3104, 1e-05
  %v3121 = vadd.f32 %v3105, 1e-05
  %v3122 = vadd.f32 %v3106, 1e-05
  %v3123 = vadd.f32 %v3107, 1e-05
  %v3124 = vadd.f32 %v3108, 1e-05
  %v3125 = vadd.f32 %v3109, 1e-05
  %v3126 = vrsqrt.pop %v3110
  %v3127 = vrsqrt.pop %v3111
  %v3128 = vrsqrt.pop %v3112
  %v3129 = vrsqrt.pop %v3113
  %v3130 = vrsqrt.pop %v3114
  %v3131 = vrsqrt.pop %v3115
  %v3132 = vrsqrt.pop %v3116
  %v3133 = vrsqrt.pop %v3117
  %v3134 = vrsqrt.pop %v3118
  %v3135 = vrsqrt.pop %v3119
  %v3136 = vrsqrt.pop %v3120
  %v3137 = vrsqrt.pop %v3121
  %v3138 = vrsqrt.pop %v3122
  %v3139 = vrsqrt.pop %v3123
  %v3140 = vrsqrt.pop %v3124
  %v3141 = vrsqrt.pop %v3125
  %v3142 = vmul.f32 %v3014, %v3126
  %v3143 = vmul.f32 %v3015, %v3127
  %v3144 = vmul.f32 %v3016, %v3128
  %v3145 = vmul.f32 %v3017, %v3129
  %v3146 = vmul.f32 %v3018, %v3130
  %v3147 = vmul.f32 %v3019, %v3131
  %v3148 = vmul.f32 %v3020, %v3132
  %v3149 = vmul.f32 %v3021, %v3133
  %v3150 = vmul.f32 %v3022, %v3134
  %v3151 = vmul.f32 %v3023, %v3135
  %v3152 = vmul.f32 %v3024, %v3136
  %v3153 = vmul.f32 %v3025, %v3137
  %v3154 = vmul.f32 %v3026, %v3138
  %v3155 = vmul.f32 %v3027, %v3139
  %v3156 = vmul.f32 %v3028, %v3140
  %v3157 = vmul.f32 %v3029, %v3141
  %v3158 = vpack.c.bf16 %v3143, %v3142
  %v3159 = vpack.c.bf16 %v3145, %v3144
  %v3160 = vpack.c.bf16 %v3147, %v3146
  %v3161 = vpack.c.bf16 %v3149, %v3148
  %v3162 = vpack.c.bf16 %v3151, %v3150
  %v3163 = vpack.c.bf16 %v3153, %v3152
  %v3164 = vpack.c.bf16 %v3155, %v3154
  %v3165 = vpack.c.bf16 %v3157, %v3156
  %v3166 = vld [vmem:[%s6] sm:$0xf]
  %v3167 = vld [vmem:[%s6 + $0x4] sm:$0xf]
  %v3168 = vld [vmem:[%s6 + $0x8] sm:$0xf]
  %v3169 = vld [vmem:[%s6 + $0xc] sm:$0xf]
  %v3170 = vld [vmem:[%s7] sm:$0x1]
  %v3172 = vlaneseq
  %v3173 = vshrl.u32 %v3172, 7
  %v3174 = vsub.s32 0, %v3173
  %v3175 = vrot.slane %v3170, %v3174
  %v3181 = vunpack.c.l.b16 %v3166
  %v3182 = vunpack.c.l.b16 %v3167
  %v3183 = vunpack.c.l.b16 %v3168
  %v3184 = vunpack.c.l.b16 %v3169
  %v3185 = vpack.c.b16 %v3182, %v3181
  %v3186 = vpack.c.b16 %v3184, %v3183
  %v3190 = vsel %vm52, %v3158, 0
  %v3193 = vsel %vm52, %v3159, 0
  %v3196 = vsel %vm52, %v3160, 0
  %v3199 = vsel %vm52, %v3161, 0
  %v3202 = vsel %vm52, %v3162, 0
  %v3205 = vsel %vm52, %v3163, 0
  %v3208 = vsel %vm52, %v3164, 0
  %v3211 = vsel %vm52, %v3165, 0
  %3213 = vmatprep.subr.bf16.mxu0 0
  %3214 = vmatpush1.bf16.msra.mxu0 %v3185
  %3215 = vmatprep.subr.bf16.mxu0 0
  %3216 = vmatpush1.bf16.msra.mxu0 %v3186
  %3217 = vmatprep.subr.bf16.mxu0 0
  %3218 = vmatpush1.bf16.msra.mxu0 0
  %3219 = vmatprep.subr.bf16.mxu0 0
  %3220 = vmatpush1.bf16.msra.mxu0 0
  %3221 = vmatprep.subr.bf16.mxu0 0
  %3222 = vmatpush1.bf16.msra.mxu0 0
  %3223 = vmatprep.subr.bf16.mxu0 0
  %3224 = vmatpush1.bf16.msra.mxu0 0
  %3225 = vmatprep.subr.bf16.mxu0 0
  %3226 = vmatpush1.bf16.msra.mxu0 0
  %3227 = vmatprep.subr.bf16.mxu0 0
  %3228 = vmatpush1.bf16.msra.mxu0 0
  %3229 = vmatprep.subr.bf16.mxu0 0
  %3230 = vmatpush1.bf16.msra.mxu0 0
  %3231 = vmatprep.subr.bf16.mxu0 0
  %3232 = vmatpush1.bf16.msra.mxu0 0
  %3233 = vmatprep.subr.bf16.mxu0 0
  %3234 = vmatpush1.bf16.msra.mxu0 0
  %3235 = vmatprep.subr.bf16.mxu0 0
  %3236 = vmatpush1.bf16.msra.mxu0 0
  %3237 = vmatprep.subr.bf16.mxu0 0
  %3238 = vmatpush1.bf16.msra.mxu0 0
  %3239 = vmatprep.subr.bf16.mxu0 0
  %3240 = vmatpush1.bf16.msra.mxu0 0
  %3241 = vmatprep.subr.bf16.mxu0 0
  %3242 = vmatpush1.bf16.msra.mxu0 0
  %3243 = vmatprep.subr.bf16.mxu0 0
  %3244 = vmatpush1.bf16.msra.mxu0 0
  %3245 = vmatprep.mubr.bf16.mxu0 0
  %3246 = vmatmul.mubr.bf16.gmra.mrb[0].mxu0 %v3190
  %v3247 = vpop.f32.mrb[0].mxu0
  %v3248 = vadd.f32 %v3175, %v3247
  %v3249 = vpop.f32.mrb[0].mxu0
  %v3250 = vpop.f32.mrb[0].mxu0
  %v3251 = vadd.f32 %v3175, %v3250
  %v3252 = vpop.f32.mrb[0].mxu0
  %3253 = vmatprep.mubr.bf16.mxu0 0
  %3254 = vmatmul.mubr.bf16.gmra.mrb[0].mxu0 %v3193
  %v3255 = vpop.f32.mrb[0].mxu0
  %v3256 = vadd.f32 %v3175, %v3255
  %v3257 = vpop.f32.mrb[0].mxu0
  %v3258 = vpop.f32.mrb[0].mxu0
  %v3259 = vadd.f32 %v3175, %v3258
  %v3260 = vpop.f32.mrb[0].mxu0
  %3261 = vmatprep.mubr.bf16.mxu0 0
  %3262 = vmatmul.mubr.bf16.gmra.mrb[0].mxu0 %v3196
  %v3263 = vpop.f32.mrb[0].mxu0
  %v3264 = vadd.f32 %v3175, %v3263
  %v3265 = vpop.f32.mrb[0].mxu0
  %v3266 = vpop.f32.mrb[0].mxu0
  %v3267 = vadd.f32 %v3175, %v3266
  %v3268 = vpop.f32.mrb[0].mxu0
  %3269 = vmatprep.mubr.bf16.mxu0 0
  %3270 = vmatmul.mubr.bf16.gmra.mrb[0].mxu0 %v3199
  %v3271 = vpop.f32.mrb[0].mxu0
  %v3272 = vadd.f32 %v3175, %v3271
  %v3273 = vpop.f32.mrb[0].mxu0
  %v3274 = vpop.f32.mrb[0].mxu0
  %v3275 = vadd.f32 %v3175, %v3274
  %v3276 = vpop.f32.mrb[0].mxu0
  %3277 = vmatprep.mubr.bf16.mxu0 0
  %3278 = vmatmul.mubr.bf16.gmra.mrb[0].mxu0 %v3202
  %v3279 = vpop.f32.mrb[0].mxu0
  %v3280 = vadd.f32 %v3175, %v3279
  %v3281 = vpop.f32.mrb[0].mxu0
  %v3282 = vpop.f32.mrb[0].mxu0
  %v3283 = vadd.f32 %v3175, %v3282
  %v3284 = vpop.f32.mrb[0].mxu0
  %3285 = vmatprep.mubr.bf16.mxu0 0
  %3286 = vmatmul.mubr.bf16.gmra.mrb[0].mxu0 %v3205
  %v3287 = vpop.f32.mrb[0].mxu0
  %v3288 = vadd.f32 %v3175, %v3287
  %v3289 = vpop.f32.mrb[0].mxu0
  %v3290 = vpop.f32.mrb[0].mxu0
  %v3291 = vadd.f32 %v3175, %v3290
  %v3292 = vpop.f32.mrb[0].mxu0
  %3293 = vmatprep.mubr.bf16.mxu0 0
  %3294 = vmatmul.mubr.bf16.gmra.mrb[0].mxu0 %v3208
  %v3295 = vpop.f32.mrb[0].mxu0
  %v3296 = vadd.f32 %v3175, %v3295
  %v3297 = vpop.f32.mrb[0].mxu0
  %v3298 = vpop.f32.mrb[0].mxu0
  %v3299 = vadd.f32 %v3175, %v3298
  %v3300 = vpop.f32.mrb[0].mxu0
  %3301 = vmatprep.mubr.bf16.mxu0 0
  %3302 = vmatmul.mubr.bf16.gmra.mrb[0].mxu0 %v3211
  %v3303 = vpop.f32.mrb[0].mxu0
  %v3304 = vadd.f32 %v3175, %v3303
  %v3305 = vpop.f32.mrb[0].mxu0
  %v3306 = vpop.f32.mrb[0].mxu0
  %v3307 = vadd.f32 %v3175, %v3306
  %v3308 = vpop.f32.mrb[0].mxu0
  %3309 = vdwg.mxu0
  %v3310 = vmul.f32 %v3248, 0.5
  %v3311 = vmul.f32 %v3251, 0.5
  %v3312 = vmul.f32 %v3256, 0.5
  %v3313 = vmul.f32 %v3259, 0.5
  %v3314 = vmul.f32 %v3264, 0.5
  %v3315 = vmul.f32 %v3267, 0.5
  %v3316 = vmul.f32 %v3272, 0.5
  %v3317 = vmul.f32 %v3275, 0.5
  %v3318 = vmul.f32 %v3280, 0.5
  %v3319 = vmul.f32 %v3283, 0.5
  %v3320 = vmul.f32 %v3288, 0.5
  %v3321 = vmul.f32 %v3291, 0.5
  %v3322 = vmul.f32 %v3296, 0.5
  %v3323 = vmul.f32 %v3299, 0.5
  %v3324 = vmul.f32 %v3304, 0.5
  %v3325 = vmul.f32 %v3307, 0.5
  %v3326 = vmul.f32 %v3248, 0.044715
  %v3327 = vmul.f32 %v3251, 0.044715
  %v3328 = vmul.f32 %v3256, 0.044715
  %v3329 = vmul.f32 %v3259, 0.044715
  %v3330 = vmul.f32 %v3264, 0.044715
  %v3331 = vmul.f32 %v3267, 0.044715
  %v3332 = vmul.f32 %v3272, 0.044715
  %v3333 = vmul.f32 %v3275, 0.044715
  %v3334 = vmul.f32 %v3280, 0.044715
  %v3335 = vmul.f32 %v3283, 0.044715
  %v3336 = vmul.f32 %v3288, 0.044715
  %v3337 = vmul.f32 %v3291, 0.044715
  %v3338 = vmul.f32 %v3296, 0.044715
  %v3339 = vmul.f32 %v3299, 0.044715
  %v3340 = vmul.f32 %v3304, 0.044715
  %v3341 = vmul.f32 %v3307, 0.044715
  %v3342 = vmul.f32 %v3326, %v3248
  %v3343 = vmul.f32 %v3327, %v3251
  %v3344 = vmul.f32 %v3328, %v3256
  %v3345 = vmul.f32 %v3329, %v3259
  %v3346 = vmul.f32 %v3330, %v3264
  %v3347 = vmul.f32 %v3331, %v3267
  %v3348 = vmul.f32 %v3332, %v3272
  %v3349 = vmul.f32 %v3333, %v3275
  %v3350 = vmul.f32 %v3334, %v3280
  %v3351 = vmul.f32 %v3335, %v3283
  %v3352 = vmul.f32 %v3336, %v3288
  %v3353 = vmul.f32 %v3337, %v3291
  %v3354 = vmul.f32 %v3338, %v3296
  %v3355 = vmul.f32 %v3339, %v3299
  %v3356 = vmul.f32 %v3340, %v3304
  %v3357 = vmul.f32 %v3341, %v3307
  %v3358 = vmul.f32 %v3342, %v3248
  %v3359 = vmul.f32 %v3343, %v3251
  %v3360 = vmul.f32 %v3344, %v3256
  %v3361 = vmul.f32 %v3345, %v3259
  %v3362 = vmul.f32 %v3346, %v3264
  %v3363 = vmul.f32 %v3347, %v3267
  %v3364 = vmul.f32 %v3348, %v3272
  %v3365 = vmul.f32 %v3349, %v3275
  %v3366 = vmul.f32 %v3350, %v3280
  %v3367 = vmul.f32 %v3351, %v3283
  %v3368 = vmul.f32 %v3352, %v3288
  %v3369 = vmul.f32 %v3353, %v3291
  %v3370 = vmul.f32 %v3354, %v3296
  %v3371 = vmul.f32 %v3355, %v3299
  %v3372 = vmul.f32 %v3356, %v3304
  %v3373 = vmul.f32 %v3357, %v3307
  %v3374 = vadd.f32 %v3248, %v3358
  %v3375 = vadd.f32 %v3251, %v3359
  %v3376 = vadd.f32 %v3256, %v3360
  %v3377 = vadd.f32 %v3259, %v3361
  %v3378 = vadd.f32 %v3264, %v3362
  %v3379 = vadd.f32 %v3267, %v3363
  %v3380 = vadd.f32 %v3272, %v3364
  %v3381 = vadd.f32 %v3275, %v3365
  %v3382 = vadd.f32 %v3280, %v3366
  %v3383 = vadd.f32 %v3283, %v3367
  %v3384 = vadd.f32 %v3288, %v3368
  %v3385 = vadd.f32 %v3291, %v3369
  %v3386 = vadd.f32 %v3296, %v3370
  %v3387 = vadd.f32 %v3299, %v3371
  %v3388 = vadd.f32 %v3304, %v3372
  %v3389 = vadd.f32 %v3307, %v3373
  %v3390 = vmul.f32 %v3374, 0.7978846
  %v3391 = vmul.f32 %v3375, 0.7978846
  %v3392 = vmul.f32 %v3376, 0.7978846
  %v3393 = vmul.f32 %v3377, 0.7978846
  %v3394 = vmul.f32 %v3378, 0.7978846
  %v3395 = vmul.f32 %v3379, 0.7978846
  %v3396 = vmul.f32 %v3380, 0.7978846
  %v3397 = vmul.f32 %v3381, 0.7978846
  %v3398 = vmul.f32 %v3382, 0.7978846
  %v3399 = vmul.f32 %v3383, 0.7978846
  %v3400 = vmul.f32 %v3384, 0.7978846
  %v3401 = vmul.f32 %v3385, 0.7978846
  %v3402 = vmul.f32 %v3386, 0.7978846
  %v3403 = vmul.f32 %v3387, 0.7978846
  %v3404 = vmul.f32 %v3388, 0.7978846
  %v3405 = vmul.f32 %v3389, 0.7978846
  %v3406 = vtanh.pop %v3390
  %v3407 = vtanh.pop %v3391
  %v3408 = vtanh.pop %v3392
  %v3409 = vtanh.pop %v3393
  %v3410 = vtanh.pop %v3394
  %v3411 = vtanh.pop %v3395
  %v3412 = vtanh.pop %v3396
  %v3413 = vtanh.pop %v3397
  %v3414 = vtanh.pop %v3398
  %v3415 = vtanh.pop %v3399
  %v3416 = vtanh.pop %v3400
  %v3417 = vtanh.pop %v3401
  %v3418 = vtanh.pop %v3402
  %v3419 = vtanh.pop %v3403
  %v3420 = vtanh.pop %v3404
  %v3421 = vtanh.pop %v3405
  %v3422 = vadd.f32 %v3406, 1.0
  %v3423 = vadd.f32 %v3407, 1.0
  %v3424 = vadd.f32 %v3408, 1.0
  %v3425 = vadd.f32 %v3409, 1.0
  %v3426 = vadd.f32 %v3410, 1.0
  %v3427 = vadd.f32 %v3411, 1.0
  %v3428 = vadd.f32 %v3412, 1.0
  %v3429 = vadd.f32 %v3413, 1.0
  %v3430 = vadd.f32 %v3414, 1.0
  %v3431 = vadd.f32 %v3415, 1.0
  %v3432 = vadd.f32 %v3416, 1.0
  %v3433 = vadd.f32 %v3417, 1.0
  %v3434 = vadd.f32 %v3418, 1.0
  %v3435 = vadd.f32 %v3419, 1.0
  %v3436 = vadd.f32 %v3420, 1.0
  %v3437 = vadd.f32 %v3421, 1.0
  %v3438 = vmul.f32 %v3310, %v3422
  %v3439 = vmul.f32 %v3311, %v3423
  %v3440 = vmul.f32 %v3312, %v3424
  %v3441 = vmul.f32 %v3313, %v3425
  %v3442 = vmul.f32 %v3314, %v3426
  %v3443 = vmul.f32 %v3315, %v3427
  %v3444 = vmul.f32 %v3316, %v3428
  %v3445 = vmul.f32 %v3317, %v3429
  %v3446 = vmul.f32 %v3318, %v3430
  %v3447 = vmul.f32 %v3319, %v3431
  %v3448 = vmul.f32 %v3320, %v3432
  %v3449 = vmul.f32 %v3321, %v3433
  %v3450 = vmul.f32 %v3322, %v3434
  %v3451 = vmul.f32 %v3323, %v3435
  %v3452 = vmul.f32 %v3324, %v3436
  %v3453 = vmul.f32 %v3325, %v3437
  %v3454 = vpack.c.bf16 %v3439, %v3438
  %v3455 = vpack.c.bf16 %v3441, %v3440
  %v3456 = vpack.c.bf16 %v3443, %v3442
  %v3457 = vpack.c.bf16 %v3445, %v3444
  %v3458 = vpack.c.bf16 %v3447, %v3446
  %v3459 = vpack.c.bf16 %v3449, %v3448
  %v3460 = vpack.c.bf16 %v3451, %v3450
  %v3461 = vpack.c.bf16 %v3453, %v3452
  %v3462 = vld [vmem:[%s8] sm:$0xf]
  %v3463 = vld [vmem:[%s8 + $0x4] sm:$0xf]
  %v3464 = vld [vmem:[%s8 + $0x8] sm:$0xf]
  %v3465 = vld [vmem:[%s8 + $0xc] sm:$0xf]
  %v3466 = vld [vmem:[%s8 + $0x10] sm:$0xf]
  %v3467 = vld [vmem:[%s8 + $0x14] sm:$0xf]
  %v3468 = vld [vmem:[%s8 + $0x18] sm:$0xf]
  %v3469 = vld [vmem:[%s8 + $0x1c] sm:$0xf]
  %v3470 = vld [vmem:[%s8 + $0x20] sm:$0xf]
  %v3471 = vld [vmem:[%s8 + $0x24] sm:$0xf]
  %v3472 = vld [vmem:[%s8 + $0x28] sm:$0xf]
  %v3473 = vld [vmem:[%s8 + $0x2c] sm:$0xf]
  %v3474 = vld [vmem:[%s8 + $0x30] sm:$0xf]
  %v3475 = vld [vmem:[%s8 + $0x34] sm:$0xf]
  %v3476 = vld [vmem:[%s8 + $0x38] sm:$0xf]
  %v3477 = vld [vmem:[%s8 + $0x3c] sm:$0xf]
  %v3478 = vld [vmem:[%s9] sm:$0x1]
  %v3480 = vlaneseq
  %v3481 = vshrl.u32 %v3480, 7
  %v3482 = vsub.s32 0, %v3481
  %v3483 = vrot.slane %v3478, %v3482
  %v3501 = vunpack.c.l.b16 %v3462
  %v3502 = vunpack.c.l.b16 %v3463
  %v3503 = vunpack.c.l.b16 %v3464
  %v3504 = vunpack.c.l.b16 %v3465
  %v3505 = vunpack.c.l.b16 %v3466
  %v3506 = vunpack.c.l.b16 %v3467
  %v3507 = vunpack.c.l.b16 %v3468
  %v3508 = vunpack.c.l.b16 %v3469
  %v3509 = vunpack.c.l.b16 %v3470
  %v3510 = vunpack.c.l.b16 %v3471
  %v3511 = vunpack.c.l.b16 %v3472
  %v3512 = vunpack.c.l.b16 %v3473
  %v3513 = vunpack.c.l.b16 %v3474
  %v3514 = vunpack.c.l.b16 %v3475
  %v3515 = vunpack.c.l.b16 %v3476
  %v3516 = vunpack.c.l.b16 %v3477
  %v3517 = vpack.c.b16 %v3502, %v3501
  %v3518 = vpack.c.b16 %v3504, %v3503
  %v3519 = vpack.c.b16 %v3506, %v3505
  %v3520 = vpack.c.b16 %v3508, %v3507
  %v3521 = vpack.c.b16 %v3510, %v3509
  %v3522 = vpack.c.b16 %v3512, %v3511
  %v3523 = vpack.c.b16 %v3514, %v3513
  %v3524 = vpack.c.b16 %v3516, %v3515
  %3533 = vmatprep.subr.bf16.mxu0 0
  %3534 = vmatpush1.bf16.msra.mxu0 %v3517
  %3535 = vmatprep.subr.bf16.mxu0 0
  %3536 = vmatpush1.bf16.msra.mxu0 %v3518
  %3537 = vmatprep.subr.bf16.mxu0 0
  %3538 = vmatpush1.bf16.msra.mxu0 %v3519
  %3539 = vmatprep.subr.bf16.mxu0 0
  %3540 = vmatpush1.bf16.msra.mxu0 %v3520
  %3541 = vmatprep.subr.bf16.mxu0 0
  %3542 = vmatpush1.bf16.msra.mxu0 %v3521
  %3543 = vmatprep.subr.bf16.mxu0 0
  %3544 = vmatpush1.bf16.msra.mxu0 %v3522
  %3545 = vmatprep.subr.bf16.mxu0 0
  %3546 = vmatpush1.bf16.msra.mxu0 %v3523
  %3547 = vmatprep.subr.bf16.mxu0 0
  %3548 = vmatpush1.bf16.msra.mxu0 %v3524
  %3549 = vmatprep.subr.bf16.mxu0 0
  %3550 = vmatpush1.bf16.msra.mxu0 0
  %3551 = vmatprep.subr.bf16.mxu0 0
  %3552 = vmatpush1.bf16.msra.mxu0 0
  %3553 = vmatprep.subr.bf16.mxu0 0
  %3554 = vmatpush1.bf16.msra.mxu0 0
  %3555 = vmatprep.subr.bf16.mxu0 0
  %3556 = vmatpush1.bf16.msra.mxu0 0
  %3557 = vmatprep.subr.bf16.mxu0 0
  %3558 = vmatpush1.bf16.msra.mxu0 0
  %3559 = vmatprep.subr.bf16.mxu0 0
  %3560 = vmatpush1.bf16.msra.mxu0 0
  %3561 = vmatprep.subr.bf16.mxu0 0
  %3562 = vmatpush1.bf16.msra.mxu0 0
  %3563 = vmatprep.subr.bf16.mxu0 0
  %3564 = vmatpush1.bf16.msra.mxu0 0
  %3565 = vmatprep.mubr.bf16.mxu0 0
  %3566 = vmatmul.mubr.bf16.gmra.mrb[0].mxu0 %v3454
  %v3567 = vpop.f32.mrb[0].mxu0
  %v3568 = vadd.f32 %v3483, %v3567
  %v3569 = vpop.f32.mrb[0].mxu0
  %v3570 = vpop.f32.mrb[0].mxu0
  %v3571 = vadd.f32 %v3483, %v3570
  %v3572 = vpop.f32.mrb[0].mxu0
  %3573 = vmatprep.mubr.bf16.mxu0 0
  %3574 = vmatmul.mubr.bf16.gmra.mrb[0].mxu0 %v3455
  %v3575 = vpop.f32.mrb[0].mxu0
  %v3576 = vadd.f32 %v3483, %v3575
  %v3577 = vpop.f32.mrb[0].mxu0
  %v3578 = vpop.f32.mrb[0].mxu0
  %v3579 = vadd.f32 %v3483, %v3578
  %v3580 = vpop.f32.mrb[0].mxu0
  %3581 = vmatprep.mubr.bf16.mxu0 0
  %3582 = vmatmul.mubr.bf16.gmra.mrb[0].mxu0 %v3456
  %v3583 = vpop.f32.mrb[0].mxu0
  %v3584 = vadd.f32 %v3483, %v3583
  %v3585 = vpop.f32.mrb[0].mxu0
  %v3586 = vpop.f32.mrb[0].mxu0
  %v3587 = vadd.f32 %v3483, %v3586
  %v3588 = vpop.f32.mrb[0].mxu0
  %3589 = vmatprep.mubr.bf16.mxu0 0
  %3590 = vmatmul.mubr.bf16.gmra.mrb[0].mxu0 %v3457
  %v3591 = vpop.f32.mrb[0].mxu0
  %v3592 = vadd.f32 %v3483, %v3591
  %v3593 = vpop.f32.mrb[0].mxu0
  %v3594 = vpop.f32.mrb[0].mxu0
  %v3595 = vadd.f32 %v3483, %v3594
  %v3596 = vpop.f32.mrb[0].mxu0
  %3597 = vmatprep.mubr.bf16.mxu0 0
  %3598 = vmatmul.mubr.bf16.gmra.mrb[0].mxu0 %v3458
  %v3599 = vpop.f32.mrb[0].mxu0
  %v3600 = vadd.f32 %v3483, %v3599
  %v3601 = vpop.f32.mrb[0].mxu0
  %v3602 = vpop.f32.mrb[0].mxu0
  %v3603 = vadd.f32 %v3483, %v3602
  %v3604 = vpop.f32.mrb[0].mxu0
  %3605 = vmatprep.mubr.bf16.mxu0 0
  %3606 = vmatmul.mubr.bf16.gmra.mrb[0].mxu0 %v3459
  %v3607 = vpop.f32.mrb[0].mxu0
  %v3608 = vadd.f32 %v3483, %v3607
  %v3609 = vpop.f32.mrb[0].mxu0
  %v3610 = vpop.f32.mrb[0].mxu0
  %v3611 = vadd.f32 %v3483, %v3610
  %v3612 = vpop.f32.mrb[0].mxu0
  %3613 = vmatprep.mubr.bf16.mxu0 0
  %3614 = vmatmul.mubr.bf16.gmra.mrb[0].mxu0 %v3460
  %v3615 = vpop.f32.mrb[0].mxu0
  %v3616 = vadd.f32 %v3483, %v3615
  %v3617 = vpop.f32.mrb[0].mxu0
  %v3618 = vpop.f32.mrb[0].mxu0
  %v3619 = vadd.f32 %v3483, %v3618
  %v3620 = vpop.f32.mrb[0].mxu0
  %3621 = vmatprep.mubr.bf16.mxu0 0
  %3622 = vmatmul.mubr.bf16.gmra.mrb[0].mxu0 %v3461
  %v3623 = vpop.f32.mrb[0].mxu0
  %v3624 = vadd.f32 %v3483, %v3623
  %v3625 = vpop.f32.mrb[0].mxu0
  %v3626 = vpop.f32.mrb[0].mxu0
  %v3627 = vadd.f32 %v3483, %v3626
  %v3628 = vpop.f32.mrb[0].mxu0
  %3629 = vdwg.mxu0
  %v3630 = vadd.f32 %v2934, %v3568
  %v3631 = vadd.f32 %v2935, %v3571
  %v3632 = vadd.f32 %v2936, %v3576
  %v3633 = vadd.f32 %v2937, %v3579
  %v3634 = vadd.f32 %v2938, %v3584
  %v3635 = vadd.f32 %v2939, %v3587
  %v3636 = vadd.f32 %v2940, %v3592
  %v3637 = vadd.f32 %v2941, %v3595
  %v3638 = vadd.f32 %v2942, %v3600
  %v3639 = vadd.f32 %v2943, %v3603
  %v3640 = vadd.f32 %v2944, %v3608
  %v3641 = vadd.f32 %v2945, %v3611
  %v3642 = vadd.f32 %v2946, %v3616
  %v3643 = vadd.f32 %v2947, %v3619
  %v3644 = vadd.f32 %v2948, %v3624
  %v3645 = vadd.f32 %v2949, %v3627
  %3646 = vst.msk [vmem:[%s10] sm:$0xff] %vm52, %v3630
  %3647 = vst.msk [vmem:[%s10 + $0x8] sm:$0xff] %vm52, %v3631
  %3648 = vst.msk [vmem:[%s10 + $0x10] sm:$0xff] %vm52, %v3632
  %3649 = vst.msk [vmem:[%s10 + $0x18] sm:$0xff] %vm52, %v3633
  %3650 = vst.msk [vmem:[%s10 + $0x20] sm:$0xff] %vm52, %v3634
  %3651 = vst.msk [vmem:[%s10 + $0x28] sm:$0xff] %vm52, %v3635
  %3652 = vst.msk [vmem:[%s10 + $0x30] sm:$0xff] %vm52, %v3636
  %3653 = vst.msk [vmem:[%s10 + $0x38] sm:$0xff] %vm52, %v3637
  %3654 = vst.msk [vmem:[%s10 + $0x40] sm:$0xff] %vm52, %v3638
  %3655 = vst.msk [vmem:[%s10 + $0x48] sm:$0xff] %vm52, %v3639
  %3656 = vst.msk [vmem:[%s10 + $0x50] sm:$0xff] %vm52, %v3640
  %3657 = vst.msk [vmem:[%s10 + $0x58] sm:$0xff] %vm52, %v3641
  %3658 = vst.msk [vmem:[%s10 + $0x60] sm:$0xff] %vm52, %v3642
  %3659 = vst.msk [vmem:[%s10 + $0x68] sm:$0xff] %vm52, %v3643
  %3660 = vst.msk [vmem:[%s10 + $0x70] sm:$0xff] %vm52, %v3644
  %3661 = vst.msk [vmem:[%s10 + $0x78] sm:$0xff] %vm52, %v3645
  // Predicated region
  $region42: #{swin_block_forward.1} parent=0 // pred_check
    _
  $region43: #{swin_block_forward.1} parent=0 // pred_check_branch
    %3663 = sbr.rel (0) target = $region45
  $region44: #{swin_block_forward.1} parent=0 // pred_region
    _
  $region45: #{swin_block_forward.1} parent=0 // pred_fallthru
    _
  // Predicated region
  $region46: #{swin_block_forward.1} parent=0 // pred_check
    _
  $region47: #{swin_block_forward.1} parent=0 // pred_check_branch
    %3665 = sbr.rel (0) target = $region49
  $region48: #{swin_block_forward.1} parent=0 // pred_region
    _
  $region49: #{swin_block_forward.1} parent=0 // pred_fallthru
    _

</llo_original>
